<compile_context>
chip_gen: v6e
topology: v6e:2x2x1
jax: 0.10.0
libtpu: 0.0.40
codegen_flags: <defaults>
</compile_context>

<pallas_src>
import jax
import jax.numpy as jnp
from jax.experimental import pallas as pl
from jax.experimental.pallas import tpu as pltpu

HIDDEN_DIM = 250   # hard-coded in DPCNNModel.__init__
CPAD = 256         # hidden channels zero-padded to a multiple of 128 (lane-dense)


# ---------------------------------------------------------------------------
# in-kernel helpers
# ---------------------------------------------------------------------------
def _conv3(x, w_ref, b_ref):
    """Conv1d(kernel=3, padding=1) over the sequence axis, channel-last.

    x: (L, Cin) f32.  w_ref: (3*Cin, Cout) bf16 im2col weight.  b_ref: (1, Cout) f32.
    Builds an im2col slab (L, 3*Cin) so the three taps become one MXU matmul
    (K = 3*Cin amortizes fill/drain far better than three K=Cin matmuls).
    """
    zero = jnp.zeros_like(x[:1])
    x_prev = jnp.concatenate([zero, x[:-1]], axis=0)     # x[l-1], zero padded
    x_next = jnp.concatenate([x[1:], zero], axis=0)      # x[l+1], zero padded
    slab = jnp.concatenate([x_prev, x, x_next], axis=1).astype(jnp.bfloat16)
    y = jnp.dot(slab, w_ref[...], preferred_element_type=jnp.float32)
    return y + b_ref[...]                                # (L, Cout) f32


def _maxpool_3_2_1(h):
    """MaxPool1d(kernel=3, stride=2, padding=1) over the sequence axis (even L).

    out[j] = max(h[2j-1], h[2j], h[2j+1]).  Full-length sliding-window max
    (cheap VPU shifts), then a stride-2 row selection via a one-hot matmul.
    """
    L = h.shape[0]
    left = jnp.concatenate([h[:1], h[:-1]], axis=0)      # h[l-1]; dup row 0 == -inf pad
    right = jnp.concatenate([h[1:], h[-1:]], axis=0)     # h[l+1]; dup only hits odd rows
    wmax = jnp.maximum(jnp.maximum(left, h), right)      # (L, C) window max
    lo = L // 2
    rows = jax.lax.broadcasted_iota(jnp.int32, (lo, L), 0)
    cols = jax.lax.broadcasted_iota(jnp.int32, (lo, L), 1)
    sel = jnp.where(cols == 2 * rows, 1.0, 0.0).astype(jnp.bfloat16)
    # One-hot selection is exact: wmax entries are bf16-representable (bf16 source).
    return jnp.dot(sel, wmax.astype(jnp.bfloat16),
                   preferred_element_type=jnp.float32)   # (L//2, C) f32


# ---------------------------------------------------------------------------
# Pallas kernels (each processes one batch element)
# ---------------------------------------------------------------------------
def _head_kernel(e_ref, wr_ref, br_ref, w1_ref, b1_ref, w2_ref, b2_ref, o_ref):
    """emb = region_conv(e); x = conv2(relu(conv1(relu(emb)))); out = x + emb."""
    e = e_ref[0].astype(jnp.float32)                     # (L, Epad)
    emb = _conv3(e, wr_ref, br_ref)                      # (L, C) f32
    x = _conv3(jnp.maximum(emb, 0.0), w1_ref, b1_ref)
    x = _conv3(jnp.maximum(x, 0.0), w2_ref, b2_ref)
    o_ref[0] = (x + emb).astype(o_ref.dtype)


def _block_kernel(h_ref, w1_ref, b1_ref, w2_ref, b2_ref, o_ref):
    """CNNBlock: px = maxpool(h); y = conv(relu(conv(relu(px)))); out = y + px."""
    h = h_ref[0].astype(jnp.float32)                     # (L, C)
    px = _maxpool_3_2_1(h)                               # (L//2, C) f32
    y = _conv3(jnp.maximum(px, 0.0), w1_ref, b1_ref)
    y = _conv3(jnp.maximum(y, 0.0), w2_ref, b2_ref)
    o_ref[0] = (y + px).astype(o_ref.dtype)


def _tail_kernel(h_ref, w_ref, b_ref, o_ref):
    """torch.max(x, dim=1)[0] followed by nn.Linear."""
    h = h_ref[0].astype(jnp.float32)                     # (Lf, C)
    m = jnp.max(h, axis=0, keepdims=True)                # (1, C)
    y = jnp.dot(m.astype(jnp.bfloat16), w_ref[...],
                preferred_element_type=jnp.float32) + b_ref[...]
    o_ref[0] = y.astype(o_ref.dtype)                     # (1, T)


# ---------------------------------------------------------------------------
# pallas_call wrappers
# ---------------------------------------------------------------------------
def _const2d(shape):
    return pl.BlockSpec(shape, lambda i: (0, 0))


def head_forward(e, rw, rb, w1, b1, w2, b2):
    B, L, E = e.shape
    C = rw.shape[1]
    return pl.pallas_call(
        _head_kernel,
        out_shape=jax.ShapeDtypeStruct((B, L, C), jnp.bfloat16),
        grid=(B,),
        in_specs=[
            pl.BlockSpec((1, L, E), lambda i: (i, 0, 0)),
            _const2d((3 * E, C)), _const2d((1, C)),
            _const2d((3 * C, C)), _const2d((1, C)),
            _const2d((3 * C, C)), _const2d((1, C)),
        ],
        out_specs=pl.BlockSpec((1, L, C), lambda i: (i, 0, 0)),
        compiler_params=pltpu.CompilerParams(dimension_semantics=("parallel",)),
    )(e, rw, rb, w1, b1, w2, b2)


def block_forward(h, w1, b1, w2, b2):
    B, L, C = h.shape
    assert L % 2 == 0, "even sequence length expected per DPCNN block"
    Lo = L // 2
    return pl.pallas_call(
        _block_kernel,
        out_shape=jax.ShapeDtypeStruct((B, Lo, C), jnp.bfloat16),
        grid=(B,),
        in_specs=[
            pl.BlockSpec((1, L, C), lambda i: (i, 0, 0)),
            _const2d((3 * C, C)), _const2d((1, C)),
            _const2d((3 * C, C)), _const2d((1, C)),
        ],
        out_specs=pl.BlockSpec((1, Lo, C), lambda i: (i, 0, 0)),
        compiler_params=pltpu.CompilerParams(dimension_semantics=("parallel",)),
    )(h, w1, b1, w2, b2)


def max_linear(h, w, b):
    B, Lf, C = h.shape
    T = w.shape[1]
    out = pl.pallas_call(
        _tail_kernel,
        out_shape=jax.ShapeDtypeStruct((B, 1, T), jnp.float32),
        grid=(B,),
        in_specs=[
            pl.BlockSpec((1, Lf, C), lambda i: (i, 0, 0)),
            _const2d((C, T)), _const2d((1, T)),
        ],
        out_specs=pl.BlockSpec((1, 1, T), lambda i: (i, 0, 0)),
        compiler_params=pltpu.CompilerParams(dimension_semantics=("parallel",)),
    )(h, w, b)
    return out[:, 0, :]


# ---------------------------------------------------------------------------
# Parameters (PyTorch-equivalent 250-dim model, packed/padded for the kernels)
# ---------------------------------------------------------------------------
def _ceil_to(x, m):
    return ((x + m - 1) // m) * m


def _pad_to(a, axis, size):
    if a.shape[axis] == size:
        return a
    widths = [(0, 0)] * a.ndim
    widths[axis] = (0, size - a.shape[axis])
    return jnp.pad(a, widths)


def _pack_conv(w, b, cin_pad, cout_pad):
    """(3, Cin, Cout) f32 conv weight -> (3*cin_pad, cout_pad) bf16 im2col matrix."""
    w = _pad_to(_pad_to(w, 1, cin_pad), 2, cout_pad)
    w = w.reshape(3 * cin_pad, cout_pad).astype(jnp.bfloat16)
    b = _pad_to(b, 0, cout_pad).reshape(1, cout_pad).astype(jnp.float32)
    return w, b


def init_params(key, vocab, embed_dim, tag_dim, n_block, padding_id):
    def nrm(k, shape, scale=0.05):
        return scale * jax.random.normal(k, shape, dtype=jnp.float32)

    epad = _ceil_to(embed_dim, 128)
    keys = jax.random.split(key, 10 + 4 * n_block)

    emb = nrm(keys[0], (vocab, embed_dim)).at[padding_id].set(0.0)  # padding_idx row
    emb = _pad_to(emb, 1, epad)                                     # zero lane padding

    rw, rb = _pack_conv(nrm(keys[1], (3, embed_dim, HIDDEN_DIM)),
                        nrm(keys[2], (HIDDEN_DIM,)), epad, CPAD)
    c1w, c1b = _pack_conv(nrm(keys[3], (3, HIDDEN_DIM, HIDDEN_DIM)),
                          nrm(keys[4], (HIDDEN_DIM,)), CPAD, CPAD)
    c2w, c2b = _pack_conv(nrm(keys[5], (3, HIDDEN_DIM, HIDDEN_DIM)),
                          nrm(keys[6], (HIDDEN_DIM,)), CPAD, CPAD)
    lw = _pad_to(nrm(keys[7], (HIDDEN_DIM, tag_dim)), 0, CPAD).astype(jnp.bfloat16)
    lb = nrm(keys[8], (tag_dim,)).reshape(1, tag_dim).astype(jnp.float32)

    blocks = []
    for i in range(n_block):
        k0, k1, k2, k3 = keys[9 + 4 * i: 13 + 4 * i]
        w1, b1 = _pack_conv(nrm(k0, (3, HIDDEN_DIM, HIDDEN_DIM)),
                            nrm(k1, (HIDDEN_DIM,)), CPAD, CPAD)
        w2, b2 = _pack_conv(nrm(k2, (3, HIDDEN_DIM, HIDDEN_DIM)),
                            nrm(k3, (HIDDEN_DIM,)), CPAD, CPAD)
        blocks.append((w1, b1, w2, b2))

    return {"embedding": emb, "region": (rw, rb), "conv1": (c1w, c1b),
            "conv2": (c2w, c2b), "linear": (lw, lb), "blocks": blocks}


# ---------------------------------------------------------------------------
# Forward pass
# ---------------------------------------------------------------------------
def dpcnn_forward(params, tokens):
    """tokens: (B, L) int32 -> (B, tag_dim) float32."""
    # TODO(synk): embedding lookup is a pure gather; kept in plain JAX.
    e = jnp.take(params["embedding"], tokens, axis=0).astype(jnp.bfloat16)  # (B, L, Epad)
    rw, rb = params["region"]
    c1w, c1b = params["conv1"]
    c2w, c2b = params["conv2"]
    h = head_forward(e, rw, rb, c1w, c1b, c2w, c2b)       # region + conv1/2 + residual
    for (w1, b1, w2, b2) in params["blocks"]:             # fused CNNBlocks
        h = block_forward(h, w1, b1, w2, b2)              # pool + 2 convs + residual
    lw, lb = params["linear"]
    return max_linear(h, lw, lb)                          # max over seq + Linear


if __name__ == "__main__":
    # small config consistent with the module
    vocab, embed_dim, tag_dim, n_block, padding_id = 50, 32, 8, 2, 0
    B, L = 2, 16

    key = jax.random.PRNGKey(0)
    pkey, xkey = jax.random.split(key)
    params = init_params(pkey, vocab, embed_dim, tag_dim, n_block, padding_id)
    tokens = jax.random.randint(xkey, (B, L), 0, vocab, dtype=jnp.int32)

    out = jax.jit(dpcnn_forward)(params, tokens)
    out = jax.block_until_ready(out)
    assert out.shape == (B, tag_dim), out.shape
    assert bool(jnp.all(jnp.isfinite(out)))
    print("KERNEL_OK")
</pallas_src>

<mosaic_0001>
module attributes {stable_mosaic.version = 11 : i64} {
  func.func @_head_kernel(%arg0: i32, %arg1: memref<1x16x128xbf16, #tpu.memory_space<vmem>>, %arg2: memref<384x256xbf16, #tpu.memory_space<vmem>>, %arg3: memref<1x256xf32, #tpu.memory_space<vmem>>, %arg4: memref<768x256xbf16, #tpu.memory_space<vmem>>, %arg5: memref<1x256xf32, #tpu.memory_space<vmem>>, %arg6: memref<768x256xbf16, #tpu.memory_space<vmem>>, %arg7: memref<1x256xf32, #tpu.memory_space<vmem>>, %arg8: memref<1x16x256xbf16, #tpu.memory_space<vmem>>) attributes {dimension_semantics = [#tpu.dimension_semantics<parallel>], iteration_bounds = array<i64: 2>, scalar_prefetch = 0 : i64, scratch_operands = 0 : i64, tpu.core_type = #tpu.core_type<tc>, window_params = [{transform_indices = @transform_0, window_bounds = array<i64: 1, 16, 128>}, {pipeline_mode = #tpu.pipeline_mode<synchronous>, transform_indices = @transform_1, window_bounds = array<i64: 384, 256>}, {pipeline_mode = #tpu.pipeline_mode<synchronous>, transform_indices = @transform_2, window_bounds = array<i64: 1, 256>}, {pipeline_mode = #tpu.pipeline_mode<synchronous>, transform_indices = @transform_3, window_bounds = array<i64: 768, 256>}, {pipeline_mode = #tpu.pipeline_mode<synchronous>, transform_indices = @transform_4, window_bounds = array<i64: 1, 256>}, {pipeline_mode = #tpu.pipeline_mode<synchronous>, transform_indices = @transform_5, window_bounds = array<i64: 768, 256>}, {pipeline_mode = #tpu.pipeline_mode<synchronous>, transform_indices = @transform_6, window_bounds = array<i64: 1, 256>}, {transform_indices = @transform_7, window_bounds = array<i64: 1, 16, 256>}]} {
    %c0 = arith.constant 0 : index
    %c0_0 = arith.constant 0 : index
    %c0_1 = arith.constant 0 : index
    %0 = vector.load %arg1[%c0, %c0_0, %c0_1] : memref<1x16x128xbf16, #tpu.memory_space<vmem>>, vector<1x16x128xbf16>
    %1 = vector.shape_cast %0 : vector<1x16x128xbf16> to vector<16x128xbf16>
    %2 = arith.extf %1 : vector<16x128xbf16> to vector<16x128xf32>
    %cst = arith.constant 0.000000e+00 : f32
    %3 = vector.broadcast %cst : f32 to vector<1x128xf32>
    %4 = vector.extract_strided_slice %2 {offsets = [0, 0], sizes = [15, 128], strides = [1, 1]} : vector<16x128xf32> to vector<15x128xf32>
    %5 = tpu.concatenate %3, %4 in 0 : vector<1x128xf32>, vector<15x128xf32> -> vector<16x128xf32>
    %6 = vector.extract_strided_slice %2 {offsets = [1, 0], sizes = [15, 128], strides = [1, 1]} : vector<16x128xf32> to vector<15x128xf32>
    %7 = tpu.concatenate %6, %3 in 0 : vector<15x128xf32>, vector<1x128xf32> -> vector<16x128xf32>
    %8 = tpu.concatenate %5, %2, %7 in 1 : vector<16x128xf32>, vector<16x128xf32>, vector<16x128xf32> -> vector<16x384xf32>
    %9 = arith.truncf %8 : vector<16x384xf32> to vector<16x384xbf16>
    %c0_2 = arith.constant 0 : index
    %c0_3 = arith.constant 0 : index
    %10 = vector.load %arg2[%c0_2, %c0_3] : memref<384x256xbf16, #tpu.memory_space<vmem>>, vector<384x256xbf16>
    %cst_4 = arith.constant dense<0.000000e+00> : vector<16x256xf32>
    %11 = tpu.matmul %9, %10, %cst_4 {dimension_numbers = #tpu.dot_dimension_numbers<[1], [0], [0], [1], [0, 0, 1, 1], [], []>} : vector<16x384xbf16>, vector<384x256xbf16>, vector<16x256xf32> -> vector<16x256xf32>
    %c0_5 = arith.constant 0 : index
    %c0_6 = arith.constant 0 : index
    %12 = vector.load %arg3[%c0_5, %c0_6] : memref<1x256xf32, #tpu.memory_space<vmem>>, vector<1x256xf32>
    %13 = vector.broadcast %12 : vector<1x256xf32> to vector<16x256xf32>
    %14 = arith.addf %11, %13 : vector<16x256xf32>
    %cst_7 = arith.constant 0.000000e+00 : f32
    %15 = vector.broadcast %cst_7 : f32 to vector<16x256xf32>
    %16 = arith.maximumf %14, %15 : vector<16x256xf32>
    %cst_8 = arith.constant 0.000000e+00 : f32
    %17 = vector.broadcast %cst_8 : f32 to vector<1x256xf32>
    %18 = vector.extract_strided_slice %16 {offsets = [0, 0], sizes = [15, 256], strides = [1, 1]} : vector<16x256xf32> to vector<15x256xf32>
    %19 = tpu.concatenate %17, %18 in 0 : vector<1x256xf32>, vector<15x256xf32> -> vector<16x256xf32>
    %20 = vector.extract_strided_slice %16 {offsets = [1, 0], sizes = [15, 256], strides = [1, 1]} : vector<16x256xf32> to vector<15x256xf32>
    %21 = tpu.concatenate %20, %17 in 0 : vector<15x256xf32>, vector<1x256xf32> -> vector<16x256xf32>
    %22 = tpu.concatenate %19, %16, %21 in 1 : vector<16x256xf32>, vector<16x256xf32>, vector<16x256xf32> -> vector<16x768xf32>
    %23 = arith.truncf %22 : vector<16x768xf32> to vector<16x768xbf16>
    %c0_9 = arith.constant 0 : index
    %c0_10 = arith.constant 0 : index
    %24 = vector.load %arg4[%c0_9, %c0_10] : memref<768x256xbf16, #tpu.memory_space<vmem>>, vector<768x256xbf16>
    %cst_11 = arith.constant dense<0.000000e+00> : vector<16x256xf32>
    %25 = tpu.matmul %23, %24, %cst_11 {dimension_numbers = #tpu.dot_dimension_numbers<[1], [0], [0], [1], [0, 0, 1, 1], [], []>} : vector<16x768xbf16>, vector<768x256xbf16>, vector<16x256xf32> -> vector<16x256xf32>
    %c0_12 = arith.constant 0 : index
    %c0_13 = arith.constant 0 : index
    %26 = vector.load %arg5[%c0_12, %c0_13] : memref<1x256xf32, #tpu.memory_space<vmem>>, vector<1x256xf32>
    %27 = vector.broadcast %26 : vector<1x256xf32> to vector<16x256xf32>
    %28 = arith.addf %25, %27 : vector<16x256xf32>
    %cst_14 = arith.constant 0.000000e+00 : f32
    %29 = vector.broadcast %cst_14 : f32 to vector<16x256xf32>
    %30 = arith.maximumf %28, %29 : vector<16x256xf32>
    %cst_15 = arith.constant 0.000000e+00 : f32
    %31 = vector.broadcast %cst_15 : f32 to vector<1x256xf32>
    %32 = vector.extract_strided_slice %30 {offsets = [0, 0], sizes = [15, 256], strides = [1, 1]} : vector<16x256xf32> to vector<15x256xf32>
    %33 = tpu.concatenate %31, %32 in 0 : vector<1x256xf32>, vector<15x256xf32> -> vector<16x256xf32>
    %34 = vector.extract_strided_slice %30 {offsets = [1, 0], sizes = [15, 256], strides = [1, 1]} : vector<16x256xf32> to vector<15x256xf32>
    %35 = tpu.concatenate %34, %31 in 0 : vector<15x256xf32>, vector<1x256xf32> -> vector<16x256xf32>
    %36 = tpu.concatenate %33, %30, %35 in 1 : vector<16x256xf32>, vector<16x256xf32>, vector<16x256xf32> -> vector<16x768xf32>
    %37 = arith.truncf %36 : vector<16x768xf32> to vector<16x768xbf16>
    %c0_16 = arith.constant 0 : index
    %c0_17 = arith.constant 0 : index
    %38 = vector.load %arg6[%c0_16, %c0_17] : memref<768x256xbf16, #tpu.memory_space<vmem>>, vector<768x256xbf16>
    %cst_18 = arith.constant dense<0.000000e+00> : vector<16x256xf32>
    %39 = tpu.matmul %37, %38, %cst_18 {dimension_numbers = #tpu.dot_dimension_numbers<[1], [0], [0], [1], [0, 0, 1, 1], [], []>} : vector<16x768xbf16>, vector<768x256xbf16>, vector<16x256xf32> -> vector<16x256xf32>
    %c0_19 = arith.constant 0 : index
    %c0_20 = arith.constant 0 : index
    %40 = vector.load %arg7[%c0_19, %c0_20] : memref<1x256xf32, #tpu.memory_space<vmem>>, vector<1x256xf32>
    %41 = vector.broadcast %40 : vector<1x256xf32> to vector<16x256xf32>
    %42 = arith.addf %39, %41 : vector<16x256xf32>
    %43 = arith.addf %42, %14 : vector<16x256xf32>
    %44 = arith.truncf %43 : vector<16x256xf32> to vector<16x256xbf16>
    %c0_21 = arith.constant 0 : index
    %c0_22 = arith.constant 0 : index
    %c0_23 = arith.constant 0 : index
    %45 = vector.load %arg8[%c0_21, %c0_22, %c0_23] : memref<1x16x256xbf16, #tpu.memory_space<vmem>>, vector<1x16x256xbf16>
    %46 = vector.shape_cast %45 : vector<1x16x256xbf16> to vector<16x256xbf16>
    %47 = vector.shape_cast %44 : vector<16x256xbf16> to vector<1x16x256xbf16>
    tpu.vector_store %arg8[%c0_21, %c0_22, %c0_23], %47 {strides = array<i32>} : memref<1x16x256xbf16, #tpu.memory_space<vmem>>, vector<1x16x256xbf16>,
    return
  }
  func.func @transform_0(%arg0: i32) -> (i32, i32, i32) {
    %c0_i32 = arith.constant 0 : i32
    %c0_i32_0 = arith.constant 0 : i32
    %c0_i32_1 = arith.constant 0 : i32
    return %arg0, %c0_i32, %c0_i32_0 : i32, i32, i32
  }
  func.func @transform_1(%arg0: i32) -> (i32, i32) {
    %c0_i32 = arith.constant 0 : i32
    %c0_i32_0 = arith.constant 0 : i32
    %c0_i32_1 = arith.constant 0 : i32
    return %c0_i32, %c0_i32_0 : i32, i32
  }
  func.func @transform_2(%arg0: i32) -> (i32, i32) {
    %c0_i32 = arith.constant 0 : i32
    %c0_i32_0 = arith.constant 0 : i32
    %c0_i32_1 = arith.constant 0 : i32
    return %c0_i32, %c0_i32_0 : i32, i32
  }
  func.func @transform_3(%arg0: i32) -> (i32, i32) {
    %c0_i32 = arith.constant 0 : i32
    %c0_i32_0 = arith.constant 0 : i32
    %c0_i32_1 = arith.constant 0 : i32
    return %c0_i32, %c0_i32_0 : i32, i32
  }
  func.func @transform_4(%arg0: i32) -> (i32, i32) {
    %c0_i32 = arith.constant 0 : i32
    %c0_i32_0 = arith.constant 0 : i32
    %c0_i32_1 = arith.constant 0 : i32
    return %c0_i32, %c0_i32_0 : i32, i32
  }
  func.func @transform_5(%arg0: i32) -> (i32, i32) {
    %c0_i32 = arith.constant 0 : i32
    %c0_i32_0 = arith.constant 0 : i32
    %c0_i32_1 = arith.constant 0 : i32
    return %c0_i32, %c0_i32_0 : i32, i32
  }
  func.func @transform_6(%arg0: i32) -> (i32, i32) {
    %c0_i32 = arith.constant 0 : i32
    %c0_i32_0 = arith.constant 0 : i32
    %c0_i32_1 = arith.constant 0 : i32
    return %c0_i32, %c0_i32_0 : i32, i32
  }
  func.func @transform_7(%arg0: i32) -> (i32, i32, i32) {
    %c0_i32 = arith.constant 0 : i32
    %c0_i32_0 = arith.constant 0 : i32
    %c0_i32_1 = arith.constant 0 : i32
    return %arg0, %c0_i32, %c0_i32_0 : i32, i32, i32
  }
}

module attributes {stable_mosaic.version = 11 : i64} {
  func.func @_block_kernel(%arg0: i32, %arg1: memref<1x8x256xbf16, #tpu.memory_space<vmem>>, %arg2: memref<768x256xbf16, #tpu.memory_space<vmem>>, %arg3: memref<1x256xf32, #tpu.memory_space<vmem>>, %arg4: memref<768x256xbf16, #tpu.memory_space<vmem>>, %arg5: memref<1x256xf32, #tpu.memory_space<vmem>>, %arg6: memref<1x4x256xbf16, #tpu.memory_space<vmem>>) attributes {dimension_semantics = [#tpu.dimension_semantics<parallel>], iteration_bounds = array<i64: 2>, scalar_prefetch = 0 : i64, scratch_operands = 0 : i64, tpu.core_type = #tpu.core_type<tc>, window_params = [{transform_indices = @transform_0, window_bounds = array<i64: 1, 8, 256>}, {pipeline_mode = #tpu.pipeline_mode<synchronous>, transform_indices = @transform_1, window_bounds = array<i64: 768, 256>}, {pipeline_mode = #tpu.pipeline_mode<synchronous>, transform_indices = @transform_2, window_bounds = array<i64: 1, 256>}, {pipeline_mode = #tpu.pipeline_mode<synchronous>, transform_indices = @transform_3, window_bounds = array<i64: 768, 256>}, {pipeline_mode = #tpu.pipeline_mode<synchronous>, transform_indices = @transform_4, window_bounds = array<i64: 1, 256>}, {transform_indices = @transform_5, window_bounds = array<i64: 1, 4, 256>}]} {
    %c0 = arith.constant 0 : index
    %c0_0 = arith.constant 0 : index
    %c0_1 = arith.constant 0 : index
    %0 = vector.load %arg1[%c0, %c0_0, %c0_1] : memref<1x8x256xbf16, #tpu.memory_space<vmem>>, vector<1x8x256xbf16>
    %1 = vector.shape_cast %0 : vector<1x8x256xbf16> to vector<8x256xbf16>
    %2 = arith.extf %1 : vector<8x256xbf16> to vector<8x256xf32>
    %3 = vector.extract_strided_slice %2 {offsets = [0, 0], sizes = [1, 256], strides = [1, 1]} : vector<8x256xf32> to vector<1x256xf32>
    %4 = vector.extract_strided_slice %2 {offsets = [0, 0], sizes = [7, 256], strides = [1, 1]} : vector<8x256xf32> to vector<7x256xf32>
    %5 = tpu.concatenate %3, %4 in 0 : vector<1x256xf32>, vector<7x256xf32> -> vector<8x256xf32>
    %6 = vector.extract_strided_slice %2 {offsets = [1, 0], sizes = [7, 256], strides = [1, 1]} : vector<8x256xf32> to vector<7x256xf32>
    %7 = vector.extract_strided_slice %2 {offsets = [7, 0], sizes = [1, 256], strides = [1, 1]} : vector<8x256xf32> to vector<1x256xf32>
    %8 = tpu.concatenate %6, %7 in 0 : vector<7x256xf32>, vector<1x256xf32> -> vector<8x256xf32>
    %9 = arith.maximumf %5, %2 : vector<8x256xf32>
    %10 = arith.maximumf %9, %8 : vector<8x256xf32>
    %11 = tpu.iota {dimensions = array<i32: 0>} : vector<4x8xi32>
    %12 = tpu.iota {dimensions = array<i32: 1>} : vector<4x8xi32>
    %c2_i32 = arith.constant 2 : i32
    %13 = vector.broadcast %c2_i32 : i32 to vector<4x8xi32>
    %14 = arith.muli %13, %11 : vector<4x8xi32>
    %15 = arith.cmpi eq, %12, %14 : vector<4x8xi32>
    %cst = arith.constant 1.000000e+00 : f32
    %cst_2 = arith.constant 0.000000e+00 : f32
    %16 = vector.broadcast %cst : f32 to vector<4x8xf32>
    %17 = vector.broadcast %cst_2 : f32 to vector<4x8xf32>
    %18 = arith.select %15, %16, %17 : vector<4x8xi1>, vector<4x8xf32>
    %19 = arith.truncf %18 : vector<4x8xf32> to vector<4x8xbf16>
    %20 = arith.truncf %10 : vector<8x256xf32> to vector<8x256xbf16>
    %cst_3 = arith.constant dense<0.000000e+00> : vector<4x256xf32>
    %21 = tpu.matmul %19, %20, %cst_3 {dimension_numbers = #tpu.dot_dimension_numbers<[1], [0], [0], [1], [0, 0, 1, 1], [], []>} : vector<4x8xbf16>, vector<8x256xbf16>, vector<4x256xf32> -> vector<4x256xf32>
    %cst_4 = arith.constant 0.000000e+00 : f32
    %22 = vector.broadcast %cst_4 : f32 to vector<4x256xf32>
    %23 = arith.maximumf %21, %22 : vector<4x256xf32>
    %cst_5 = arith.constant 0.000000e+00 : f32
    %24 = vector.broadcast %cst_5 : f32 to vector<1x256xf32>
    %25 = vector.extract_strided_slice %23 {offsets = [0, 0], sizes = [3, 256], strides = [1, 1]} : vector<4x256xf32> to vector<3x256xf32>
    %26 = tpu.concatenate %24, %25 in 0 : vector<1x256xf32>, vector<3x256xf32> -> vector<4x256xf32>
    %27 = vector.extract_strided_slice %23 {offsets = [1, 0], sizes = [3, 256], strides = [1, 1]} : vector<4x256xf32> to vector<3x256xf32>
    %28 = tpu.concatenate %27, %24 in 0 : vector<3x256xf32>, vector<1x256xf32> -> vector<4x256xf32>
    %29 = tpu.concatenate %26, %23, %28 in 1 : vector<4x256xf32>, vector<4x256xf32>, vector<4x256xf32> -> vector<4x768xf32>
    %30 = arith.truncf %29 : vector<4x768xf32> to vector<4x768xbf16>
    %c0_6 = arith.constant 0 : index
    %c0_7 = arith.constant 0 : index
    %31 = vector.load %arg2[%c0_6, %c0_7] : memref<768x256xbf16, #tpu.memory_space<vmem>>, vector<768x256xbf16>
    %cst_8 = arith.constant dense<0.000000e+00> : vector<4x256xf32>
    %32 = tpu.matmul %30, %31, %cst_8 {dimension_numbers = #tpu.dot_dimension_numbers<[1], [0], [0], [1], [0, 0, 1, 1], [], []>} : vector<4x768xbf16>, vector<768x256xbf16>, vector<4x256xf32> -> vector<4x256xf32>
    %c0_9 = arith.constant 0 : index
    %c0_10 = arith.constant 0 : index
    %33 = vector.load %arg3[%c0_9, %c0_10] : memref<1x256xf32, #tpu.memory_space<vmem>>, vector<1x256xf32>
    %34 = vector.broadcast %33 : vector<1x256xf32> to vector<4x256xf32>
    %35 = arith.addf %32, %34 : vector<4x256xf32>
    %cst_11 = arith.constant 0.000000e+00 : f32
    %36 = vector.broadcast %cst_11 : f32 to vector<4x256xf32>
    %37 = arith.maximumf %35, %36 : vector<4x256xf32>
    %cst_12 = arith.constant 0.000000e+00 : f32
    %38 = vector.broadcast %cst_12 : f32 to vector<1x256xf32>
    %39 = vector.extract_strided_slice %37 {offsets = [0, 0], sizes = [3, 256], strides = [1, 1]} : vector<4x256xf32> to vector<3x256xf32>
    %40 = tpu.concatenate %38, %39 in 0 : vector<1x256xf32>, vector<3x256xf32> -> vector<4x256xf32>
    %41 = vector.extract_strided_slice %37 {offsets = [1, 0], sizes = [3, 256], strides = [1, 1]} : vector<4x256xf32> to vector<3x256xf32>
    %42 = tpu.concatenate %41, %38 in 0 : vector<3x256xf32>, vector<1x256xf32> -> vector<4x256xf32>
    %43 = tpu.concatenate %40, %37, %42 in 1 : vector<4x256xf32>, vector<4x256xf32>, vector<4x256xf32> -> vector<4x768xf32>
    %44 = arith.truncf %43 : vector<4x768xf32> to vector<4x768xbf16>
    %c0_13 = arith.constant 0 : index
    %c0_14 = arith.constant 0 : index
    %45 = vector.load %arg4[%c0_13, %c0_14] : memref<768x256xbf16, #tpu.memory_space<vmem>>, vector<768x256xbf16>
    %cst_15 = arith.constant dense<0.000000e+00> : vector<4x256xf32>
    %46 = tpu.matmul %44, %45, %cst_15 {dimension_numbers = #tpu.dot_dimension_numbers<[1], [0], [0], [1], [0, 0, 1, 1], [], []>} : vector<4x768xbf16>, vector<768x256xbf16>, vector<4x256xf32> -> vector<4x256xf32>
    %c0_16 = arith.constant 0 : index
    %c0_17 = arith.constant 0 : index
    %47 = vector.load %arg5[%c0_16, %c0_17] : memref<1x256xf32, #tpu.memory_space<vmem>>, vector<1x256xf32>
    %48 = vector.broadcast %47 : vector<1x256xf32> to vector<4x256xf32>
    %49 = arith.addf %46, %48 : vector<4x256xf32>
    %50 = arith.addf %49, %21 : vector<4x256xf32>
    %51 = arith.truncf %50 : vector<4x256xf32> to vector<4x256xbf16>
    %c0_18 = arith.constant 0 : index
    %c0_19 = arith.constant 0 : index
    %c0_20 = arith.constant 0 : index
    %52 = vector.load %arg6[%c0_18, %c0_19, %c0_20] : memref<1x4x256xbf16, #tpu.memory_space<vmem>>, vector<1x4x256xbf16>
    %53 = vector.shape_cast %52 : vector<1x4x256xbf16> to vector<4x256xbf16>
    %54 = vector.shape_cast %51 : vector<4x256xbf16> to vector<1x4x256xbf16>
    tpu.vector_store %arg6[%c0_18, %c0_19, %c0_20], %54 {strides = array<i32>} : memref<1x4x256xbf16, #tpu.memory_space<vmem>>, vector<1x4x256xbf16>,
    return
  }
  func.func @transform_0(%arg0: i32) -> (i32, i32, i32) {
    %c0_i32 = arith.constant 0 : i32
    %c0_i32_0 = arith.constant 0 : i32
    %c0_i32_1 = arith.constant 0 : i32
    return %arg0, %c0_i32, %c0_i32_0 : i32, i32, i32
  }
  func.func @transform_1(%arg0: i32) -> (i32, i32) {
    %c0_i32 = arith.constant 0 : i32
    %c0_i32_0 = arith.constant 0 : i32
    %c0_i32_1 = arith.constant 0 : i32
    return %c0_i32, %c0_i32_0 : i32, i32
  }
  func.func @transform_2(%arg0: i32) -> (i32, i32) {
    %c0_i32 = arith.constant 0 : i32
    %c0_i32_0 = arith.constant 0 : i32
    %c0_i32_1 = arith.constant 0 : i32
    return %c0_i32, %c0_i32_0 : i32, i32
  }
  func.func @transform_3(%arg0: i32) -> (i32, i32) {
    %c0_i32 = arith.constant 0 : i32
    %c0_i32_0 = arith.constant 0 : i32
    %c0_i32_1 = arith.constant 0 : i32
    return %c0_i32, %c0_i32_0 : i32, i32
  }
  func.func @transform_4(%arg0: i32) -> (i32, i32) {
    %c0_i32 = arith.constant 0 : i32
    %c0_i32_0 = arith.constant 0 : i32
    %c0_i32_1 = arith.constant 0 : i32
    return %c0_i32, %c0_i32_0 : i32, i32
  }
  func.func @transform_5(%arg0: i32) -> (i32, i32, i32) {
    %c0_i32 = arith.constant 0 : i32
    %c0_i32_0 = arith.constant 0 : i32
    %c0_i32_1 = arith.constant 0 : i32
    return %arg0, %c0_i32, %c0_i32_0 : i32, i32, i32
  }
}

module attributes {stable_mosaic.version = 11 : i64} {
  func.func @_tail_kernel(%arg0: i32, %arg1: memref<1x4x256xbf16, #tpu.memory_space<vmem>>, %arg2: memref<256x8xbf16, #tpu.memory_space<vmem>>, %arg3: memref<1x8xf32, #tpu.memory_space<vmem>>, %arg4: memref<1x1x8xf32, #tpu.memory_space<vmem>>) attributes {dimension_semantics = [#tpu.dimension_semantics<parallel>], iteration_bounds = array<i64: 2>, scalar_prefetch = 0 : i64, scratch_operands = 0 : i64, tpu.core_type = #tpu.core_type<tc>, window_params = [{transform_indices = @transform_0, window_bounds = array<i64: 1, 4, 256>}, {pipeline_mode = #tpu.pipeline_mode<synchronous>, transform_indices = @transform_1, window_bounds = array<i64: 256, 8>}, {pipeline_mode = #tpu.pipeline_mode<synchronous>, transform_indices = @transform_2, window_bounds = array<i64: 1, 8>}, {transform_indices = @transform_3, window_bounds = array<i64: 1, 1, 8>}]} {
    %c0 = arith.constant 0 : index
    %c0_0 = arith.constant 0 : index
    %c0_1 = arith.constant 0 : index
    %0 = vector.load %arg1[%c0, %c0_0, %c0_1] : memref<1x4x256xbf16, #tpu.memory_space<vmem>>, vector<1x4x256xbf16>
    %1 = vector.shape_cast %0 : vector<1x4x256xbf16> to vector<4x256xbf16>
    %2 = arith.extf %1 : vector<4x256xbf16> to vector<4x256xf32>
    %cst = arith.constant dense<0xFF800000> : vector<256xf32>
    %3 = vector.multi_reduction <maximumf>, %2, %cst [0] : vector<4x256xf32> to vector<256xf32>
    %4 = vector.shape_cast %3 : vector<256xf32> to vector<1x256xf32>
    %5 = arith.truncf %4 : vector<1x256xf32> to vector<1x256xbf16>
    %c0_2 = arith.constant 0 : index
    %c0_3 = arith.constant 0 : index
    %6 = vector.load %arg2[%c0_2, %c0_3] : memref<256x8xbf16, #tpu.memory_space<vmem>>, vector<256x8xbf16>
    %cst_4 = arith.constant dense<0.000000e+00> : vector<1x8xf32>
    %7 = tpu.matmul %5, %6, %cst_4 {dimension_numbers = #tpu.dot_dimension_numbers<[1], [0], [0], [1], [0, 0, 1, 1], [], []>} : vector<1x256xbf16>, vector<256x8xbf16>, vector<1x8xf32> -> vector<1x8xf32>
    %c0_5 = arith.constant 0 : index
    %c0_6 = arith.constant 0 : index
    %8 = vector.load %arg3[%c0_5, %c0_6] : memref<1x8xf32, #tpu.memory_space<vmem>>, vector<1x8xf32>
    %9 = arith.addf %7, %8 : vector<1x8xf32>
    %c0_7 = arith.constant 0 : index
    %c0_8 = arith.constant 0 : index
    %c0_9 = arith.constant 0 : index
    %10 = vector.load %arg4[%c0_7, %c0_8, %c0_9] : memref<1x1x8xf32, #tpu.memory_space<vmem>>, vector<1x1x8xf32>
    %11 = vector.shape_cast %10 : vector<1x1x8xf32> to vector<1x8xf32>
    %12 = vector.shape_cast %9 : vector<1x8xf32> to vector<1x1x8xf32>
    tpu.vector_store %arg4[%c0_7, %c0_8, %c0_9], %12 {strides = array<i32>} : memref<1x1x8xf32, #tpu.memory_space<vmem>>, vector<1x1x8xf32>,
    return
  }
  func.func @transform_0(%arg0: i32) -> (i32, i32, i32) {
    %c0_i32 = arith.constant 0 : i32
    %c0_i32_0 = arith.constant 0 : i32
    %c0_i32_1 = arith.constant 0 : i32
    return %arg0, %c0_i32, %c0_i32_0 : i32, i32, i32
  }
  func.func @transform_1(%arg0: i32) -> (i32, i32) {
    %c0_i32 = arith.constant 0 : i32
    %c0_i32_0 = arith.constant 0 : i32
    %c0_i32_1 = arith.constant 0 : i32
    return %c0_i32, %c0_i32_0 : i32, i32
  }
  func.func @transform_2(%arg0: i32) -> (i32, i32) {
    %c0_i32 = arith.constant 0 : i32
    %c0_i32_0 = arith.constant 0 : i32
    %c0_i32_1 = arith.constant 0 : i32
    return %c0_i32, %c0_i32_0 : i32, i32
  }
  func.func @transform_3(%arg0: i32) -> (i32, i32, i32) {
    %c0_i32 = arith.constant 0 : i32
    %c0_i32_0 = arith.constant 0 : i32
    %c0_i32_1 = arith.constant 0 : i32
    return %arg0, %c0_i32, %c0_i32_0 : i32, i32, i32
  }
}

module attributes {stable_mosaic.version = 11 : i64} {
  func.func @_block_kernel(%arg0: i32, %arg1: memref<1x16x256xbf16, #tpu.memory_space<vmem>>, %arg2: memref<768x256xbf16, #tpu.memory_space<vmem>>, %arg3: memref<1x256xf32, #tpu.memory_space<vmem>>, %arg4: memref<768x256xbf16, #tpu.memory_space<vmem>>, %arg5: memref<1x256xf32, #tpu.memory_space<vmem>>, %arg6: memref<1x8x256xbf16, #tpu.memory_space<vmem>>) attributes {dimension_semantics = [#tpu.dimension_semantics<parallel>], iteration_bounds = array<i64: 2>, scalar_prefetch = 0 : i64, scratch_operands = 0 : i64, tpu.core_type = #tpu.core_type<tc>, window_params = [{transform_indices = @transform_0, window_bounds = array<i64: 1, 16, 256>}, {pipeline_mode = #tpu.pipeline_mode<synchronous>, transform_indices = @transform_1, window_bounds = array<i64: 768, 256>}, {pipeline_mode = #tpu.pipeline_mode<synchronous>, transform_indices = @transform_2, window_bounds = array<i64: 1, 256>}, {pipeline_mode = #tpu.pipeline_mode<synchronous>, transform_indices = @transform_3, window_bounds = array<i64: 768, 256>}, {pipeline_mode = #tpu.pipeline_mode<synchronous>, transform_indices = @transform_4, window_bounds = array<i64: 1, 256>}, {transform_indices = @transform_5, window_bounds = array<i64: 1, 8, 256>}]} {
    %c0 = arith.constant 0 : index
    %c0_0 = arith.constant 0 : index
    %c0_1 = arith.constant 0 : index
    %0 = vector.load %arg1[%c0, %c0_0, %c0_1] : memref<1x16x256xbf16, #tpu.memory_space<vmem>>, vector<1x16x256xbf16>
    %1 = vector.shape_cast %0 : vector<1x16x256xbf16> to vector<16x256xbf16>
    %2 = arith.extf %1 : vector<16x256xbf16> to vector<16x256xf32>
    %3 = vector.extract_strided_slice %2 {offsets = [0, 0], sizes = [1, 256], strides = [1, 1]} : vector<16x256xf32> to vector<1x256xf32>
    %4 = vector.extract_strided_slice %2 {offsets = [0, 0], sizes = [15, 256], strides = [1, 1]} : vector<16x256xf32> to vector<15x256xf32>
    %5 = tpu.concatenate %3, %4 in 0 : vector<1x256xf32>, vector<15x256xf32> -> vector<16x256xf32>
    %6 = vector.extract_strided_slice %2 {offsets = [1, 0], sizes = [15, 256], strides = [1, 1]} : vector<16x256xf32> to vector<15x256xf32>
    %7 = vector.extract_strided_slice %2 {offsets = [15, 0], sizes = [1, 256], strides = [1, 1]} : vector<16x256xf32> to vector<1x256xf32>
    %8 = tpu.concatenate %6, %7 in 0 : vector<15x256xf32>, vector<1x256xf32> -> vector<16x256xf32>
    %9 = arith.maximumf %5, %2 : vector<16x256xf32>
    %10 = arith.maximumf %9, %8 : vector<16x256xf32>
    %11 = tpu.iota {dimensions = array<i32: 0>} : vector<8x16xi32>
    %12 = tpu.iota {dimensions = array<i32: 1>} : vector<8x16xi32>
    %c2_i32 = arith.constant 2 : i32
    %13 = vector.broadcast %c2_i32 : i32 to vector<8x16xi32>
    %14 = arith.muli %13, %11 : vector<8x16xi32>
    %15 = arith.cmpi eq, %12, %14 : vector<8x16xi32>
    %cst = arith.constant 1.000000e+00 : f32
    %cst_2 = arith.constant 0.000000e+00 : f32
    %16 = vector.broadcast %cst : f32 to vector<8x16xf32>
    %17 = vector.broadcast %cst_2 : f32 to vector<8x16xf32>
    %18 = arith.select %15, %16, %17 : vector<8x16xi1>, vector<8x16xf32>
    %19 = arith.truncf %18 : vector<8x16xf32> to vector<8x16xbf16>
    %20 = arith.truncf %10 : vector<16x256xf32> to vector<16x256xbf16>
    %cst_3 = arith.constant dense<0.000000e+00> : vector<8x256xf32>
    %21 = tpu.matmul %19, %20, %cst_3 {dimension_numbers = #tpu.dot_dimension_numbers<[1], [0], [0], [1], [0, 0, 1, 1], [], []>} : vector<8x16xbf16>, vector<16x256xbf16>, vector<8x256xf32> -> vector<8x256xf32>
    %cst_4 = arith.constant 0.000000e+00 : f32
    %22 = vector.broadcast %cst_4 : f32 to vector<8x256xf32>
    %23 = arith.maximumf %21, %22 : vector<8x256xf32>
    %cst_5 = arith.constant 0.000000e+00 : f32
    %24 = vector.broadcast %cst_5 : f32 to vector<1x256xf32>
    %25 = vector.extract_strided_slice %23 {offsets = [0, 0], sizes = [7, 256], strides = [1, 1]} : vector<8x256xf32> to vector<7x256xf32>
    %26 = tpu.concatenate %24, %25 in 0 : vector<1x256xf32>, vector<7x256xf32> -> vector<8x256xf32>
    %27 = vector.extract_strided_slice %23 {offsets = [1, 0], sizes = [7, 256], strides = [1, 1]} : vector<8x256xf32> to vector<7x256xf32>
    %28 = tpu.concatenate %27, %24 in 0 : vector<7x256xf32>, vector<1x256xf32> -> vector<8x256xf32>
    %29 = tpu.concatenate %26, %23, %28 in 1 : vector<8x256xf32>, vector<8x256xf32>, vector<8x256xf32> -> vector<8x768xf32>
    %30 = arith.truncf %29 : vector<8x768xf32> to vector<8x768xbf16>
    %c0_6 = arith.constant 0 : index
    %c0_7 = arith.constant 0 : index
    %31 = vector.load %arg2[%c0_6, %c0_7] : memref<768x256xbf16, #tpu.memory_space<vmem>>, vector<768x256xbf16>
    %cst_8 = arith.constant dense<0.000000e+00> : vector<8x256xf32>
    %32 = tpu.matmul %30, %31, %cst_8 {dimension_numbers = #tpu.dot_dimension_numbers<[1], [0], [0], [1], [0, 0, 1, 1], [], []>} : vector<8x768xbf16>, vector<768x256xbf16>, vector<8x256xf32> -> vector<8x256xf32>
    %c0_9 = arith.constant 0 : index
    %c0_10 = arith.constant 0 : index
    %33 = vector.load %arg3[%c0_9, %c0_10] : memref<1x256xf32, #tpu.memory_space<vmem>>, vector<1x256xf32>
    %34 = vector.broadcast %33 : vector<1x256xf32> to vector<8x256xf32>
    %35 = arith.addf %32, %34 : vector<8x256xf32>
    %cst_11 = arith.constant 0.000000e+00 : f32
    %36 = vector.broadcast %cst_11 : f32 to vector<8x256xf32>
    %37 = arith.maximumf %35, %36 : vector<8x256xf32>
    %cst_12 = arith.constant 0.000000e+00 : f32
    %38 = vector.broadcast %cst_12 : f32 to vector<1x256xf32>
    %39 = vector.extract_strided_slice %37 {offsets = [0, 0], sizes = [7, 256], strides = [1, 1]} : vector<8x256xf32> to vector<7x256xf32>
    %40 = tpu.concatenate %38, %39 in 0 : vector<1x256xf32>, vector<7x256xf32> -> vector<8x256xf32>
    %41 = vector.extract_strided_slice %37 {offsets = [1, 0], sizes = [7, 256], strides = [1, 1]} : vector<8x256xf32> to vector<7x256xf32>
    %42 = tpu.concatenate %41, %38 in 0 : vector<7x256xf32>, vector<1x256xf32> -> vector<8x256xf32>
    %43 = tpu.concatenate %40, %37, %42 in 1 : vector<8x256xf32>, vector<8x256xf32>, vector<8x256xf32> -> vector<8x768xf32>
    %44 = arith.truncf %43 : vector<8x768xf32> to vector<8x768xbf16>
    %c0_13 = arith.constant 0 : index
    %c0_14 = arith.constant 0 : index
    %45 = vector.load %arg4[%c0_13, %c0_14] : memref<768x256xbf16, #tpu.memory_space<vmem>>, vector<768x256xbf16>
    %cst_15 = arith.constant dense<0.000000e+00> : vector<8x256xf32>
    %46 = tpu.matmul %44, %45, %cst_15 {dimension_numbers = #tpu.dot_dimension_numbers<[1], [0], [0], [1], [0, 0, 1, 1], [], []>} : vector<8x768xbf16>, vector<768x256xbf16>, vector<8x256xf32> -> vector<8x256xf32>
    %c0_16 = arith.constant 0 : index
    %c0_17 = arith.constant 0 : index
    %47 = vector.load %arg5[%c0_16, %c0_17] : memref<1x256xf32, #tpu.memory_space<vmem>>, vector<1x256xf32>
    %48 = vector.broadcast %47 : vector<1x256xf32> to vector<8x256xf32>
    %49 = arith.addf %46, %48 : vector<8x256xf32>
    %50 = arith.addf %49, %21 : vector<8x256xf32>
    %51 = arith.truncf %50 : vector<8x256xf32> to vector<8x256xbf16>
    %c0_18 = arith.constant 0 : index
    %c0_19 = arith.constant 0 : index
    %c0_20 = arith.constant 0 : index
    %52 = vector.load %arg6[%c0_18, %c0_19, %c0_20] : memref<1x8x256xbf16, #tpu.memory_space<vmem>>, vector<1x8x256xbf16>
    %53 = vector.shape_cast %52 : vector<1x8x256xbf16> to vector<8x256xbf16>
    %54 = vector.shape_cast %51 : vector<8x256xbf16> to vector<1x8x256xbf16>
    tpu.vector_store %arg6[%c0_18, %c0_19, %c0_20], %54 {strides = array<i32>} : memref<1x8x256xbf16, #tpu.memory_space<vmem>>, vector<1x8x256xbf16>,
    return
  }
  func.func @transform_0(%arg0: i32) -> (i32, i32, i32) {
    %c0_i32 = arith.constant 0 : i32
    %c0_i32_0 = arith.constant 0 : i32
    %c0_i32_1 = arith.constant 0 : i32
    return %arg0, %c0_i32, %c0_i32_0 : i32, i32, i32
  }
  func.func @transform_1(%arg0: i32) -> (i32, i32) {
    %c0_i32 = arith.constant 0 : i32
    %c0_i32_0 = arith.constant 0 : i32
    %c0_i32_1 = arith.constant 0 : i32
    return %c0_i32, %c0_i32_0 : i32, i32
  }
  func.func @transform_2(%arg0: i32) -> (i32, i32) {
    %c0_i32 = arith.constant 0 : i32
    %c0_i32_0 = arith.constant 0 : i32
    %c0_i32_1 = arith.constant 0 : i32
    return %c0_i32, %c0_i32_0 : i32, i32
  }
  func.func @transform_3(%arg0: i32) -> (i32, i32) {
    %c0_i32 = arith.constant 0 : i32
    %c0_i32_0 = arith.constant 0 : i32
    %c0_i32_1 = arith.constant 0 : i32
    return %c0_i32, %c0_i32_0 : i32, i32
  }
  func.func @transform_4(%arg0: i32) -> (i32, i32) {
    %c0_i32 = arith.constant 0 : i32
    %c0_i32_0 = arith.constant 0 : i32
    %c0_i32_1 = arith.constant 0 : i32
    return %c0_i32, %c0_i32_0 : i32, i32
  }
  func.func @transform_5(%arg0: i32) -> (i32, i32, i32) {
    %c0_i32 = arith.constant 0 : i32
    %c0_i32_0 = arith.constant 0 : i32
    %c0_i32_1 = arith.constant 0 : i32
    return %arg0, %c0_i32, %c0_i32_0 : i32, i32, i32
  }
}

</mosaic_0001>

<llo_original>
// kernel: dpcnn_forward.7
$region0: #{dpcnn_forward.7}
  #allocation0 [shape = 'u32[]', space=smem, size = 0x4, offset = 0x4, fixed_abs, tag = 'smem constant byte address 0x4 - core index']
  #allocation1 [shape = 'u32[144,128]{1,0:T(1,128)}', space=vmem, size = 0x12000, scoped, tag = 'internal scratch']
  %s0 = inlined_call_operand.vmem [shape: bf16[2,4,256], index: 0, kind: input, shape index: {}]
  %s1 = inlined_call_operand.vmem [shape: bf16[256,8], index: 1, kind: input, shape index: {}]
  %s2 = inlined_call_operand.vmem [shape: f32[1,8], index: 2, kind: input, shape index: {}]
  %s3 = inlined_call_operand.hbm [shape: f32[2,1,8], index: 3, kind: output, shape index: {}]
  %s4 = sld [smem:[#allocation0]]
  $region45: #{dpcnn_forward.7} parent=0
    _
  %s6 = ssub.s32 1, %s4
  %s7 = scalar_select 0, %s6, %s4
  $region1: #{dpcnn_forward.7} parent=0
    #allocation2 [shape = 'u8[1024]{0}', space=vmem, size = 0x400, scoped, tag = 'output window, operand 0']
    #allocation3 [shape = 's32[2]{0}', space=sflag, size = 0x8, scoped, tag = 'scoped memory for dpcnn_forward.7']
    %8 = vsyncpa [#allocation3], 0
    %s9 = scalar_lea.sflag [#allocation3], 1
    %10 = vsyncpa %s9, 0
    loop: start=0, step=1, limit=4
    $region2: #{dpcnn_forward.7} parent=1 // loop_pre_header
      _
    $region3: #{dpcnn_forward.7} parent=1 // loop_header
      %s12 = sphi 0, %s16
      %p13 = scmp.ge.s32.totalorder %s12, 4
      %s22 = sphi 0, %s24
      %s25 = sphi 0, %s22
      %s26 = sphi 0, %s25
      %s42 = sphi 0, %s26
      %s46 = sphi 0, %s46
      %s48 = sphi 0, %s46
      %s49 = sphi 0, %s48
      %s63 = sphi 0, %s49
      %s67 = sphi 0, %s67
      %s69 = sphi 0, %s67
      %s70 = sphi 0, %s69
      %s84 = sphi 0, %s70
      %s90 = sphi 0, %s92
      %s93 = sphi 0, %s90
      %s94 = sphi 0, %s93
      %s110 = sphi 0, %s94
    $region4: #{dpcnn_forward.7} parent=1 // loop_header_branch
      %15 = sbr.rel (%p13) target = $region8
    $region5: #{dpcnn_forward.7} parent=1 // loop_body
      %s17 = ssub.s32 %s12, 1
      %s18 = ssub.s32 %s12, 2
      %s19 = sadd.s32 %s12, 1
      %s20 = ssub.s32 %s12, %s19
      %p21 = scmp.eq.s32.totalorder %s20, 0
      %s23 = sadd.s32 %s22, 1
      %s24 = scalar_select %p21, %s22, %s23
      %p27 = pneg %p21
      %p28 = scmp.eq.s32.totalorder %s12, 1
      %p29 = por %p27, %p28
      %p30 = scmp.ne.s32.totalorder %s22, %s25
      %p31 = scmp.eq.s32.totalorder %s12, 0
      %p32 = por %p30, %p31
      %p33 = scmp.ne.s32.totalorder %s22, %s25
      %p34 = scmp.eq.s32.totalorder %s17, 1
      %p35 = por %p33, %p34
      %p36 = scmp.ne.s32.totalorder %s25, %s26
      %p37 = scmp.eq.s32.totalorder %s17, 0
      %p38 = por %p36, %p37
      %p39 = scmp.ne.s32.totalorder %s25, %s26
      %p40 = scmp.eq.s32.totalorder %s18, 1
      %p41 = por %p39, %p40
      %p43 = scmp.ne.s32.totalorder %s26, %s42
      %p44 = scmp.eq.s32.totalorder %s18, 0
      %p45 = por %p43, %p44
      %s47 = sadd.s32 %s46, 1
      %p50 = scmp.eq.s32.totalorder %s12, 1
      %p51 = scmp.ne.s32.totalorder %s46, %s48
      %p52 = scmp.eq.s32.totalorder %s12, 0
      %p53 = por %p51, %p52
      %p54 = scmp.ne.s32.totalorder %s46, %s48
      %p55 = scmp.eq.s32.totalorder %s17, 1
      %p56 = por %p54, %p55
      %p57 = scmp.ne.s32.totalorder %s48, %s49
      %p58 = scmp.eq.s32.totalorder %s17, 0
      %p59 = por %p57, %p58
      %p60 = scmp.ne.s32.totalorder %s48, %s49
      %p61 = scmp.eq.s32.totalorder %s18, 1
      %p62 = por %p60, %p61
      %p64 = scmp.ne.s32.totalorder %s49, %s63
      %p65 = scmp.eq.s32.totalorder %s18, 0
      %p66 = por %p64, %p65
      %s68 = sadd.s32 %s67, 1
      %p71 = scmp.eq.s32.totalorder %s12, 1
      %p72 = scmp.ne.s32.totalorder %s67, %s69
      %p73 = scmp.eq.s32.totalorder %s12, 0
      %p74 = por %p72, %p73
      %p75 = scmp.ne.s32.totalorder %s67, %s69
      %p76 = scmp.eq.s32.totalorder %s17, 1
      %p77 = por %p75, %p76
      %p78 = scmp.ne.s32.totalorder %s69, %s70
      %p79 = scmp.eq.s32.totalorder %s17, 0
      %p80 = por %p78, %p79
      %p81 = scmp.ne.s32.totalorder %s69, %s70
      %p82 = scmp.eq.s32.totalorder %s18, 1
      %p83 = por %p81, %p82
      %p85 = scmp.ne.s32.totalorder %s70, %s84
      %p86 = scmp.eq.s32.totalorder %s18, 0
      %p87 = por %p85, %p86
      %s88 = ssub.s32 %s12, %s19
      %p89 = scmp.eq.s32.totalorder %s88, 0
      %s91 = sadd.s32 %s90, 1
      %s92 = scalar_select %p89, %s90, %s91
      %p95 = pneg %p89
      %p96 = scmp.eq.s32.totalorder %s12, 1
      %p97 = por %p95, %p96
      %p98 = scmp.ne.s32.totalorder %s90, %s93
      %p99 = scmp.eq.s32.totalorder %s12, 0
      %p100 = por %p98, %p99
      %p101 = scmp.ne.s32.totalorder %s90, %s93
      %p102 = scmp.eq.s32.totalorder %s17, 1
      %p103 = por %p101, %p102
      %p104 = scmp.ne.s32.totalorder %s93, %s94
      %p105 = scmp.eq.s32.totalorder %s17, 0
      %p106 = por %p104, %p105
      %p107 = scmp.ne.s32.totalorder %s93, %s94
      %p108 = scmp.eq.s32.totalorder %s18, 1
      %p109 = por %p107, %p108
      %p111 = scmp.ne.s32.totalorder %s94, %s110
      %p112 = scmp.eq.s32.totalorder %s18, 0
      %p113 = por %p111, %p112
      %p114 = scmp.le.s32.totalorder 1, %s12
      %p115 = scmp.lt.s32.totalorder %s12, 3
      %p116 = pnand %p114, %p115
      %p117 = pneg %p116
      // Predicated region
      $region9: #{dpcnn_forward.7} parent=5 // pred_check
        _
      $region10: #{dpcnn_forward.7} parent=5 // pred_check_branch
        %119 = sbr.rel (%p116) target = $region12
      $region11: #{dpcnn_forward.7} parent=5 // pred_region
        %s120 = ssub.s32 %s12, 1
        // Predicated region
        $region13: #{dpcnn_forward.7} parent=11 // pred_check
          %p121 = pneg %p59
        $region14: #{dpcnn_forward.7} parent=11 // pred_check_branch
          %123 = sbr.rel (%p121) target = $region16
        $region15: #{dpcnn_forward.7} parent=11 // pred_region
          _
        $region16: #{dpcnn_forward.7} parent=11 // pred_fallthru
          _
        // Predicated region
        $region17: #{dpcnn_forward.7} parent=11 // pred_check
          %p124 = pneg %p80
        $region18: #{dpcnn_forward.7} parent=11 // pred_check_branch
          %126 = sbr.rel (%p124) target = $region20
        $region19: #{dpcnn_forward.7} parent=11 // pred_region
          _
        $region20: #{dpcnn_forward.7} parent=11 // pred_fallthru
          _
      $region12: #{dpcnn_forward.7} parent=5 // pred_fallthru
        _
      %p127 = scmp.lt.s32.totalorder %s12, 2
      // Predicated region
      $region21: #{dpcnn_forward.7} parent=5 // pred_check
        %p128 = pneg %p127
      $region22: #{dpcnn_forward.7} parent=5 // pred_check_branch
        %130 = sbr.rel (%p128) target = $region24
      $region23: #{dpcnn_forward.7} parent=5 // pred_region
        // Predicated region
        $region25: #{dpcnn_forward.7} parent=23 // pred_check
          %p131 = pneg %p32
        $region26: #{dpcnn_forward.7} parent=23 // pred_check_branch
          %133 = sbr.rel (%p131) target = $region28
        $region27: #{dpcnn_forward.7} parent=23 // pred_region
          %p134 = scmp.lt.s32.totalorder %s12, 1
          %s135 = scalar_select %p134, %s12, 1
          %s136 = smul.addr %s135, 2
          %s137 = smul.addr %s136, 2
          %s138 = scalar_lea.vmem %s0, %s137
        $region28: #{dpcnn_forward.7} parent=23 // pred_fallthru
          _
      $region24: #{dpcnn_forward.7} parent=5 // pred_fallthru
        _
      %p139 = scmp.le.s32.totalorder 1, %s12
      %p140 = scmp.lt.s32.totalorder %s12, 3
      %p141 = pnand %p139, %p140
      %p142 = pneg %p141
      // Predicated region
      $region29: #{dpcnn_forward.7} parent=5 // pred_check
        _
      $region30: #{dpcnn_forward.7} parent=5 // pred_check_branch
        %144 = sbr.rel (%p141) target = $region32
      $region31: #{dpcnn_forward.7} parent=5 // pred_region
        %s145 = ssub.s32 %s12, 1
        %p146 = scmp.lt.s32.totalorder %s17, 1
        %s147 = scalar_select %p146, %s17, 1
        %s148 = smul.addr %s147, 2
        %s149 = smul.addr %s148, 2
        %s150 = scalar_lea.vmem %s0, %s149
        %p151 = pneg %p38
        %p152 = pneg %p35
        %p153 = pneg %p59
        %p154 = pneg %p56
        %p155 = pneg %p80
        %p156 = pneg %p77
        %p157 = pneg %p106
        %p158 = pneg %p103
        %s159 = sand.u32 %s93, 1
        %s160 = scalar_lea.sflag [#allocation3], %s159
        %s161 = sand.u32 %s93, 1
        %s162 = scalar_lea.vmem [#allocation2], %s161
        %p163 = scmp.lt.s32.totalorder %s17, 1
        %s164 = scalar_select %p163, %s17, 1
        %s165 = smul.addr %s164, 2
        %s166 = smul.addr %s165, 2
        %s167 = scalar_lea.vmem %s0, %s166
        %v169 = vld [vmem:[%s167] sm:$0xf]
        %v170 = vunpack.c.l.bf16 %v169
        %v172 = vcombine.high %v170, %v170
        %vm174 = vcmask 1043456
        %v175 = vsel %vm174, %v170, -inf
        %v176 = vrot.slane %v175, 4
        %v177 = vmax.f32 %v175, %v176
        %v178 = vrot.slane %v177, 2
        %v179 = vmax.f32 %v177, %v178
        %v180 = vrot.slane %v179, 1
        %v181 = vmax.f32 %v179, %v180
        %v182 = vsel %vm174, %v172, -inf
        %v183 = vrot.slane %v182, 4
        %v184 = vmax.f32 %v182, %v183
        %v185 = vrot.slane %v184, 2
        %v186 = vmax.f32 %v184, %v185
        %v187 = vrot.slane %v186, 1
        %v188 = vmax.f32 %v186, %v187
        %v189 = vpack.c.bf16 %v181, %v181
        %v190 = vpack.c.bf16 %v188, %v188
        %v191 = vld [vmem:[%s1] sm:$0xf]
        %v192 = vld [vmem:[%s1 + $0x4] sm:$0xf]
        %v193 = vld [vmem:[%s1 + $0x8] sm:$0xf]
        %v194 = vld [vmem:[%s1 + $0xc] sm:$0xf]
        %v195 = vld [vmem:[%s1 + $0x10] sm:$0xf]
        %v196 = vld [vmem:[%s1 + $0x14] sm:$0xf]
        %v197 = vld [vmem:[%s1 + $0x18] sm:$0xf]
        %v198 = vld [vmem:[%s1 + $0x1c] sm:$0xf]
        %v199 = vld [vmem:[%s1 + $0x20] sm:$0xf]
        %v200 = vld [vmem:[%s1 + $0x24] sm:$0xf]
        %v201 = vld [vmem:[%s1 + $0x28] sm:$0xf]
        %v202 = vld [vmem:[%s1 + $0x2c] sm:$0xf]
        %v203 = vld [vmem:[%s1 + $0x30] sm:$0xf]
        %v204 = vld [vmem:[%s1 + $0x34] sm:$0xf]
        %v205 = vld [vmem:[%s1 + $0x38] sm:$0xf]
        %v206 = vld [vmem:[%s1 + $0x3c] sm:$0xf]
        %v207 = vld [vmem:[%s1 + $0x40] sm:$0xf]
        %v208 = vld [vmem:[%s1 + $0x44] sm:$0xf]
        %v209 = vld [vmem:[%s1 + $0x48] sm:$0xf]
        %v210 = vld [vmem:[%s1 + $0x4c] sm:$0xf]
        %v211 = vld [vmem:[%s1 + $0x50] sm:$0xf]
        %v212 = vld [vmem:[%s1 + $0x54] sm:$0xf]
        %v213 = vld [vmem:[%s1 + $0x58] sm:$0xf]
        %v214 = vld [vmem:[%s1 + $0x5c] sm:$0xf]
        %v215 = vld [vmem:[%s1 + $0x60] sm:$0xf]
        %v216 = vld [vmem:[%s1 + $0x64] sm:$0xf]
        %v217 = vld [vmem:[%s1 + $0x68] sm:$0xf]
        %v218 = vld [vmem:[%s1 + $0x6c] sm:$0xf]
        %v219 = vld [vmem:[%s1 + $0x70] sm:$0xf]
        %v220 = vld [vmem:[%s1 + $0x74] sm:$0xf]
        %v221 = vld [vmem:[%s1 + $0x78] sm:$0xf]
        %v222 = vld [vmem:[%s1 + $0x7c] sm:$0xf]
        %v223 = vld [vmem:[%s2] sm:$0x1]
        %v256 = vunpack.c.l.b16 %v191
        %v257 = vunpack.c.l.b16 %v192
        %v258 = vunpack.c.l.b16 %v193
        %v259 = vunpack.c.l.b16 %v194
        %v260 = vunpack.c.l.b16 %v195
        %v261 = vunpack.c.l.b16 %v196
        %v262 = vunpack.c.l.b16 %v197
        %v263 = vunpack.c.l.b16 %v198
        %v264 = vunpack.c.l.b16 %v199
        %v265 = vunpack.c.l.b16 %v200
        %v266 = vunpack.c.l.b16 %v201
        %v267 = vunpack.c.l.b16 %v202
        %v268 = vunpack.c.l.b16 %v203
        %v269 = vunpack.c.l.b16 %v204
        %v270 = vunpack.c.l.b16 %v205
        %v271 = vunpack.c.l.b16 %v206
        %v272 = vunpack.c.l.b16 %v207
        %v273 = vunpack.c.l.b16 %v208
        %v274 = vunpack.c.l.b16 %v209
        %v275 = vunpack.c.l.b16 %v210
        %v276 = vunpack.c.l.b16 %v211
        %v277 = vunpack.c.l.b16 %v212
        %v278 = vunpack.c.l.b16 %v213
        %v279 = vunpack.c.l.b16 %v214
        %v280 = vunpack.c.l.b16 %v215
        %v281 = vunpack.c.l.b16 %v216
        %v282 = vunpack.c.l.b16 %v217
        %v283 = vunpack.c.l.b16 %v218
        %v284 = vunpack.c.l.b16 %v219
        %v285 = vunpack.c.l.b16 %v220
        %v286 = vunpack.c.l.b16 %v221
        %v287 = vunpack.c.l.b16 %v222
        %v288 = vpack.c.b16 %v257, %v256
        %v289 = vpack.c.b16 %v259, %v258
        %v290 = vpack.c.b16 %v261, %v260
        %v291 = vpack.c.b16 %v263, %v262
        %v292 = vpack.c.b16 %v265, %v264
        %v293 = vpack.c.b16 %v267, %v266
        %v294 = vpack.c.b16 %v269, %v268
        %v295 = vpack.c.b16 %v271, %v270
        %v296 = vpack.c.b16 %v273, %v272
        %v297 = vpack.c.b16 %v275, %v274
        %v298 = vpack.c.b16 %v277, %v276
        %v299 = vpack.c.b16 %v279, %v278
        %v300 = vpack.c.b16 %v281, %v280
        %v301 = vpack.c.b16 %v283, %v282
        %v302 = vpack.c.b16 %v285, %v284
        %v303 = vpack.c.b16 %v287, %v286
        %320 = vmatprep.subr.bf16.mxu0 0
        %321 = vmatpush1.bf16.msra.mxu0 %v295
        %322 = vmatprep.subr.bf16.mxu0 0
        %323 = vmatpush1.bf16.msra.mxu0 %v294
        %324 = vmatprep.subr.bf16.mxu0 0
        %325 = vmatpush1.bf16.msra.mxu0 %v293
        %326 = vmatprep.subr.bf16.mxu0 0
        %327 = vmatpush1.bf16.msra.mxu0 %v292
        %328 = vmatprep.subr.bf16.mxu0 0
        %329 = vmatpush1.bf16.msra.mxu0 %v291
        %330 = vmatprep.subr.bf16.mxu0 0
        %331 = vmatpush1.bf16.msra.mxu0 %v290
        %332 = vmatprep.subr.bf16.mxu0 0
        %333 = vmatpush1.bf16.msra.mxu0 %v289
        %334 = vmatprep.subr.bf16.mxu0 0
        %335 = vmatpush1.bf16.msra.mxu0 %v288
        %336 = vmatprep.subr.bf16.mxu0 0
        %337 = vmatpush2.bf16.msra.mxu0 %v303
        %338 = vmatprep.subr.bf16.mxu0 0
        %339 = vmatpush2.bf16.msra.mxu0 %v302
        %340 = vmatprep.subr.bf16.mxu0 0
        %341 = vmatpush2.bf16.msra.mxu0 %v301
        %342 = vmatprep.subr.bf16.mxu0 0
        %343 = vmatpush2.bf16.msra.mxu0 %v300
        %344 = vmatprep.subr.bf16.mxu0 0
        %345 = vmatpush2.bf16.msra.mxu0 %v299
        %346 = vmatprep.subr.bf16.mxu0 0
        %347 = vmatpush2.bf16.msra.mxu0 %v298
        %348 = vmatprep.subr.bf16.mxu0 0
        %349 = vmatpush2.bf16.msra.mxu0 %v297
        %350 = vmatprep.subr.bf16.mxu0 0
        %351 = vmatpush2.bf16.msra.mxu0 %v296
        %352 = vmatprep.mubr.bf16.mxu0 %v190
        %353 = vmatmul.mubr.bf16.gmra.mxu0 %v189
        %v354 = vpop.f32.mrf.mxu0
        %v355 = vadd.f32 %v223, %v354
        %v356 = vpop.f32.mrf.mxu0
        %v357 = vpop.f32.mrf.mxu0
        %v358 = vpop.f32.mrf.mxu0
        %359 = vdwg.mxu0
        %vm360 = vcmask 57344
        %361 = vst.msk [vmem:[%s162] sm:$0x1] %vm360, %v355
        %s362 = sand.u32 %s93, 1
        %s363 = scalar_lea.sflag [#allocation3], %s362
        %s364 = sand.u32 %s93, 1
        %s365 = scalar_lea.vmem [#allocation2], %s364
        // Predicated region
        $region33: #{dpcnn_forward.7} parent=31 // pred_check
          %p366 = pneg %p103
        $region34: #{dpcnn_forward.7} parent=31 // pred_check_branch
          %368 = sbr.rel (%p366) target = $region36
        $region35: #{dpcnn_forward.7} parent=31 // pred_region
          %s370 = ssub.s32 16, 16
          %371 = vsyncadd %s363, %s370
          %s372 = smul.addr %s17, 16
          %s373 = scalar_lea.hbm %s3, %s372
          %s375 = sshll.u32 %s365, 4
          %s376 = int_to_ptr.vmem [resolvable:$true] %s375
          %378 = dma.vmem_to_hbm [thread:$0]  %s376, 16, %s373, %s363
        $region36: #{dpcnn_forward.7} parent=31 // pred_fallthru
          _
      $region32: #{dpcnn_forward.7} parent=5 // pred_fallthru
        _
      %p379 = scmp.le.s32.totalorder 2, %s12
      // Predicated region
      $region37: #{dpcnn_forward.7} parent=5 // pred_check
        %p380 = pneg %p379
      $region38: #{dpcnn_forward.7} parent=5 // pred_check_branch
        %382 = sbr.rel (%p380) target = $region40
      $region39: #{dpcnn_forward.7} parent=5 // pred_region
        %s383 = ssub.s32 %s12, 2
        // Predicated region
        $region41: #{dpcnn_forward.7} parent=39 // pred_check
          %p384 = pneg %p109
        $region42: #{dpcnn_forward.7} parent=39 // pred_check_branch
          %386 = sbr.rel (%p384) target = $region44
        $region43: #{dpcnn_forward.7} parent=39 // pred_region
          %s387 = sand.u32 %s94, 1
          %s388 = scalar_lea.sflag [#allocation3], %s387
          %s389 = sand.u32 %s94, 1
          %s390 = scalar_lea.vmem [#allocation2], %s389
          %391 = dma.done %s388, 16
        $region44: #{dpcnn_forward.7} parent=39 // pred_fallthru
          _
      $region40: #{dpcnn_forward.7} parent=5 // pred_fallthru
        _
    $region6: #{dpcnn_forward.7} parent=1 // loop_footer
      %s16 = sadd.s32 1, %s12
    $region7: #{dpcnn_forward.7} parent=1 // loop_footer_branch
      %11 = sbr.rel target = $region3
    $region8: #{dpcnn_forward.7} parent=1 // loop_exit
      _
    %392 = vsyncpa [#allocation3], 1
    %s393 = scalar_lea.sflag [#allocation3], 1
    %394 = vsyncpa %s393, 1

// kernel: dpcnn_forward.5
$region0: #{dpcnn_forward.5}
  #allocation0 [shape = 'u32[]', space=smem, size = 0x4, offset = 0x4, fixed_abs, tag = 'smem constant byte address 0x4 - core index']
  #allocation1 [shape = 'u32[144,128]{1,0:T(1,128)}', space=vmem, size = 0x12000, scoped, tag = 'internal scratch']
  %s0 = inlined_call_operand.vmem [shape: bf16[2,16,256], index: 0, kind: input, shape index: {}]
  %s1 = inlined_call_operand.vmem [shape: bf16[768,256], index: 1, kind: input, shape index: {}]
  %s2 = inlined_call_operand.vmem [shape: f32[1,256], index: 2, kind: input, shape index: {}]
  %s3 = inlined_call_operand.vmem [shape: bf16[768,256], index: 3, kind: input, shape index: {}]
  %s4 = inlined_call_operand.vmem [shape: f32[1,256], index: 4, kind: input, shape index: {}]
  %s5 = inlined_call_operand.vmem [shape: bf16[2,8,256], index: 5, kind: output, shape index: {}]
  %s6 = sld [smem:[#allocation0]]
  $region53: #{dpcnn_forward.5} parent=0
    _
  %s8 = ssub.s32 1, %s6
  %s9 = scalar_select 0, %s8, %s6
  loop: start=0, step=1, limit=4
  $region2: #{dpcnn_forward.5} parent=0 // loop_pre_header
    _
  $region3: #{dpcnn_forward.5} parent=0 // loop_header
    %s11 = sphi 0, %s15
    %p12 = scmp.ge.s32.totalorder %s11, 4
    %s21 = sphi 0, %s23
    %s24 = sphi 0, %s21
    %s25 = sphi 0, %s24
    %s41 = sphi 0, %s25
    %s45 = sphi 0, %s45
    %s47 = sphi 0, %s45
    %s48 = sphi 0, %s47
    %s62 = sphi 0, %s48
    %s66 = sphi 0, %s66
    %s68 = sphi 0, %s66
    %s69 = sphi 0, %s68
    %s83 = sphi 0, %s69
    %s87 = sphi 0, %s87
    %s89 = sphi 0, %s87
    %s90 = sphi 0, %s89
    %s104 = sphi 0, %s90
    %s108 = sphi 0, %s108
    %s110 = sphi 0, %s108
    %s111 = sphi 0, %s110
    %s125 = sphi 0, %s111
    %s131 = sphi 0, %s133
    %s134 = sphi 0, %s131
    %s135 = sphi 0, %s134
    %s151 = sphi 0, %s135
  $region4: #{dpcnn_forward.5} parent=0 // loop_header_branch
    %14 = sbr.rel (%p12) target = $region8
  $region5: #{dpcnn_forward.5} parent=0 // loop_body
    %s16 = ssub.s32 %s11, 1
    %s17 = ssub.s32 %s11, 2
    %s18 = sadd.s32 %s11, 1
    %s19 = ssub.s32 %s11, %s18
    %p20 = scmp.eq.s32.totalorder %s19, 0
    %s22 = sadd.s32 %s21, 1
    %s23 = scalar_select %p20, %s21, %s22
    %p26 = pneg %p20
    %p27 = scmp.eq.s32.totalorder %s11, 1
    %p28 = por %p26, %p27
    %p29 = scmp.ne.s32.totalorder %s21, %s24
    %p30 = scmp.eq.s32.totalorder %s11, 0
    %p31 = por %p29, %p30
    %p32 = scmp.ne.s32.totalorder %s21, %s24
    %p33 = scmp.eq.s32.totalorder %s16, 1
    %p34 = por %p32, %p33
    %p35 = scmp.ne.s32.totalorder %s24, %s25
    %p36 = scmp.eq.s32.totalorder %s16, 0
    %p37 = por %p35, %p36
    %p38 = scmp.ne.s32.totalorder %s24, %s25
    %p39 = scmp.eq.s32.totalorder %s17, 1
    %p40 = por %p38, %p39
    %p42 = scmp.ne.s32.totalorder %s25, %s41
    %p43 = scmp.eq.s32.totalorder %s17, 0
    %p44 = por %p42, %p43
    %s46 = sadd.s32 %s45, 1
    %p49 = scmp.eq.s32.totalorder %s11, 1
    %p50 = scmp.ne.s32.totalorder %s45, %s47
    %p51 = scmp.eq.s32.totalorder %s11, 0
    %p52 = por %p50, %p51
    %p53 = scmp.ne.s32.totalorder %s45, %s47
    %p54 = scmp.eq.s32.totalorder %s16, 1
    %p55 = por %p53, %p54
    %p56 = scmp.ne.s32.totalorder %s47, %s48
    %p57 = scmp.eq.s32.totalorder %s16, 0
    %p58 = por %p56, %p57
    %p59 = scmp.ne.s32.totalorder %s47, %s48
    %p60 = scmp.eq.s32.totalorder %s17, 1
    %p61 = por %p59, %p60
    %p63 = scmp.ne.s32.totalorder %s48, %s62
    %p64 = scmp.eq.s32.totalorder %s17, 0
    %p65 = por %p63, %p64
    %s67 = sadd.s32 %s66, 1
    %p70 = scmp.eq.s32.totalorder %s11, 1
    %p71 = scmp.ne.s32.totalorder %s66, %s68
    %p72 = scmp.eq.s32.totalorder %s11, 0
    %p73 = por %p71, %p72
    %p74 = scmp.ne.s32.totalorder %s66, %s68
    %p75 = scmp.eq.s32.totalorder %s16, 1
    %p76 = por %p74, %p75
    %p77 = scmp.ne.s32.totalorder %s68, %s69
    %p78 = scmp.eq.s32.totalorder %s16, 0
    %p79 = por %p77, %p78
    %p80 = scmp.ne.s32.totalorder %s68, %s69
    %p81 = scmp.eq.s32.totalorder %s17, 1
    %p82 = por %p80, %p81
    %p84 = scmp.ne.s32.totalorder %s69, %s83
    %p85 = scmp.eq.s32.totalorder %s17, 0
    %p86 = por %p84, %p85
    %s88 = sadd.s32 %s87, 1
    %p91 = scmp.eq.s32.totalorder %s11, 1
    %p92 = scmp.ne.s32.totalorder %s87, %s89
    %p93 = scmp.eq.s32.totalorder %s11, 0
    %p94 = por %p92, %p93
    %p95 = scmp.ne.s32.totalorder %s87, %s89
    %p96 = scmp.eq.s32.totalorder %s16, 1
    %p97 = por %p95, %p96
    %p98 = scmp.ne.s32.totalorder %s89, %s90
    %p99 = scmp.eq.s32.totalorder %s16, 0
    %p100 = por %p98, %p99
    %p101 = scmp.ne.s32.totalorder %s89, %s90
    %p102 = scmp.eq.s32.totalorder %s17, 1
    %p103 = por %p101, %p102
    %p105 = scmp.ne.s32.totalorder %s90, %s104
    %p106 = scmp.eq.s32.totalorder %s17, 0
    %p107 = por %p105, %p106
    %s109 = sadd.s32 %s108, 1
    %p112 = scmp.eq.s32.totalorder %s11, 1
    %p113 = scmp.ne.s32.totalorder %s108, %s110
    %p114 = scmp.eq.s32.totalorder %s11, 0
    %p115 = por %p113, %p114
    %p116 = scmp.ne.s32.totalorder %s108, %s110
    %p117 = scmp.eq.s32.totalorder %s16, 1
    %p118 = por %p116, %p117
    %p119 = scmp.ne.s32.totalorder %s110, %s111
    %p120 = scmp.eq.s32.totalorder %s16, 0
    %p121 = por %p119, %p120
    %p122 = scmp.ne.s32.totalorder %s110, %s111
    %p123 = scmp.eq.s32.totalorder %s17, 1
    %p124 = por %p122, %p123
    %p126 = scmp.ne.s32.totalorder %s111, %s125
    %p127 = scmp.eq.s32.totalorder %s17, 0
    %p128 = por %p126, %p127
    %s129 = ssub.s32 %s11, %s18
    %p130 = scmp.eq.s32.totalorder %s129, 0
    %s132 = sadd.s32 %s131, 1
    %s133 = scalar_select %p130, %s131, %s132
    %p136 = pneg %p130
    %p137 = scmp.eq.s32.totalorder %s11, 1
    %p138 = por %p136, %p137
    %p139 = scmp.ne.s32.totalorder %s131, %s134
    %p140 = scmp.eq.s32.totalorder %s11, 0
    %p141 = por %p139, %p140
    %p142 = scmp.ne.s32.totalorder %s131, %s134
    %p143 = scmp.eq.s32.totalorder %s16, 1
    %p144 = por %p142, %p143
    %p145 = scmp.ne.s32.totalorder %s134, %s135
    %p146 = scmp.eq.s32.totalorder %s16, 0
    %p147 = por %p145, %p146
    %p148 = scmp.ne.s32.totalorder %s134, %s135
    %p149 = scmp.eq.s32.totalorder %s17, 1
    %p150 = por %p148, %p149
    %p152 = scmp.ne.s32.totalorder %s135, %s151
    %p153 = scmp.eq.s32.totalorder %s17, 0
    %p154 = por %p152, %p153
    %p155 = scmp.le.s32.totalorder 1, %s11
    %p156 = scmp.lt.s32.totalorder %s11, 3
    %p157 = pnand %p155, %p156
    %p158 = pneg %p157
    // Predicated region
    $region9: #{dpcnn_forward.5} parent=5 // pred_check
      _
    $region10: #{dpcnn_forward.5} parent=5 // pred_check_branch
      %160 = sbr.rel (%p157) target = $region12
    $region11: #{dpcnn_forward.5} parent=5 // pred_region
      %s161 = ssub.s32 %s11, 1
      // Predicated region
      $region13: #{dpcnn_forward.5} parent=11 // pred_check
        %p162 = pneg %p58
      $region14: #{dpcnn_forward.5} parent=11 // pred_check_branch
        %164 = sbr.rel (%p162) target = $region16
      $region15: #{dpcnn_forward.5} parent=11 // pred_region
        _
      $region16: #{dpcnn_forward.5} parent=11 // pred_fallthru
        _
      // Predicated region
      $region17: #{dpcnn_forward.5} parent=11 // pred_check
        %p165 = pneg %p79
      $region18: #{dpcnn_forward.5} parent=11 // pred_check_branch
        %167 = sbr.rel (%p165) target = $region20
      $region19: #{dpcnn_forward.5} parent=11 // pred_region
        _
      $region20: #{dpcnn_forward.5} parent=11 // pred_fallthru
        _
      // Predicated region
      $region21: #{dpcnn_forward.5} parent=11 // pred_check
        %p168 = pneg %p100
      $region22: #{dpcnn_forward.5} parent=11 // pred_check_branch
        %170 = sbr.rel (%p168) target = $region24
      $region23: #{dpcnn_forward.5} parent=11 // pred_region
        _
      $region24: #{dpcnn_forward.5} parent=11 // pred_fallthru
        _
      // Predicated region
      $region25: #{dpcnn_forward.5} parent=11 // pred_check
        %p171 = pneg %p121
      $region26: #{dpcnn_forward.5} parent=11 // pred_check_branch
        %173 = sbr.rel (%p171) target = $region28
      $region27: #{dpcnn_forward.5} parent=11 // pred_region
        _
      $region28: #{dpcnn_forward.5} parent=11 // pred_fallthru
        _
    $region12: #{dpcnn_forward.5} parent=5 // pred_fallthru
      _
    %p174 = scmp.lt.s32.totalorder %s11, 2
    // Predicated region
    $region29: #{dpcnn_forward.5} parent=5 // pred_check
      %p175 = pneg %p174
    $region30: #{dpcnn_forward.5} parent=5 // pred_check_branch
      %177 = sbr.rel (%p175) target = $region32
    $region31: #{dpcnn_forward.5} parent=5 // pred_region
      // Predicated region
      $region33: #{dpcnn_forward.5} parent=31 // pred_check
        %p178 = pneg %p31
      $region34: #{dpcnn_forward.5} parent=31 // pred_check_branch
        %180 = sbr.rel (%p178) target = $region36
      $region35: #{dpcnn_forward.5} parent=31 // pred_region
        %p181 = scmp.lt.s32.totalorder %s11, 1
        %s182 = scalar_select %p181, %s11, 1
        %s183 = smul.addr %s182, 4
        %s184 = smul.addr %s183, 4
        %s185 = scalar_lea.vmem %s0, %s184
      $region36: #{dpcnn_forward.5} parent=31 // pred_fallthru
        _
    $region32: #{dpcnn_forward.5} parent=5 // pred_fallthru
      _
    %p186 = scmp.le.s32.totalorder 1, %s11
    %p187 = scmp.lt.s32.totalorder %s11, 3
    %p188 = pnand %p186, %p187
    %p189 = pneg %p188
    // Predicated region
    $region37: #{dpcnn_forward.5} parent=5 // pred_check
      _
    $region38: #{dpcnn_forward.5} parent=5 // pred_check_branch
      %191 = sbr.rel (%p188) target = $region40
    $region39: #{dpcnn_forward.5} parent=5 // pred_region
      %s192 = ssub.s32 %s11, 1
      %p193 = scmp.lt.s32.totalorder %s16, 1
      %s194 = scalar_select %p193, %s16, 1
      %s195 = smul.addr %s194, 4
      %s196 = smul.addr %s195, 4
      %s197 = scalar_lea.vmem %s0, %s196
      %p198 = pneg %p37
      %p199 = pneg %p34
      %p200 = pneg %p58
      %p201 = pneg %p55
      %p202 = pneg %p79
      %p203 = pneg %p76
      %p204 = pneg %p100
      %p205 = pneg %p97
      %p206 = pneg %p121
      %p207 = pneg %p118
      %p208 = pneg %p147
      %p209 = pneg %p144
      %p210 = scmp.lt.s32.totalorder %s16, 1
      %s211 = scalar_select %p210, %s16, 1
      %s212 = smul.addr %s211, 2
      %s213 = smul.addr %s212, 4
      %s214 = scalar_lea.vmem %s5, %s213
      %p215 = scmp.lt.s32.totalorder %s16, 1
      %s216 = scalar_select %p215, %s16, 1
      %s217 = smul.addr %s216, 4
      %s218 = smul.addr %s217, 4
      %s219 = scalar_lea.vmem %s0, %s218
      %p220 = scmp.lt.s32.totalorder %s16, 1
      %s221 = scalar_select %p220, %s16, 1
      %s222 = smul.addr %s221, 2
      %s223 = smul.addr %s222, 4
      %s224 = scalar_lea.vmem %s5, %s223
      %v226 = vld [vmem:[%s219] sm:$0xff]
      %v227 = vld [vmem:[%s219 + $0x8] sm:$0xff]
      %v228 = vunpack.c.l.bf16 %v226
      %v229 = vunpack.c.h.bf16 %v226
      %v230 = vunpack.c.l.bf16 %v227
      %v231 = vunpack.c.h.bf16 %v227
      %vm236 = vcmask 1040384
      %v237 = vrot.slane %v228, 7
      %v238 = vrot.slane %v229, 7
      %v239 = vrot.slane %v230, 7
      %v240 = vsel %vm236, %v237, %v239
      %v241 = vrot.slane %v231, 7
      %v242 = vsel %vm236, %v238, %v241
      %v247 = vsel %vm236, %v228, %v237
      %v248 = vsel %vm236, %v229, %v238
      %vm249 = vcmask 1046528
      %v250 = vrot.slane %v228, 1
      %v251 = vrot.slane %v230, 1
      %v252 = vsel %vm249, %v250, %v251
      %v253 = vrot.slane %v229, 1
      %v254 = vrot.slane %v231, 1
      %v255 = vsel %vm249, %v253, %v254
      %v260 = vsel %vm249, %v251, %v230
      %v261 = vsel %vm249, %v254, %v231
      %v262 = vmax.f32 %v247, %v228
      %v263 = vmax.f32 %v248, %v229
      %v264 = vmax.f32 %v240, %v230
      %v265 = vmax.f32 %v242, %v231
      %v266 = vmax.f32 %v262, %v252
      %v267 = vmax.f32 %v263, %v255
      %v268 = vmax.f32 %v264, %v260
      %v269 = vmax.f32 %v265, %v261
      %v270 = vlaneseq
      %v271 = vshrl.u32 %v270, 7
      %v272 = vlaneseq
      %v273 = vand.u32 %v272, 127
      %v274 = vmul.u32 %v271, 2
      %vm275 = vcmp.eq.s32.totalorder %v273, %v274
      %v276 = vsel %vm275, 1.0, 0.0
      %v277 = vpack.c.bf16 %v276, %v276
      %v278 = vpack.c.bf16 %v268, %v266
      %v279 = vpack.c.bf16 %v269, %v267
      %vm280 = vcmask 130048
      %v282 = vsel %vm280, %v277, 0
      %284 = vmatprep.subr.bf16.mxu0 0
      %285 = vmatpush1.bf16.msra.mxu0 0
      %286 = vmatprep.subr.bf16.mxu0 0
      %287 = vmatpush1.bf16.msra.mxu0 0
      %288 = vmatprep.subr.bf16.mxu0 0
      %289 = vmatpush1.bf16.msra.mxu0 0
      %290 = vmatprep.subr.bf16.mxu0 0
      %291 = vmatpush1.bf16.msra.mxu0 0
      %292 = vmatprep.subr.bf16.mxu0 0
      %293 = vmatpush1.bf16.msra.mxu0 0
      %294 = vmatprep.subr.bf16.mxu0 0
      %295 = vmatpush1.bf16.msra.mxu0 0
      %296 = vmatprep.subr.bf16.mxu0 0
      %297 = vmatpush1.bf16.msra.mxu0 0
      %298 = vmatprep.subr.bf16.mxu0 %v279
      %299 = vmatpush1.bf16.msra.mxu0 %v278
      %300 = vmatprep.subr.bf16.mxu0 0
      %301 = vmatpush2.bf16.msra.mxu0 0
      %302 = vmatprep.subr.bf16.mxu0 0
      %303 = vmatpush2.bf16.msra.mxu0 0
      %304 = vmatprep.subr.bf16.mxu0 0
      %305 = vmatpush2.bf16.msra.mxu0 0
      %306 = vmatprep.subr.bf16.mxu0 0
      %307 = vmatpush2.bf16.msra.mxu0 0
      %308 = vmatprep.subr.bf16.mxu0 0
      %309 = vmatpush2.bf16.msra.mxu0 0
      %310 = vmatprep.subr.bf16.mxu0 0
      %311 = vmatpush2.bf16.msra.mxu0 0
      %312 = vmatprep.subr.bf16.mxu0 0
      %313 = vmatpush2.bf16.msra.mxu0 0
      %314 = vmatprep.subr.bf16.mxu0 0
      %315 = vmatpush2.bf16.msra.mxu0 0
      %316 = vmatprep.mubr.bf16.mxu0 0
      %317 = vmatmul.mubr.bf16.gmra.mxu0 %v282
      %v318 = vpop.f32.mrf.mxu0
      %v319 = vadd.f32 0.0, %v318
      %v320 = vpop.f32.mrf.mxu0
      %v321 = vadd.f32 0.0, %v320
      %v322 = vpop.f32.mrf.mxu0
      %v323 = vpop.f32.mrf.mxu0
      %324 = vdwg.mxu0
      %v325 = vmax.f32 %v319, 0.0
      %v326 = vmax.f32 %v321, 0.0
      %v329 = vrot.slane %v325, 7
      %v330 = vrot.slane %v326, 7
      %v333 = vsel %vm236, 0.0, %v329
      %v334 = vsel %vm236, 0.0, %v330
      %v335 = vrot.slane %v325, 1
      %v336 = vrot.slane %v326, 1
      %v339 = vsel %vm249, %v335, 0.0
      %v340 = vsel %vm249, %v336, 0.0
      %v341 = vpack.c.bf16 %v333, %v333
      %v342 = vpack.c.bf16 %v334, %v334
      %v343 = vpack.c.bf16 %v325, %v325
      %v344 = vpack.c.bf16 %v326, %v326
      %v345 = vpack.c.bf16 %v339, %v339
      %v346 = vpack.c.bf16 %v340, %v340
      %v347 = vld [vmem:[%s1] sm:$0xff]
      %v348 = vld [vmem:[%s1 + $0x8] sm:$0xff]
      %v349 = vld [vmem:[%s1 + $0x10] sm:$0xff]
      %v350 = vld [vmem:[%s1 + $0x18] sm:$0xff]
      %v351 = vld [vmem:[%s1 + $0x20] sm:$0xff]
      %v352 = vld [vmem:[%s1 + $0x28] sm:$0xff]
      %v353 = vld [vmem:[%s1 + $0x30] sm:$0xff]
      %v354 = vld [vmem:[%s1 + $0x38] sm:$0xff]
      %v355 = vld [vmem:[%s1 + $0x40] sm:$0xff]
      %v356 = vld [vmem:[%s1 + $0x48] sm:$0xff]
      %v357 = vld [vmem:[%s1 + $0x50] sm:$0xff]
      %v358 = vld [vmem:[%s1 + $0x58] sm:$0xff]
      %v359 = vld [vmem:[%s1 + $0x60] sm:$0xff]
      %v360 = vld [vmem:[%s1 + $0x68] sm:$0xff]
      %v361 = vld [vmem:[%s1 + $0x70] sm:$0xff]
      %v362 = vld [vmem:[%s1 + $0x78] sm:$0xff]
      %v363 = vld [vmem:[%s1 + $0x80] sm:$0xff]
      %v364 = vld [vmem:[%s1 + $0x88] sm:$0xff]
      %v365 = vld [vmem:[%s1 + $0x90] sm:$0xff]
      %v366 = vld [vmem:[%s1 + $0x98] sm:$0xff]
      %v367 = vld [vmem:[%s1 + $0xa0] sm:$0xff]
      %v368 = vld [vmem:[%s1 + $0xa8] sm:$0xff]
      %v369 = vld [vmem:[%s1 + $0xb0] sm:$0xff]
      %v370 = vld [vmem:[%s1 + $0xb8] sm:$0xff]
      %v371 = vld [vmem:[%s1 + $0xc0] sm:$0xff]
      %v372 = vld [vmem:[%s1 + $0xc8] sm:$0xff]
      %v373 = vld [vmem:[%s1 + $0xd0] sm:$0xff]
      %v374 = vld [vmem:[%s1 + $0xd8] sm:$0xff]
      %v375 = vld [vmem:[%s1 + $0xe0] sm:$0xff]
      %v376 = vld [vmem:[%s1 + $0xe8] sm:$0xff]
      %v377 = vld [vmem:[%s1 + $0xf0] sm:$0xff]
      %v378 = vld [vmem:[%s1 + $0xf8] sm:$0xff]
      %v379 = vld [vmem:[%s1 + $0x100] sm:$0xff]
      %v380 = vld [vmem:[%s1 + $0x108] sm:$0xff]
      %v381 = vld [vmem:[%s1 + $0x110] sm:$0xff]
      %v382 = vld [vmem:[%s1 + $0x118] sm:$0xff]
      %v383 = vld [vmem:[%s1 + $0x120] sm:$0xff]
      %v384 = vld [vmem:[%s1 + $0x128] sm:$0xff]
      %v385 = vld [vmem:[%s1 + $0x130] sm:$0xff]
      %v386 = vld [vmem:[%s1 + $0x138] sm:$0xff]
      %v387 = vld [vmem:[%s1 + $0x140] sm:$0xff]
      %v388 = vld [vmem:[%s1 + $0x148] sm:$0xff]
      %v389 = vld [vmem:[%s1 + $0x150] sm:$0xff]
      %v390 = vld [vmem:[%s1 + $0x158] sm:$0xff]
      %v391 = vld [vmem:[%s1 + $0x160] sm:$0xff]
      %v392 = vld [vmem:[%s1 + $0x168] sm:$0xff]
      %v393 = vld [vmem:[%s1 + $0x170] sm:$0xff]
      %v394 = vld [vmem:[%s1 + $0x178] sm:$0xff]
      %v395 = vld [vmem:[%s1 + $0x180] sm:$0xff]
      %v396 = vld [vmem:[%s1 + $0x188] sm:$0xff]
      %v397 = vld [vmem:[%s1 + $0x190] sm:$0xff]
      %v398 = vld [vmem:[%s1 + $0x198] sm:$0xff]
      %v399 = vld [vmem:[%s1 + $0x1a0] sm:$0xff]
      %v400 = vld [vmem:[%s1 + $0x1a8] sm:$0xff]
      %v401 = vld [vmem:[%s1 + $0x1b0] sm:$0xff]
      %v402 = vld [vmem:[%s1 + $0x1b8] sm:$0xff]
      %v403 = vld [vmem:[%s1 + $0x1c0] sm:$0xff]
      %v404 = vld [vmem:[%s1 + $0x1c8] sm:$0xff]
      %v405 = vld [vmem:[%s1 + $0x1d0] sm:$0xff]
      %v406 = vld [vmem:[%s1 + $0x1d8] sm:$0xff]
      %v407 = vld [vmem:[%s1 + $0x1e0] sm:$0xff]
      %v408 = vld [vmem:[%s1 + $0x1e8] sm:$0xff]
      %v409 = vld [vmem:[%s1 + $0x1f0] sm:$0xff]
      %v410 = vld [vmem:[%s1 + $0x1f8] sm:$0xff]
      %v411 = vld [vmem:[%s1 + $0x200] sm:$0xff]
      %v412 = vld [vmem:[%s1 + $0x208] sm:$0xff]
      %v413 = vld [vmem:[%s1 + $0x210] sm:$0xff]
      %v414 = vld [vmem:[%s1 + $0x218] sm:$0xff]
      %v415 = vld [vmem:[%s1 + $0x220] sm:$0xff]
      %v416 = vld [vmem:[%s1 + $0x228] sm:$0xff]
      %v417 = vld [vmem:[%s1 + $0x230] sm:$0xff]
      %v418 = vld [vmem:[%s1 + $0x238] sm:$0xff]
      %v419 = vld [vmem:[%s1 + $0x240] sm:$0xff]
      %v420 = vld [vmem:[%s1 + $0x248] sm:$0xff]
      %v421 = vld [vmem:[%s1 + $0x250] sm:$0xff]
      %v422 = vld [vmem:[%s1 + $0x258] sm:$0xff]
      %v423 = vld [vmem:[%s1 + $0x260] sm:$0xff]
      %v424 = vld [vmem:[%s1 + $0x268] sm:$0xff]
      %v425 = vld [vmem:[%s1 + $0x270] sm:$0xff]
      %v426 = vld [vmem:[%s1 + $0x278] sm:$0xff]
      %v427 = vld [vmem:[%s1 + $0x280] sm:$0xff]
      %v428 = vld [vmem:[%s1 + $0x288] sm:$0xff]
      %v429 = vld [vmem:[%s1 + $0x290] sm:$0xff]
      %v430 = vld [vmem:[%s1 + $0x298] sm:$0xff]
      %v431 = vld [vmem:[%s1 + $0x2a0] sm:$0xff]
      %v432 = vld [vmem:[%s1 + $0x2a8] sm:$0xff]
      %v433 = vld [vmem:[%s1 + $0x2b0] sm:$0xff]
      %v434 = vld [vmem:[%s1 + $0x2b8] sm:$0xff]
      %v435 = vld [vmem:[%s1 + $0x2c0] sm:$0xff]
      %v436 = vld [vmem:[%s1 + $0x2c8] sm:$0xff]
      %v437 = vld [vmem:[%s1 + $0x2d0] sm:$0xff]
      %v438 = vld [vmem:[%s1 + $0x2d8] sm:$0xff]
      %v439 = vld [vmem:[%s1 + $0x2e0] sm:$0xff]
      %v440 = vld [vmem:[%s1 + $0x2e8] sm:$0xff]
      %v441 = vld [vmem:[%s1 + $0x2f0] sm:$0xff]
      %v442 = vld [vmem:[%s1 + $0x2f8] sm:$0xff]
      %v443 = vld [vmem:[%s2] sm:$0x3]
      %v445 = vlaneseq
      %v446 = vshrl.u32 %v445, 7
      %v447 = vsub.s32 0, %v446
      %v448 = vrot.slane %v443, %v447
      %v449 = vlaneseq
      %v450 = vshrl.u32 %v449, 7
      %v451 = vsub.s32 1, %v450
      %v452 = vrot.slane %v443, %v451
      %v551 = vunpack.c.l.b16 %v347
      %v552 = vunpack.c.h.b16 %v347
      %v553 = vunpack.c.l.b16 %v348
      %v554 = vunpack.c.h.b16 %v348
      %v555 = vunpack.c.l.b16 %v349
      %v556 = vunpack.c.h.b16 %v349
      %v557 = vunpack.c.l.b16 %v350
      %v558 = vunpack.c.h.b16 %v350
      %v559 = vunpack.c.l.b16 %v351
      %v560 = vunpack.c.h.b16 %v351
      %v561 = vunpack.c.l.b16 %v352
      %v562 = vunpack.c.h.b16 %v352
      %v563 = vunpack.c.l.b16 %v353
      %v564 = vunpack.c.h.b16 %v353
      %v565 = vunpack.c.l.b16 %v354
      %v566 = vunpack.c.h.b16 %v354
      %v567 = vunpack.c.l.b16 %v355
      %v568 = vunpack.c.h.b16 %v355
      %v569 = vunpack.c.l.b16 %v356
      %v570 = vunpack.c.h.b16 %v356
      %v571 = vunpack.c.l.b16 %v357
      %v572 = vunpack.c.h.b16 %v357
      %v573 = vunpack.c.l.b16 %v358
      %v574 = vunpack.c.h.b16 %v358
      %v575 = vunpack.c.l.b16 %v359
      %v576 = vunpack.c.h.b16 %v359
      %v577 = vunpack.c.l.b16 %v360
      %v578 = vunpack.c.h.b16 %v360
      %v579 = vunpack.c.l.b16 %v361
      %v580 = vunpack.c.h.b16 %v361
      %v581 = vunpack.c.l.b16 %v362
      %v582 = vunpack.c.h.b16 %v362
      %v583 = vunpack.c.l.b16 %v363
      %v584 = vunpack.c.h.b16 %v363
      %v585 = vunpack.c.l.b16 %v364
      %v586 = vunpack.c.h.b16 %v364
      %v587 = vunpack.c.l.b16 %v365
      %v588 = vunpack.c.h.b16 %v365
      %v589 = vunpack.c.l.b16 %v366
      %v590 = vunpack.c.h.b16 %v366
      %v591 = vunpack.c.l.b16 %v367
      %v592 = vunpack.c.h.b16 %v367
      %v593 = vunpack.c.l.b16 %v368
      %v594 = vunpack.c.h.b16 %v368
      %v595 = vunpack.c.l.b16 %v369
      %v596 = vunpack.c.h.b16 %v369
      %v597 = vunpack.c.l.b16 %v370
      %v598 = vunpack.c.h.b16 %v370
      %v599 = vunpack.c.l.b16 %v371
      %v600 = vunpack.c.h.b16 %v371
      %v601 = vunpack.c.l.b16 %v372
      %v602 = vunpack.c.h.b16 %v372
      %v603 = vunpack.c.l.b16 %v373
      %v604 = vunpack.c.h.b16 %v373
      %v605 = vunpack.c.l.b16 %v374
      %v606 = vunpack.c.h.b16 %v374
      %v607 = vunpack.c.l.b16 %v375
      %v608 = vunpack.c.h.b16 %v375
      %v609 = vunpack.c.l.b16 %v376
      %v610 = vunpack.c.h.b16 %v376
      %v611 = vunpack.c.l.b16 %v377
      %v612 = vunpack.c.h.b16 %v377
      %v613 = vunpack.c.l.b16 %v378
      %v614 = vunpack.c.h.b16 %v378
      %v615 = vunpack.c.l.b16 %v379
      %v616 = vunpack.c.h.b16 %v379
      %v617 = vunpack.c.l.b16 %v380
      %v618 = vunpack.c.h.b16 %v380
      %v619 = vunpack.c.l.b16 %v381
      %v620 = vunpack.c.h.b16 %v381
      %v621 = vunpack.c.l.b16 %v382
      %v622 = vunpack.c.h.b16 %v382
      %v623 = vunpack.c.l.b16 %v383
      %v624 = vunpack.c.h.b16 %v383
      %v625 = vunpack.c.l.b16 %v384
      %v626 = vunpack.c.h.b16 %v384
      %v627 = vunpack.c.l.b16 %v385
      %v628 = vunpack.c.h.b16 %v385
      %v629 = vunpack.c.l.b16 %v386
      %v630 = vunpack.c.h.b16 %v386
      %v631 = vunpack.c.l.b16 %v387
      %v632 = vunpack.c.h.b16 %v387
      %v633 = vunpack.c.l.b16 %v388
      %v634 = vunpack.c.h.b16 %v388
      %v635 = vunpack.c.l.b16 %v389
      %v636 = vunpack.c.h.b16 %v389
      %v637 = vunpack.c.l.b16 %v390
      %v638 = vunpack.c.h.b16 %v390
      %v639 = vunpack.c.l.b16 %v391
      %v640 = vunpack.c.h.b16 %v391
      %v641 = vunpack.c.l.b16 %v392
      %v642 = vunpack.c.h.b16 %v392
      %v643 = vunpack.c.l.b16 %v393
      %v644 = vunpack.c.h.b16 %v393
      %v645 = vunpack.c.l.b16 %v394
      %v646 = vunpack.c.h.b16 %v394
      %v647 = vunpack.c.l.b16 %v395
      %v648 = vunpack.c.h.b16 %v395
      %v649 = vunpack.c.l.b16 %v396
      %v650 = vunpack.c.h.b16 %v396
      %v651 = vunpack.c.l.b16 %v397
      %v652 = vunpack.c.h.b16 %v397
      %v653 = vunpack.c.l.b16 %v398
      %v654 = vunpack.c.h.b16 %v398
      %v655 = vunpack.c.l.b16 %v399
      %v656 = vunpack.c.h.b16 %v399
      %v657 = vunpack.c.l.b16 %v400
      %v658 = vunpack.c.h.b16 %v400
      %v659 = vunpack.c.l.b16 %v401
      %v660 = vunpack.c.h.b16 %v401
      %v661 = vunpack.c.l.b16 %v402
      %v662 = vunpack.c.h.b16 %v402
      %v663 = vunpack.c.l.b16 %v403
      %v664 = vunpack.c.h.b16 %v403
      %v665 = vunpack.c.l.b16 %v404
      %v666 = vunpack.c.h.b16 %v404
      %v667 = vunpack.c.l.b16 %v405
      %v668 = vunpack.c.h.b16 %v405
      %v669 = vunpack.c.l.b16 %v406
      %v670 = vunpack.c.h.b16 %v406
      %v671 = vunpack.c.l.b16 %v407
      %v672 = vunpack.c.h.b16 %v407
      %v673 = vunpack.c.l.b16 %v408
      %v674 = vunpack.c.h.b16 %v408
      %v675 = vunpack.c.l.b16 %v409
      %v676 = vunpack.c.h.b16 %v409
      %v677 = vunpack.c.l.b16 %v410
      %v678 = vunpack.c.h.b16 %v410
      %v679 = vunpack.c.l.b16 %v411
      %v680 = vunpack.c.h.b16 %v411
      %v681 = vunpack.c.l.b16 %v412
      %v682 = vunpack.c.h.b16 %v412
      %v683 = vunpack.c.l.b16 %v413
      %v684 = vunpack.c.h.b16 %v413
      %v685 = vunpack.c.l.b16 %v414
      %v686 = vunpack.c.h.b16 %v414
      %v687 = vunpack.c.l.b16 %v415
      %v688 = vunpack.c.h.b16 %v415
      %v689 = vunpack.c.l.b16 %v416
      %v690 = vunpack.c.h.b16 %v416
      %v691 = vunpack.c.l.b16 %v417
      %v692 = vunpack.c.h.b16 %v417
      %v693 = vunpack.c.l.b16 %v418
      %v694 = vunpack.c.h.b16 %v418
      %v695 = vunpack.c.l.b16 %v419
      %v696 = vunpack.c.h.b16 %v419
      %v697 = vunpack.c.l.b16 %v420
      %v698 = vunpack.c.h.b16 %v420
      %v699 = vunpack.c.l.b16 %v421
      %v700 = vunpack.c.h.b16 %v421
      %v701 = vunpack.c.l.b16 %v422
      %v702 = vunpack.c.h.b16 %v422
      %v703 = vunpack.c.l.b16 %v423
      %v704 = vunpack.c.h.b16 %v423
      %v705 = vunpack.c.l.b16 %v424
      %v706 = vunpack.c.h.b16 %v424
      %v707 = vunpack.c.l.b16 %v425
      %v708 = vunpack.c.h.b16 %v425
      %v709 = vunpack.c.l.b16 %v426
      %v710 = vunpack.c.h.b16 %v426
      %v711 = vunpack.c.l.b16 %v427
      %v712 = vunpack.c.h.b16 %v427
      %v713 = vunpack.c.l.b16 %v428
      %v714 = vunpack.c.h.b16 %v428
      %v715 = vunpack.c.l.b16 %v429
      %v716 = vunpack.c.h.b16 %v429
      %v717 = vunpack.c.l.b16 %v430
      %v718 = vunpack.c.h.b16 %v430
      %v719 = vunpack.c.l.b16 %v431
      %v720 = vunpack.c.h.b16 %v431
      %v721 = vunpack.c.l.b16 %v432
      %v722 = vunpack.c.h.b16 %v432
      %v723 = vunpack.c.l.b16 %v433
      %v724 = vunpack.c.h.b16 %v433
      %v725 = vunpack.c.l.b16 %v434
      %v726 = vunpack.c.h.b16 %v434
      %v727 = vunpack.c.l.b16 %v435
      %v728 = vunpack.c.h.b16 %v435
      %v729 = vunpack.c.l.b16 %v436
      %v730 = vunpack.c.h.b16 %v436
      %v731 = vunpack.c.l.b16 %v437
      %v732 = vunpack.c.h.b16 %v437
      %v733 = vunpack.c.l.b16 %v438
      %v734 = vunpack.c.h.b16 %v438
      %v735 = vunpack.c.l.b16 %v439
      %v736 = vunpack.c.h.b16 %v439
      %v737 = vunpack.c.l.b16 %v440
      %v738 = vunpack.c.h.b16 %v440
      %v739 = vunpack.c.l.b16 %v441
      %v740 = vunpack.c.h.b16 %v441
      %v741 = vunpack.c.l.b16 %v442
      %v742 = vunpack.c.h.b16 %v442
      %v743 = vpack.c.b16 %v553, %v551
      %v744 = vpack.c.b16 %v554, %v552
      %v745 = vpack.c.b16 %v557, %v555
      %v746 = vpack.c.b16 %v558, %v556
      %v747 = vpack.c.b16 %v561, %v559
      %v748 = vpack.c.b16 %v562, %v560
      %v749 = vpack.c.b16 %v565, %v563
      %v750 = vpack.c.b16 %v566, %v564
      %v751 = vpack.c.b16 %v569, %v567
      %v752 = vpack.c.b16 %v570, %v568
      %v753 = vpack.c.b16 %v573, %v571
      %v754 = vpack.c.b16 %v574, %v572
      %v755 = vpack.c.b16 %v577, %v575
      %v756 = vpack.c.b16 %v578, %v576
      %v757 = vpack.c.b16 %v581, %v579
      %v758 = vpack.c.b16 %v582, %v580
      %v759 = vpack.c.b16 %v585, %v583
      %v760 = vpack.c.b16 %v586, %v584
      %v761 = vpack.c.b16 %v589, %v587
      %v762 = vpack.c.b16 %v590, %v588
      %v763 = vpack.c.b16 %v593, %v591
      %v764 = vpack.c.b16 %v594, %v592
      %v765 = vpack.c.b16 %v597, %v595
      %v766 = vpack.c.b16 %v598, %v596
      %v767 = vpack.c.b16 %v601, %v599
      %v768 = vpack.c.b16 %v602, %v600
      %v769 = vpack.c.b16 %v605, %v603
      %v770 = vpack.c.b16 %v606, %v604
      %v771 = vpack.c.b16 %v609, %v607
      %v772 = vpack.c.b16 %v610, %v608
      %v773 = vpack.c.b16 %v613, %v611
      %v774 = vpack.c.b16 %v614, %v612
      %v775 = vpack.c.b16 %v617, %v615
      %v776 = vpack.c.b16 %v618, %v616
      %v777 = vpack.c.b16 %v621, %v619
      %v778 = vpack.c.b16 %v622, %v620
      %v779 = vpack.c.b16 %v625, %v623
      %v780 = vpack.c.b16 %v626, %v624
      %v781 = vpack.c.b16 %v629, %v627
      %v782 = vpack.c.b16 %v630, %v628
      %v783 = vpack.c.b16 %v633, %v631
      %v784 = vpack.c.b16 %v634, %v632
      %v785 = vpack.c.b16 %v637, %v635
      %v786 = vpack.c.b16 %v638, %v636
      %v787 = vpack.c.b16 %v641, %v639
      %v788 = vpack.c.b16 %v642, %v640
      %v789 = vpack.c.b16 %v645, %v643
      %v790 = vpack.c.b16 %v646, %v644
      %v791 = vpack.c.b16 %v649, %v647
      %v792 = vpack.c.b16 %v650, %v648
      %v793 = vpack.c.b16 %v653, %v651
      %v794 = vpack.c.b16 %v654, %v652
      %v795 = vpack.c.b16 %v657, %v655
      %v796 = vpack.c.b16 %v658, %v656
      %v797 = vpack.c.b16 %v661, %v659
      %v798 = vpack.c.b16 %v662, %v660
      %v799 = vpack.c.b16 %v665, %v663
      %v800 = vpack.c.b16 %v666, %v664
      %v801 = vpack.c.b16 %v669, %v667
      %v802 = vpack.c.b16 %v670, %v668
      %v803 = vpack.c.b16 %v673, %v671
      %v804 = vpack.c.b16 %v674, %v672
      %v805 = vpack.c.b16 %v677, %v675
      %v806 = vpack.c.b16 %v678, %v676
      %v807 = vpack.c.b16 %v681, %v679
      %v808 = vpack.c.b16 %v682, %v680
      %v809 = vpack.c.b16 %v685, %v683
      %v810 = vpack.c.b16 %v686, %v684
      %v811 = vpack.c.b16 %v689, %v687
      %v812 = vpack.c.b16 %v690, %v688
      %v813 = vpack.c.b16 %v693, %v691
      %v814 = vpack.c.b16 %v694, %v692
      %v815 = vpack.c.b16 %v697, %v695
      %v816 = vpack.c.b16 %v698, %v696
      %v817 = vpack.c.b16 %v701, %v699
      %v818 = vpack.c.b16 %v702, %v700
      %v819 = vpack.c.b16 %v705, %v703
      %v820 = vpack.c.b16 %v706, %v704
      %v821 = vpack.c.b16 %v709, %v707
      %v822 = vpack.c.b16 %v710, %v708
      %v823 = vpack.c.b16 %v713, %v711
      %v824 = vpack.c.b16 %v714, %v712
      %v825 = vpack.c.b16 %v717, %v715
      %v826 = vpack.c.b16 %v718, %v716
      %v827 = vpack.c.b16 %v721, %v719
      %v828 = vpack.c.b16 %v722, %v720
      %v829 = vpack.c.b16 %v725, %v723
      %v830 = vpack.c.b16 %v726, %v724
      %v831 = vpack.c.b16 %v729, %v727
      %v832 = vpack.c.b16 %v730, %v728
      %v833 = vpack.c.b16 %v733, %v731
      %v834 = vpack.c.b16 %v734, %v732
      %v835 = vpack.c.b16 %v737, %v735
      %v836 = vpack.c.b16 %v738, %v736
      %v837 = vpack.c.b16 %v741, %v739
      %v838 = vpack.c.b16 %v742, %v740
      %935 = vmatprep.subr.bf16.mxu0 %v758
      %936 = vmatpush1.bf16.msra.mxu0 %v757
      %937 = vmatprep.subr.bf16.mxu0 %v756
      %938 = vmatpush1.bf16.msra.mxu0 %v755
      %939 = vmatprep.subr.bf16.mxu0 %v754
      %940 = vmatpush1.bf16.msra.mxu0 %v753
      %941 = vmatprep.subr.bf16.mxu0 %v752
      %942 = vmatpush1.bf16.msra.mxu0 %v751
      %943 = vmatprep.subr.bf16.mxu0 %v750
      %944 = vmatpush1.bf16.msra.mxu0 %v749
      %945 = vmatprep.subr.bf16.mxu0 %v748
      %946 = vmatpush1.bf16.msra.mxu0 %v747
      %947 = vmatprep.subr.bf16.mxu0 %v746
      %948 = vmatpush1.bf16.msra.mxu0 %v745
      %949 = vmatprep.subr.bf16.mxu0 %v744
      %950 = vmatpush1.bf16.msra.mxu0 %v743
      %951 = vmatprep.subr.bf16.mxu0 %v774
      %952 = vmatpush2.bf16.msra.mxu0 %v773
      %953 = vmatprep.subr.bf16.mxu0 %v772
      %954 = vmatpush2.bf16.msra.mxu0 %v771
      %955 = vmatprep.subr.bf16.mxu0 %v770
      %956 = vmatpush2.bf16.msra.mxu0 %v769
      %957 = vmatprep.subr.bf16.mxu0 %v768
      %958 = vmatpush2.bf16.msra.mxu0 %v767
      %959 = vmatprep.subr.bf16.mxu0 %v766
      %960 = vmatpush2.bf16.msra.mxu0 %v765
      %961 = vmatprep.subr.bf16.mxu0 %v764
      %962 = vmatpush2.bf16.msra.mxu0 %v763
      %963 = vmatprep.subr.bf16.mxu0 %v762
      %964 = vmatpush2.bf16.msra.mxu0 %v761
      %965 = vmatprep.subr.bf16.mxu0 %v760
      %966 = vmatpush2.bf16.msra.mxu0 %v759
      %967 = vmatprep.mubr.bf16.mxu0 %v342
      %968 = vmatmul.mubr.bf16.gmra.mxu0 %v341
      %v969 = vpop.f32.mrf.mxu0
      %v970 = vadd.f32 %v448, %v969
      %v971 = vpop.f32.mrf.mxu0
      %v972 = vadd.f32 %v452, %v971
      %v973 = vpop.f32.mrf.mxu0
      %v974 = vpop.f32.mrf.mxu0
      %975 = vdwg.mxu0
      %976 = vmatprep.subr.bf16.mxu0 %v790
      %977 = vmatpush1.bf16.msra.mxu0 %v789
      %978 = vmatprep.subr.bf16.mxu0 %v788
      %979 = vmatpush1.bf16.msra.mxu0 %v787
      %980 = vmatprep.subr.bf16.mxu0 %v786
      %981 = vmatpush1.bf16.msra.mxu0 %v785
      %982 = vmatprep.subr.bf16.mxu0 %v784
      %983 = vmatpush1.bf16.msra.mxu0 %v783
      %984 = vmatprep.subr.bf16.mxu0 %v782
      %985 = vmatpush1.bf16.msra.mxu0 %v781
      %986 = vmatprep.subr.bf16.mxu0 %v780
      %987 = vmatpush1.bf16.msra.mxu0 %v779
      %988 = vmatprep.subr.bf16.mxu0 %v778
      %989 = vmatpush1.bf16.msra.mxu0 %v777
      %990 = vmatprep.subr.bf16.mxu0 %v776
      %991 = vmatpush1.bf16.msra.mxu0 %v775
      %992 = vmatprep.subr.bf16.mxu0 %v806
      %993 = vmatpush2.bf16.msra.mxu0 %v805
      %994 = vmatprep.subr.bf16.mxu0 %v804
      %995 = vmatpush2.bf16.msra.mxu0 %v803
      %996 = vmatprep.subr.bf16.mxu0 %v802
      %997 = vmatpush2.bf16.msra.mxu0 %v801
      %998 = vmatprep.subr.bf16.mxu0 %v800
      %999 = vmatpush2.bf16.msra.mxu0 %v799
      %1000 = vmatprep.subr.bf16.mxu0 %v798
      %1001 = vmatpush2.bf16.msra.mxu0 %v797
      %1002 = vmatprep.subr.bf16.mxu0 %v796
      %1003 = vmatpush2.bf16.msra.mxu0 %v795
      %1004 = vmatprep.subr.bf16.mxu0 %v794
      %1005 = vmatpush2.bf16.msra.mxu0 %v793
      %1006 = vmatprep.subr.bf16.mxu0 %v792
      %1007 = vmatpush2.bf16.msra.mxu0 %v791
      %1008 = vmatprep.mubr.bf16.mxu0 %v344
      %1009 = vmatmul.mubr.bf16.gmra.mxu0 %v343
      %v1010 = vpop.f32.mrf.mxu0
      %v1011 = vadd.f32 %v970, %v1010
      %v1012 = vpop.f32.mrf.mxu0
      %v1013 = vadd.f32 %v972, %v1012
      %v1014 = vpop.f32.mrf.mxu0
      %v1015 = vpop.f32.mrf.mxu0
      %1016 = vdwg.mxu0
      %1017 = vmatprep.subr.bf16.mxu0 %v822
      %1018 = vmatpush1.bf16.msra.mxu0 %v821
      %1019 = vmatprep.subr.bf16.mxu0 %v820
      %1020 = vmatpush1.bf16.msra.mxu0 %v819
      %1021 = vmatprep.subr.bf16.mxu0 %v818
      %1022 = vmatpush1.bf16.msra.mxu0 %v817
      %1023 = vmatprep.subr.bf16.mxu0 %v816
      %1024 = vmatpush1.bf16.msra.mxu0 %v815
      %1025 = vmatprep.subr.bf16.mxu0 %v814
      %1026 = vmatpush1.bf16.msra.mxu0 %v813
      %1027 = vmatprep.subr.bf16.mxu0 %v812
      %1028 = vmatpush1.bf16.msra.mxu0 %v811
      %1029 = vmatprep.subr.bf16.mxu0 %v810
      %1030 = vmatpush1.bf16.msra.mxu0 %v809
      %1031 = vmatprep.subr.bf16.mxu0 %v808
      %1032 = vmatpush1.bf16.msra.mxu0 %v807
      %1033 = vmatprep.subr.bf16.mxu0 %v838
      %1034 = vmatpush2.bf16.msra.mxu0 %v837
      %1035 = vmatprep.subr.bf16.mxu0 %v836
      %1036 = vmatpush2.bf16.msra.mxu0 %v835
      %1037 = vmatprep.subr.bf16.mxu0 %v834
      %1038 = vmatpush2.bf16.msra.mxu0 %v833
      %1039 = vmatprep.subr.bf16.mxu0 %v832
      %1040 = vmatpush2.bf16.msra.mxu0 %v831
      %1041 = vmatprep.subr.bf16.mxu0 %v830
      %1042 = vmatpush2.bf16.msra.mxu0 %v829
      %1043 = vmatprep.subr.bf16.mxu0 %v828
      %1044 = vmatpush2.bf16.msra.mxu0 %v827
      %1045 = vmatprep.subr.bf16.mxu0 %v826
      %1046 = vmatpush2.bf16.msra.mxu0 %v825
      %1047 = vmatprep.subr.bf16.mxu0 %v824
      %1048 = vmatpush2.bf16.msra.mxu0 %v823
      %1049 = vmatprep.mubr.bf16.mxu0 %v346
      %1050 = vmatmul.mubr.bf16.gmra.mxu0 %v345
      %v1051 = vpop.f32.mrf.mxu0
      %v1052 = vadd.f32 %v1011, %v1051
      %v1053 = vpop.f32.mrf.mxu0
      %v1054 = vadd.f32 %v1013, %v1053
      %v1055 = vpop.f32.mrf.mxu0
      %v1056 = vpop.f32.mrf.mxu0
      %1057 = vdwg.mxu0
      %v1058 = vmax.f32 %v1052, 0.0
      %v1059 = vmax.f32 %v1054, 0.0
      %v1062 = vrot.slane %v1058, 7
      %v1063 = vrot.slane %v1059, 7
      %v1066 = vsel %vm236, 0.0, %v1062
      %v1067 = vsel %vm236, 0.0, %v1063
      %v1068 = vrot.slane %v1058, 1
      %v1069 = vrot.slane %v1059, 1
      %v1072 = vsel %vm249, %v1068, 0.0
      %v1073 = vsel %vm249, %v1069, 0.0
      %v1074 = vpack.c.bf16 %v1066, %v1066
      %v1075 = vpack.c.bf16 %v1067, %v1067
      %v1076 = vpack.c.bf16 %v1058, %v1058
      %v1077 = vpack.c.bf16 %v1059, %v1059
      %v1078 = vpack.c.bf16 %v1072, %v1072
      %v1079 = vpack.c.bf16 %v1073, %v1073
      %v1080 = vld [vmem:[%s3] sm:$0xff]
      %v1081 = vld [vmem:[%s3 + $0x8] sm:$0xff]
      %v1082 = vld [vmem:[%s3 + $0x10] sm:$0xff]
      %v1083 = vld [vmem:[%s3 + $0x18] sm:$0xff]
      %v1084 = vld [vmem:[%s3 + $0x20] sm:$0xff]
      %v1085 = vld [vmem:[%s3 + $0x28] sm:$0xff]
      %v1086 = vld [vmem:[%s3 + $0x30] sm:$0xff]
      %v1087 = vld [vmem:[%s3 + $0x38] sm:$0xff]
      %v1088 = vld [vmem:[%s3 + $0x40] sm:$0xff]
      %v1089 = vld [vmem:[%s3 + $0x48] sm:$0xff]
      %v1090 = vld [vmem:[%s3 + $0x50] sm:$0xff]
      %v1091 = vld [vmem:[%s3 + $0x58] sm:$0xff]
      %v1092 = vld [vmem:[%s3 + $0x60] sm:$0xff]
      %v1093 = vld [vmem:[%s3 + $0x68] sm:$0xff]
      %v1094 = vld [vmem:[%s3 + $0x70] sm:$0xff]
      %v1095 = vld [vmem:[%s3 + $0x78] sm:$0xff]
      %v1096 = vld [vmem:[%s3 + $0x80] sm:$0xff]
      %v1097 = vld [vmem:[%s3 + $0x88] sm:$0xff]
      %v1098 = vld [vmem:[%s3 + $0x90] sm:$0xff]
      %v1099 = vld [vmem:[%s3 + $0x98] sm:$0xff]
      %v1100 = vld [vmem:[%s3 + $0xa0] sm:$0xff]
      %v1101 = vld [vmem:[%s3 + $0xa8] sm:$0xff]
      %v1102 = vld [vmem:[%s3 + $0xb0] sm:$0xff]
      %v1103 = vld [vmem:[%s3 + $0xb8] sm:$0xff]
      %v1104 = vld [vmem:[%s3 + $0xc0] sm:$0xff]
      %v1105 = vld [vmem:[%s3 + $0xc8] sm:$0xff]
      %v1106 = vld [vmem:[%s3 + $0xd0] sm:$0xff]
      %v1107 = vld [vmem:[%s3 + $0xd8] sm:$0xff]
      %v1108 = vld [vmem:[%s3 + $0xe0] sm:$0xff]
      %v1109 = vld [vmem:[%s3 + $0xe8] sm:$0xff]
      %v1110 = vld [vmem:[%s3 + $0xf0] sm:$0xff]
      %v1111 = vld [vmem:[%s3 + $0xf8] sm:$0xff]
      %v1112 = vld [vmem:[%s3 + $0x100] sm:$0xff]
      %v1113 = vld [vmem:[%s3 + $0x108] sm:$0xff]
      %v1114 = vld [vmem:[%s3 + $0x110] sm:$0xff]
      %v1115 = vld [vmem:[%s3 + $0x118] sm:$0xff]
      %v1116 = vld [vmem:[%s3 + $0x120] sm:$0xff]
      %v1117 = vld [vmem:[%s3 + $0x128] sm:$0xff]
      %v1118 = vld [vmem:[%s3 + $0x130] sm:$0xff]
      %v1119 = vld [vmem:[%s3 + $0x138] sm:$0xff]
      %v1120 = vld [vmem:[%s3 + $0x140] sm:$0xff]
      %v1121 = vld [vmem:[%s3 + $0x148] sm:$0xff]
      %v1122 = vld [vmem:[%s3 + $0x150] sm:$0xff]
      %v1123 = vld [vmem:[%s3 + $0x158] sm:$0xff]
      %v1124 = vld [vmem:[%s3 + $0x160] sm:$0xff]
      %v1125 = vld [vmem:[%s3 + $0x168] sm:$0xff]
      %v1126 = vld [vmem:[%s3 + $0x170] sm:$0xff]
      %v1127 = vld [vmem:[%s3 + $0x178] sm:$0xff]
      %v1128 = vld [vmem:[%s3 + $0x180] sm:$0xff]
      %v1129 = vld [vmem:[%s3 + $0x188] sm:$0xff]
      %v1130 = vld [vmem:[%s3 + $0x190] sm:$0xff]
      %v1131 = vld [vmem:[%s3 + $0x198] sm:$0xff]
      %v1132 = vld [vmem:[%s3 + $0x1a0] sm:$0xff]
      %v1133 = vld [vmem:[%s3 + $0x1a8] sm:$0xff]
      %v1134 = vld [vmem:[%s3 + $0x1b0] sm:$0xff]
      %v1135 = vld [vmem:[%s3 + $0x1b8] sm:$0xff]
      %v1136 = vld [vmem:[%s3 + $0x1c0] sm:$0xff]
      %v1137 = vld [vmem:[%s3 + $0x1c8] sm:$0xff]
      %v1138 = vld [vmem:[%s3 + $0x1d0] sm:$0xff]
      %v1139 = vld [vmem:[%s3 + $0x1d8] sm:$0xff]
      %v1140 = vld [vmem:[%s3 + $0x1e0] sm:$0xff]
      %v1141 = vld [vmem:[%s3 + $0x1e8] sm:$0xff]
      %v1142 = vld [vmem:[%s3 + $0x1f0] sm:$0xff]
      %v1143 = vld [vmem:[%s3 + $0x1f8] sm:$0xff]
      %v1144 = vld [vmem:[%s3 + $0x200] sm:$0xff]
      %v1145 = vld [vmem:[%s3 + $0x208] sm:$0xff]
      %v1146 = vld [vmem:[%s3 + $0x210] sm:$0xff]
      %v1147 = vld [vmem:[%s3 + $0x218] sm:$0xff]
      %v1148 = vld [vmem:[%s3 + $0x220] sm:$0xff]
      %v1149 = vld [vmem:[%s3 + $0x228] sm:$0xff]
      %v1150 = vld [vmem:[%s3 + $0x230] sm:$0xff]
      %v1151 = vld [vmem:[%s3 + $0x238] sm:$0xff]
      %v1152 = vld [vmem:[%s3 + $0x240] sm:$0xff]
      %v1153 = vld [vmem:[%s3 + $0x248] sm:$0xff]
      %v1154 = vld [vmem:[%s3 + $0x250] sm:$0xff]
      %v1155 = vld [vmem:[%s3 + $0x258] sm:$0xff]
      %v1156 = vld [vmem:[%s3 + $0x260] sm:$0xff]
      %v1157 = vld [vmem:[%s3 + $0x268] sm:$0xff]
      %v1158 = vld [vmem:[%s3 + $0x270] sm:$0xff]
      %v1159 = vld [vmem:[%s3 + $0x278] sm:$0xff]
      %v1160 = vld [vmem:[%s3 + $0x280] sm:$0xff]
      %v1161 = vld [vmem:[%s3 + $0x288] sm:$0xff]
      %v1162 = vld [vmem:[%s3 + $0x290] sm:$0xff]
      %v1163 = vld [vmem:[%s3 + $0x298] sm:$0xff]
      %v1164 = vld [vmem:[%s3 + $0x2a0] sm:$0xff]
      %v1165 = vld [vmem:[%s3 + $0x2a8] sm:$0xff]
      %v1166 = vld [vmem:[%s3 + $0x2b0] sm:$0xff]
      %v1167 = vld [vmem:[%s3 + $0x2b8] sm:$0xff]
      %v1168 = vld [vmem:[%s3 + $0x2c0] sm:$0xff]
      %v1169 = vld [vmem:[%s3 + $0x2c8] sm:$0xff]
      %v1170 = vld [vmem:[%s3 + $0x2d0] sm:$0xff]
      %v1171 = vld [vmem:[%s3 + $0x2d8] sm:$0xff]
      %v1172 = vld [vmem:[%s3 + $0x2e0] sm:$0xff]
      %v1173 = vld [vmem:[%s3 + $0x2e8] sm:$0xff]
      %v1174 = vld [vmem:[%s3 + $0x2f0] sm:$0xff]
      %v1175 = vld [vmem:[%s3 + $0x2f8] sm:$0xff]
      %v1176 = vld [vmem:[%s4] sm:$0x3]
      %v1178 = vlaneseq
      %v1179 = vshrl.u32 %v1178, 7
      %v1180 = vsub.s32 0, %v1179
      %v1181 = vrot.slane %v1176, %v1180
      %v1182 = vlaneseq
      %v1183 = vshrl.u32 %v1182, 7
      %v1184 = vsub.s32 1, %v1183
      %v1185 = vrot.slane %v1176, %v1184
      %v1284 = vunpack.c.l.b16 %v1080
      %v1285 = vunpack.c.h.b16 %v1080
      %v1286 = vunpack.c.l.b16 %v1081
      %v1287 = vunpack.c.h.b16 %v1081
      %v1288 = vunpack.c.l.b16 %v1082
      %v1289 = vunpack.c.h.b16 %v1082
      %v1290 = vunpack.c.l.b16 %v1083
      %v1291 = vunpack.c.h.b16 %v1083
      %v1292 = vunpack.c.l.b16 %v1084
      %v1293 = vunpack.c.h.b16 %v1084
      %v1294 = vunpack.c.l.b16 %v1085
      %v1295 = vunpack.c.h.b16 %v1085
      %v1296 = vunpack.c.l.b16 %v1086
      %v1297 = vunpack.c.h.b16 %v1086
      %v1298 = vunpack.c.l.b16 %v1087
      %v1299 = vunpack.c.h.b16 %v1087
      %v1300 = vunpack.c.l.b16 %v1088
      %v1301 = vunpack.c.h.b16 %v1088
      %v1302 = vunpack.c.l.b16 %v1089
      %v1303 = vunpack.c.h.b16 %v1089
      %v1304 = vunpack.c.l.b16 %v1090
      %v1305 = vunpack.c.h.b16 %v1090
      %v1306 = vunpack.c.l.b16 %v1091
      %v1307 = vunpack.c.h.b16 %v1091
      %v1308 = vunpack.c.l.b16 %v1092
      %v1309 = vunpack.c.h.b16 %v1092
      %v1310 = vunpack.c.l.b16 %v1093
      %v1311 = vunpack.c.h.b16 %v1093
      %v1312 = vunpack.c.l.b16 %v1094
      %v1313 = vunpack.c.h.b16 %v1094
      %v1314 = vunpack.c.l.b16 %v1095
      %v1315 = vunpack.c.h.b16 %v1095
      %v1316 = vunpack.c.l.b16 %v1096
      %v1317 = vunpack.c.h.b16 %v1096
      %v1318 = vunpack.c.l.b16 %v1097
      %v1319 = vunpack.c.h.b16 %v1097
      %v1320 = vunpack.c.l.b16 %v1098
      %v1321 = vunpack.c.h.b16 %v1098
      %v1322 = vunpack.c.l.b16 %v1099
      %v1323 = vunpack.c.h.b16 %v1099
      %v1324 = vunpack.c.l.b16 %v1100
      %v1325 = vunpack.c.h.b16 %v1100
      %v1326 = vunpack.c.l.b16 %v1101
      %v1327 = vunpack.c.h.b16 %v1101
      %v1328 = vunpack.c.l.b16 %v1102
      %v1329 = vunpack.c.h.b16 %v1102
      %v1330 = vunpack.c.l.b16 %v1103
      %v1331 = vunpack.c.h.b16 %v1103
      %v1332 = vunpack.c.l.b16 %v1104
      %v1333 = vunpack.c.h.b16 %v1104
      %v1334 = vunpack.c.l.b16 %v1105
      %v1335 = vunpack.c.h.b16 %v1105
      %v1336 = vunpack.c.l.b16 %v1106
      %v1337 = vunpack.c.h.b16 %v1106
      %v1338 = vunpack.c.l.b16 %v1107
      %v1339 = vunpack.c.h.b16 %v1107
      %v1340 = vunpack.c.l.b16 %v1108
      %v1341 = vunpack.c.h.b16 %v1108
      %v1342 = vunpack.c.l.b16 %v1109
      %v1343 = vunpack.c.h.b16 %v1109
      %v1344 = vunpack.c.l.b16 %v1110
      %v1345 = vunpack.c.h.b16 %v1110
      %v1346 = vunpack.c.l.b16 %v1111
      %v1347 = vunpack.c.h.b16 %v1111
      %v1348 = vunpack.c.l.b16 %v1112
      %v1349 = vunpack.c.h.b16 %v1112
      %v1350 = vunpack.c.l.b16 %v1113
      %v1351 = vunpack.c.h.b16 %v1113
      %v1352 = vunpack.c.l.b16 %v1114
      %v1353 = vunpack.c.h.b16 %v1114
      %v1354 = vunpack.c.l.b16 %v1115
      %v1355 = vunpack.c.h.b16 %v1115
      %v1356 = vunpack.c.l.b16 %v1116
      %v1357 = vunpack.c.h.b16 %v1116
      %v1358 = vunpack.c.l.b16 %v1117
      %v1359 = vunpack.c.h.b16 %v1117
      %v1360 = vunpack.c.l.b16 %v1118
      %v1361 = vunpack.c.h.b16 %v1118
      %v1362 = vunpack.c.l.b16 %v1119
      %v1363 = vunpack.c.h.b16 %v1119
      %v1364 = vunpack.c.l.b16 %v1120
      %v1365 = vunpack.c.h.b16 %v1120
      %v1366 = vunpack.c.l.b16 %v1121
      %v1367 = vunpack.c.h.b16 %v1121
      %v1368 = vunpack.c.l.b16 %v1122
      %v1369 = vunpack.c.h.b16 %v1122
      %v1370 = vunpack.c.l.b16 %v1123
      %v1371 = vunpack.c.h.b16 %v1123
      %v1372 = vunpack.c.l.b16 %v1124
      %v1373 = vunpack.c.h.b16 %v1124
      %v1374 = vunpack.c.l.b16 %v1125
      %v1375 = vunpack.c.h.b16 %v1125
      %v1376 = vunpack.c.l.b16 %v1126
      %v1377 = vunpack.c.h.b16 %v1126
      %v1378 = vunpack.c.l.b16 %v1127
      %v1379 = vunpack.c.h.b16 %v1127
      %v1380 = vunpack.c.l.b16 %v1128
      %v1381 = vunpack.c.h.b16 %v1128
      %v1382 = vunpack.c.l.b16 %v1129
      %v1383 = vunpack.c.h.b16 %v1129
      %v1384 = vunpack.c.l.b16 %v1130
      %v1385 = vunpack.c.h.b16 %v1130
      %v1386 = vunpack.c.l.b16 %v1131
      %v1387 = vunpack.c.h.b16 %v1131
      %v1388 = vunpack.c.l.b16 %v1132
      %v1389 = vunpack.c.h.b16 %v1132
      %v1390 = vunpack.c.l.b16 %v1133
      %v1391 = vunpack.c.h.b16 %v1133
      %v1392 = vunpack.c.l.b16 %v1134
      %v1393 = vunpack.c.h.b16 %v1134
      %v1394 = vunpack.c.l.b16 %v1135
      %v1395 = vunpack.c.h.b16 %v1135
      %v1396 = vunpack.c.l.b16 %v1136
      %v1397 = vunpack.c.h.b16 %v1136
      %v1398 = vunpack.c.l.b16 %v1137
      %v1399 = vunpack.c.h.b16 %v1137
      %v1400 = vunpack.c.l.b16 %v1138
      %v1401 = vunpack.c.h.b16 %v1138
      %v1402 = vunpack.c.l.b16 %v1139
      %v1403 = vunpack.c.h.b16 %v1139
      %v1404 = vunpack.c.l.b16 %v1140
      %v1405 = vunpack.c.h.b16 %v1140
      %v1406 = vunpack.c.l.b16 %v1141
      %v1407 = vunpack.c.h.b16 %v1141
      %v1408 = vunpack.c.l.b16 %v1142
      %v1409 = vunpack.c.h.b16 %v1142
      %v1410 = vunpack.c.l.b16 %v1143
      %v1411 = vunpack.c.h.b16 %v1143
      %v1412 = vunpack.c.l.b16 %v1144
      %v1413 = vunpack.c.h.b16 %v1144
      %v1414 = vunpack.c.l.b16 %v1145
      %v1415 = vunpack.c.h.b16 %v1145
      %v1416 = vunpack.c.l.b16 %v1146
      %v1417 = vunpack.c.h.b16 %v1146
      %v1418 = vunpack.c.l.b16 %v1147
      %v1419 = vunpack.c.h.b16 %v1147
      %v1420 = vunpack.c.l.b16 %v1148
      %v1421 = vunpack.c.h.b16 %v1148
      %v1422 = vunpack.c.l.b16 %v1149
      %v1423 = vunpack.c.h.b16 %v1149
      %v1424 = vunpack.c.l.b16 %v1150
      %v1425 = vunpack.c.h.b16 %v1150
      %v1426 = vunpack.c.l.b16 %v1151
      %v1427 = vunpack.c.h.b16 %v1151
      %v1428 = vunpack.c.l.b16 %v1152
      %v1429 = vunpack.c.h.b16 %v1152
      %v1430 = vunpack.c.l.b16 %v1153
      %v1431 = vunpack.c.h.b16 %v1153
      %v1432 = vunpack.c.l.b16 %v1154
      %v1433 = vunpack.c.h.b16 %v1154
      %v1434 = vunpack.c.l.b16 %v1155
      %v1435 = vunpack.c.h.b16 %v1155
      %v1436 = vunpack.c.l.b16 %v1156
      %v1437 = vunpack.c.h.b16 %v1156
      %v1438 = vunpack.c.l.b16 %v1157
      %v1439 = vunpack.c.h.b16 %v1157
      %v1440 = vunpack.c.l.b16 %v1158
      %v1441 = vunpack.c.h.b16 %v1158
      %v1442 = vunpack.c.l.b16 %v1159
      %v1443 = vunpack.c.h.b16 %v1159
      %v1444 = vunpack.c.l.b16 %v1160
      %v1445 = vunpack.c.h.b16 %v1160
      %v1446 = vunpack.c.l.b16 %v1161
      %v1447 = vunpack.c.h.b16 %v1161
      %v1448 = vunpack.c.l.b16 %v1162
      %v1449 = vunpack.c.h.b16 %v1162
      %v1450 = vunpack.c.l.b16 %v1163
      %v1451 = vunpack.c.h.b16 %v1163
      %v1452 = vunpack.c.l.b16 %v1164
      %v1453 = vunpack.c.h.b16 %v1164
      %v1454 = vunpack.c.l.b16 %v1165
      %v1455 = vunpack.c.h.b16 %v1165
      %v1456 = vunpack.c.l.b16 %v1166
      %v1457 = vunpack.c.h.b16 %v1166
      %v1458 = vunpack.c.l.b16 %v1167
      %v1459 = vunpack.c.h.b16 %v1167
      %v1460 = vunpack.c.l.b16 %v1168
      %v1461 = vunpack.c.h.b16 %v1168
      %v1462 = vunpack.c.l.b16 %v1169
      %v1463 = vunpack.c.h.b16 %v1169
      %v1464 = vunpack.c.l.b16 %v1170
      %v1465 = vunpack.c.h.b16 %v1170
      %v1466 = vunpack.c.l.b16 %v1171
      %v1467 = vunpack.c.h.b16 %v1171
      %v1468 = vunpack.c.l.b16 %v1172
      %v1469 = vunpack.c.h.b16 %v1172
      %v1470 = vunpack.c.l.b16 %v1173
      %v1471 = vunpack.c.h.b16 %v1173
      %v1472 = vunpack.c.l.b16 %v1174
      %v1473 = vunpack.c.h.b16 %v1174
      %v1474 = vunpack.c.l.b16 %v1175
      %v1475 = vunpack.c.h.b16 %v1175
      %v1476 = vpack.c.b16 %v1286, %v1284
      %v1477 = vpack.c.b16 %v1287, %v1285
      %v1478 = vpack.c.b16 %v1290, %v1288
      %v1479 = vpack.c.b16 %v1291, %v1289
      %v1480 = vpack.c.b16 %v1294, %v1292
      %v1481 = vpack.c.b16 %v1295, %v1293
      %v1482 = vpack.c.b16 %v1298, %v1296
      %v1483 = vpack.c.b16 %v1299, %v1297
      %v1484 = vpack.c.b16 %v1302, %v1300
      %v1485 = vpack.c.b16 %v1303, %v1301
      %v1486 = vpack.c.b16 %v1306, %v1304
      %v1487 = vpack.c.b16 %v1307, %v1305
      %v1488 = vpack.c.b16 %v1310, %v1308
      %v1489 = vpack.c.b16 %v1311, %v1309
      %v1490 = vpack.c.b16 %v1314, %v1312
      %v1491 = vpack.c.b16 %v1315, %v1313
      %v1492 = vpack.c.b16 %v1318, %v1316
      %v1493 = vpack.c.b16 %v1319, %v1317
      %v1494 = vpack.c.b16 %v1322, %v1320
      %v1495 = vpack.c.b16 %v1323, %v1321
      %v1496 = vpack.c.b16 %v1326, %v1324
      %v1497 = vpack.c.b16 %v1327, %v1325
      %v1498 = vpack.c.b16 %v1330, %v1328
      %v1499 = vpack.c.b16 %v1331, %v1329
      %v1500 = vpack.c.b16 %v1334, %v1332
      %v1501 = vpack.c.b16 %v1335, %v1333
      %v1502 = vpack.c.b16 %v1338, %v1336
      %v1503 = vpack.c.b16 %v1339, %v1337
      %v1504 = vpack.c.b16 %v1342, %v1340
      %v1505 = vpack.c.b16 %v1343, %v1341
      %v1506 = vpack.c.b16 %v1346, %v1344
      %v1507 = vpack.c.b16 %v1347, %v1345
      %v1508 = vpack.c.b16 %v1350, %v1348
      %v1509 = vpack.c.b16 %v1351, %v1349
      %v1510 = vpack.c.b16 %v1354, %v1352
      %v1511 = vpack.c.b16 %v1355, %v1353
      %v1512 = vpack.c.b16 %v1358, %v1356
      %v1513 = vpack.c.b16 %v1359, %v1357
      %v1514 = vpack.c.b16 %v1362, %v1360
      %v1515 = vpack.c.b16 %v1363, %v1361
      %v1516 = vpack.c.b16 %v1366, %v1364
      %v1517 = vpack.c.b16 %v1367, %v1365
      %v1518 = vpack.c.b16 %v1370, %v1368
      %v1519 = vpack.c.b16 %v1371, %v1369
      %v1520 = vpack.c.b16 %v1374, %v1372
      %v1521 = vpack.c.b16 %v1375, %v1373
      %v1522 = vpack.c.b16 %v1378, %v1376
      %v1523 = vpack.c.b16 %v1379, %v1377
      %v1524 = vpack.c.b16 %v1382, %v1380
      %v1525 = vpack.c.b16 %v1383, %v1381
      %v1526 = vpack.c.b16 %v1386, %v1384
      %v1527 = vpack.c.b16 %v1387, %v1385
      %v1528 = vpack.c.b16 %v1390, %v1388
      %v1529 = vpack.c.b16 %v1391, %v1389
      %v1530 = vpack.c.b16 %v1394, %v1392
      %v1531 = vpack.c.b16 %v1395, %v1393
      %v1532 = vpack.c.b16 %v1398, %v1396
      %v1533 = vpack.c.b16 %v1399, %v1397
      %v1534 = vpack.c.b16 %v1402, %v1400
      %v1535 = vpack.c.b16 %v1403, %v1401
      %v1536 = vpack.c.b16 %v1406, %v1404
      %v1537 = vpack.c.b16 %v1407, %v1405
      %v1538 = vpack.c.b16 %v1410, %v1408
      %v1539 = vpack.c.b16 %v1411, %v1409
      %v1540 = vpack.c.b16 %v1414, %v1412
      %v1541 = vpack.c.b16 %v1415, %v1413
      %v1542 = vpack.c.b16 %v1418, %v1416
      %v1543 = vpack.c.b16 %v1419, %v1417
      %v1544 = vpack.c.b16 %v1422, %v1420
      %v1545 = vpack.c.b16 %v1423, %v1421
      %v1546 = vpack.c.b16 %v1426, %v1424
      %v1547 = vpack.c.b16 %v1427, %v1425
      %v1548 = vpack.c.b16 %v1430, %v1428
      %v1549 = vpack.c.b16 %v1431, %v1429
      %v1550 = vpack.c.b16 %v1434, %v1432
      %v1551 = vpack.c.b16 %v1435, %v1433
      %v1552 = vpack.c.b16 %v1438, %v1436
      %v1553 = vpack.c.b16 %v1439, %v1437
      %v1554 = vpack.c.b16 %v1442, %v1440
      %v1555 = vpack.c.b16 %v1443, %v1441
      %v1556 = vpack.c.b16 %v1446, %v1444
      %v1557 = vpack.c.b16 %v1447, %v1445
      %v1558 = vpack.c.b16 %v1450, %v1448
      %v1559 = vpack.c.b16 %v1451, %v1449
      %v1560 = vpack.c.b16 %v1454, %v1452
      %v1561 = vpack.c.b16 %v1455, %v1453
      %v1562 = vpack.c.b16 %v1458, %v1456
      %v1563 = vpack.c.b16 %v1459, %v1457
      %v1564 = vpack.c.b16 %v1462, %v1460
      %v1565 = vpack.c.b16 %v1463, %v1461
      %v1566 = vpack.c.b16 %v1466, %v1464
      %v1567 = vpack.c.b16 %v1467, %v1465
      %v1568 = vpack.c.b16 %v1470, %v1468
      %v1569 = vpack.c.b16 %v1471, %v1469
      %v1570 = vpack.c.b16 %v1474, %v1472
      %v1571 = vpack.c.b16 %v1475, %v1473
      %1668 = vmatprep.subr.bf16.mxu0 %v1491
      %1669 = vmatpush1.bf16.msra.mxu0 %v1490
      %1670 = vmatprep.subr.bf16.mxu0 %v1489
      %1671 = vmatpush1.bf16.msra.mxu0 %v1488
      %1672 = vmatprep.subr.bf16.mxu0 %v1487
      %1673 = vmatpush1.bf16.msra.mxu0 %v1486
      %1674 = vmatprep.subr.bf16.mxu0 %v1485
      %1675 = vmatpush1.bf16.msra.mxu0 %v1484
      %1676 = vmatprep.subr.bf16.mxu0 %v1483
      %1677 = vmatpush1.bf16.msra.mxu0 %v1482
      %1678 = vmatprep.subr.bf16.mxu0 %v1481
      %1679 = vmatpush1.bf16.msra.mxu0 %v1480
      %1680 = vmatprep.subr.bf16.mxu0 %v1479
      %1681 = vmatpush1.bf16.msra.mxu0 %v1478
      %1682 = vmatprep.subr.bf16.mxu0 %v1477
      %1683 = vmatpush1.bf16.msra.mxu0 %v1476
      %1684 = vmatprep.subr.bf16.mxu0 %v1507
      %1685 = vmatpush2.bf16.msra.mxu0 %v1506
      %1686 = vmatprep.subr.bf16.mxu0 %v1505
      %1687 = vmatpush2.bf16.msra.mxu0 %v1504
      %1688 = vmatprep.subr.bf16.mxu0 %v1503
      %1689 = vmatpush2.bf16.msra.mxu0 %v1502
      %1690 = vmatprep.subr.bf16.mxu0 %v1501
      %1691 = vmatpush2.bf16.msra.mxu0 %v1500
      %1692 = vmatprep.subr.bf16.mxu0 %v1499
      %1693 = vmatpush2.bf16.msra.mxu0 %v1498
      %1694 = vmatprep.subr.bf16.mxu0 %v1497
      %1695 = vmatpush2.bf16.msra.mxu0 %v1496
      %1696 = vmatprep.subr.bf16.mxu0 %v1495
      %1697 = vmatpush2.bf16.msra.mxu0 %v1494
      %1698 = vmatprep.subr.bf16.mxu0 %v1493
      %1699 = vmatpush2.bf16.msra.mxu0 %v1492
      %1700 = vmatprep.mubr.bf16.mxu0 %v1075
      %1701 = vmatmul.mubr.bf16.gmra.mxu0 %v1074
      %v1702 = vpop.f32.mrf.mxu0
      %v1703 = vadd.f32 %v1181, %v1702
      %v1704 = vpop.f32.mrf.mxu0
      %v1705 = vadd.f32 %v1185, %v1704
      %v1706 = vpop.f32.mrf.mxu0
      %v1707 = vpop.f32.mrf.mxu0
      %1708 = vdwg.mxu0
      %1709 = vmatprep.subr.bf16.mxu0 %v1523
      %1710 = vmatpush1.bf16.msra.mxu0 %v1522
      %1711 = vmatprep.subr.bf16.mxu0 %v1521
      %1712 = vmatpush1.bf16.msra.mxu0 %v1520
      %1713 = vmatprep.subr.bf16.mxu0 %v1519
      %1714 = vmatpush1.bf16.msra.mxu0 %v1518
      %1715 = vmatprep.subr.bf16.mxu0 %v1517
      %1716 = vmatpush1.bf16.msra.mxu0 %v1516
      %1717 = vmatprep.subr.bf16.mxu0 %v1515
      %1718 = vmatpush1.bf16.msra.mxu0 %v1514
      %1719 = vmatprep.subr.bf16.mxu0 %v1513
      %1720 = vmatpush1.bf16.msra.mxu0 %v1512
      %1721 = vmatprep.subr.bf16.mxu0 %v1511
      %1722 = vmatpush1.bf16.msra.mxu0 %v1510
      %1723 = vmatprep.subr.bf16.mxu0 %v1509
      %1724 = vmatpush1.bf16.msra.mxu0 %v1508
      %1725 = vmatprep.subr.bf16.mxu0 %v1539
      %1726 = vmatpush2.bf16.msra.mxu0 %v1538
      %1727 = vmatprep.subr.bf16.mxu0 %v1537
      %1728 = vmatpush2.bf16.msra.mxu0 %v1536
      %1729 = vmatprep.subr.bf16.mxu0 %v1535
      %1730 = vmatpush2.bf16.msra.mxu0 %v1534
      %1731 = vmatprep.subr.bf16.mxu0 %v1533
      %1732 = vmatpush2.bf16.msra.mxu0 %v1532
      %1733 = vmatprep.subr.bf16.mxu0 %v1531
      %1734 = vmatpush2.bf16.msra.mxu0 %v1530
      %1735 = vmatprep.subr.bf16.mxu0 %v1529
      %1736 = vmatpush2.bf16.msra.mxu0 %v1528
      %1737 = vmatprep.subr.bf16.mxu0 %v1527
      %1738 = vmatpush2.bf16.msra.mxu0 %v1526
      %1739 = vmatprep.subr.bf16.mxu0 %v1525
      %1740 = vmatpush2.bf16.msra.mxu0 %v1524
      %1741 = vmatprep.mubr.bf16.mxu0 %v1077
      %1742 = vmatmul.mubr.bf16.gmra.mxu0 %v1076
      %v1743 = vpop.f32.mrf.mxu0
      %v1744 = vadd.f32 %v1703, %v1743
      %v1745 = vpop.f32.mrf.mxu0
      %v1746 = vadd.f32 %v1705, %v1745
      %v1747 = vpop.f32.mrf.mxu0
      %v1748 = vpop.f32.mrf.mxu0
      %1749 = vdwg.mxu0
      %1750 = vmatprep.subr.bf16.mxu0 %v1555
      %1751 = vmatpush1.bf16.msra.mxu0 %v1554
      %1752 = vmatprep.subr.bf16.mxu0 %v1553
      %1753 = vmatpush1.bf16.msra.mxu0 %v1552
      %1754 = vmatprep.subr.bf16.mxu0 %v1551
      %1755 = vmatpush1.bf16.msra.mxu0 %v1550
      %1756 = vmatprep.subr.bf16.mxu0 %v1549
      %1757 = vmatpush1.bf16.msra.mxu0 %v1548
      %1758 = vmatprep.subr.bf16.mxu0 %v1547
      %1759 = vmatpush1.bf16.msra.mxu0 %v1546
      %1760 = vmatprep.subr.bf16.mxu0 %v1545
      %1761 = vmatpush1.bf16.msra.mxu0 %v1544
      %1762 = vmatprep.subr.bf16.mxu0 %v1543
      %1763 = vmatpush1.bf16.msra.mxu0 %v1542
      %1764 = vmatprep.subr.bf16.mxu0 %v1541
      %1765 = vmatpush1.bf16.msra.mxu0 %v1540
      %1766 = vmatprep.subr.bf16.mxu0 %v1571
      %1767 = vmatpush2.bf16.msra.mxu0 %v1570
      %1768 = vmatprep.subr.bf16.mxu0 %v1569
      %1769 = vmatpush2.bf16.msra.mxu0 %v1568
      %1770 = vmatprep.subr.bf16.mxu0 %v1567
      %1771 = vmatpush2.bf16.msra.mxu0 %v1566
      %1772 = vmatprep.subr.bf16.mxu0 %v1565
      %1773 = vmatpush2.bf16.msra.mxu0 %v1564
      %1774 = vmatprep.subr.bf16.mxu0 %v1563
      %1775 = vmatpush2.bf16.msra.mxu0 %v1562
      %1776 = vmatprep.subr.bf16.mxu0 %v1561
      %1777 = vmatpush2.bf16.msra.mxu0 %v1560
      %1778 = vmatprep.subr.bf16.mxu0 %v1559
      %1779 = vmatpush2.bf16.msra.mxu0 %v1558
      %1780 = vmatprep.subr.bf16.mxu0 %v1557
      %1781 = vmatpush2.bf16.msra.mxu0 %v1556
      %1782 = vmatprep.mubr.bf16.mxu0 %v1079
      %1783 = vmatmul.mubr.bf16.gmra.mxu0 %v1078
      %v1784 = vpop.f32.mrf.mxu0
      %v1785 = vadd.f32 %v1744, %v1784
      %v1786 = vpop.f32.mrf.mxu0
      %v1787 = vadd.f32 %v1746, %v1786
      %v1788 = vpop.f32.mrf.mxu0
      %v1789 = vpop.f32.mrf.mxu0
      %1790 = vdwg.mxu0
      %v1791 = vadd.f32 %v1785, %v319
      %v1792 = vadd.f32 %v1787, %v321
      %v1793 = vpack.c.bf16 %v1791, %v1791
      %v1794 = vpack.c.bf16 %v1792, %v1792
      %v1797 = vunpack.c.l.b16 %v1793
      %v1798 = vunpack.c.l.b16 %v1794
      %v1799 = vpack.c.b16 %v1798, %v1797
      %1801 = vst [vmem:[%s224] sm:$0xff] %v1799
      %p1802 = scmp.lt.s32.totalorder %s16, 1
      %s1803 = scalar_select %p1802, %s16, 1
      %s1804 = smul.addr %s1803, 2
      %s1805 = smul.addr %s1804, 4
      %s1806 = scalar_lea.vmem %s5, %s1805
      // Predicated region
      $region41: #{dpcnn_forward.5} parent=39 // pred_check
        %p1807 = pneg %p144
      $region42: #{dpcnn_forward.5} parent=39 // pred_check_branch
        %1809 = sbr.rel (%p1807) target = $region44
      $region43: #{dpcnn_forward.5} parent=39 // pred_region
        _
      $region44: #{dpcnn_forward.5} parent=39 // pred_fallthru
        _
    $region40: #{dpcnn_forward.5} parent=5 // pred_fallthru
      _
    %p1810 = scmp.le.s32.totalorder 2, %s11
    // Predicated region
    $region45: #{dpcnn_forward.5} parent=5 // pred_check
      %p1811 = pneg %p1810
    $region46: #{dpcnn_forward.5} parent=5 // pred_check_branch
      %1813 = sbr.rel (%p1811) target = $region48
    $region47: #{dpcnn_forward.5} parent=5 // pred_region
      %s1814 = ssub.s32 %s11, 2
      // Predicated region
      $region49: #{dpcnn_forward.5} parent=47 // pred_check
        %p1815 = pneg %p150
      $region50: #{dpcnn_forward.5} parent=47 // pred_check_branch
        %1817 = sbr.rel (%p1815) target = $region52
      $region51: #{dpcnn_forward.5} parent=47 // pred_region
        %p1818 = scmp.lt.s32.totalorder %s17, 1
        %s1819 = scalar_select %p1818, %s17, 1
        %s1820 = smul.addr %s1819, 2
        %s1821 = smul.addr %s1820, 4
        %s1822 = scalar_lea.vmem %s5, %s1821
      $region52: #{dpcnn_forward.5} parent=47 // pred_fallthru
        _
    $region48: #{dpcnn_forward.5} parent=5 // pred_fallthru
      _
  $region6: #{dpcnn_forward.5} parent=0 // loop_footer
    %s15 = sadd.s32 1, %s11
  $region7: #{dpcnn_forward.5} parent=0 // loop_footer_branch
    %10 = sbr.rel target = $region3
  $region8: #{dpcnn_forward.5} parent=0 // loop_exit
    _

// kernel: dpcnn_forward.6
$region0: #{dpcnn_forward.6}
  #allocation0 [shape = 'u32[]', space=smem, size = 0x4, offset = 0x4, fixed_abs, tag = 'smem constant byte address 0x4 - core index']
  #allocation1 [shape = 'u32[144,128]{1,0:T(1,128)}', space=vmem, size = 0x12000, scoped, tag = 'internal scratch']
  %s0 = inlined_call_operand.vmem [shape: bf16[2,8,256], index: 0, kind: input, shape index: {}]
  %s1 = inlined_call_operand.vmem [shape: bf16[768,256], index: 1, kind: input, shape index: {}]
  %s2 = inlined_call_operand.vmem [shape: f32[1,256], index: 2, kind: input, shape index: {}]
  %s3 = inlined_call_operand.vmem [shape: bf16[768,256], index: 3, kind: input, shape index: {}]
  %s4 = inlined_call_operand.vmem [shape: f32[1,256], index: 4, kind: input, shape index: {}]
  %s5 = inlined_call_operand.vmem [shape: bf16[2,4,256], index: 5, kind: output, shape index: {}]
  %s6 = sld [smem:[#allocation0]]
  $region53: #{dpcnn_forward.6} parent=0
    _
  %s8 = ssub.s32 1, %s6
  %s9 = scalar_select 0, %s8, %s6
  loop: start=0, step=1, limit=4
  $region2: #{dpcnn_forward.6} parent=0 // loop_pre_header
    _
  $region3: #{dpcnn_forward.6} parent=0 // loop_header
    %s11 = sphi 0, %s15
    %p12 = scmp.ge.s32.totalorder %s11, 4
    %s21 = sphi 0, %s23
    %s24 = sphi 0, %s21
    %s25 = sphi 0, %s24
    %s41 = sphi 0, %s25
    %s45 = sphi 0, %s45
    %s47 = sphi 0, %s45
    %s48 = sphi 0, %s47
    %s62 = sphi 0, %s48
    %s66 = sphi 0, %s66
    %s68 = sphi 0, %s66
    %s69 = sphi 0, %s68
    %s83 = sphi 0, %s69
    %s87 = sphi 0, %s87
    %s89 = sphi 0, %s87
    %s90 = sphi 0, %s89
    %s104 = sphi 0, %s90
    %s108 = sphi 0, %s108
    %s110 = sphi 0, %s108
    %s111 = sphi 0, %s110
    %s125 = sphi 0, %s111
    %s131 = sphi 0, %s133
    %s134 = sphi 0, %s131
    %s135 = sphi 0, %s134
    %s151 = sphi 0, %s135
  $region4: #{dpcnn_forward.6} parent=0 // loop_header_branch
    %14 = sbr.rel (%p12) target = $region8
  $region5: #{dpcnn_forward.6} parent=0 // loop_body
    %s16 = ssub.s32 %s11, 1
    %s17 = ssub.s32 %s11, 2
    %s18 = sadd.s32 %s11, 1
    %s19 = ssub.s32 %s11, %s18
    %p20 = scmp.eq.s32.totalorder %s19, 0
    %s22 = sadd.s32 %s21, 1
    %s23 = scalar_select %p20, %s21, %s22
    %p26 = pneg %p20
    %p27 = scmp.eq.s32.totalorder %s11, 1
    %p28 = por %p26, %p27
    %p29 = scmp.ne.s32.totalorder %s21, %s24
    %p30 = scmp.eq.s32.totalorder %s11, 0
    %p31 = por %p29, %p30
    %p32 = scmp.ne.s32.totalorder %s21, %s24
    %p33 = scmp.eq.s32.totalorder %s16, 1
    %p34 = por %p32, %p33
    %p35 = scmp.ne.s32.totalorder %s24, %s25
    %p36 = scmp.eq.s32.totalorder %s16, 0
    %p37 = por %p35, %p36
    %p38 = scmp.ne.s32.totalorder %s24, %s25
    %p39 = scmp.eq.s32.totalorder %s17, 1
    %p40 = por %p38, %p39
    %p42 = scmp.ne.s32.totalorder %s25, %s41
    %p43 = scmp.eq.s32.totalorder %s17, 0
    %p44 = por %p42, %p43
    %s46 = sadd.s32 %s45, 1
    %p49 = scmp.eq.s32.totalorder %s11, 1
    %p50 = scmp.ne.s32.totalorder %s45, %s47
    %p51 = scmp.eq.s32.totalorder %s11, 0
    %p52 = por %p50, %p51
    %p53 = scmp.ne.s32.totalorder %s45, %s47
    %p54 = scmp.eq.s32.totalorder %s16, 1
    %p55 = por %p53, %p54
    %p56 = scmp.ne.s32.totalorder %s47, %s48
    %p57 = scmp.eq.s32.totalorder %s16, 0
    %p58 = por %p56, %p57
    %p59 = scmp.ne.s32.totalorder %s47, %s48
    %p60 = scmp.eq.s32.totalorder %s17, 1
    %p61 = por %p59, %p60
    %p63 = scmp.ne.s32.totalorder %s48, %s62
    %p64 = scmp.eq.s32.totalorder %s17, 0
    %p65 = por %p63, %p64
    %s67 = sadd.s32 %s66, 1
    %p70 = scmp.eq.s32.totalorder %s11, 1
    %p71 = scmp.ne.s32.totalorder %s66, %s68
    %p72 = scmp.eq.s32.totalorder %s11, 0
    %p73 = por %p71, %p72
    %p74 = scmp.ne.s32.totalorder %s66, %s68
    %p75 = scmp.eq.s32.totalorder %s16, 1
    %p76 = por %p74, %p75
    %p77 = scmp.ne.s32.totalorder %s68, %s69
    %p78 = scmp.eq.s32.totalorder %s16, 0
    %p79 = por %p77, %p78
    %p80 = scmp.ne.s32.totalorder %s68, %s69
    %p81 = scmp.eq.s32.totalorder %s17, 1
    %p82 = por %p80, %p81
    %p84 = scmp.ne.s32.totalorder %s69, %s83
    %p85 = scmp.eq.s32.totalorder %s17, 0
    %p86 = por %p84, %p85
    %s88 = sadd.s32 %s87, 1
    %p91 = scmp.eq.s32.totalorder %s11, 1
    %p92 = scmp.ne.s32.totalorder %s87, %s89
    %p93 = scmp.eq.s32.totalorder %s11, 0
    %p94 = por %p92, %p93
    %p95 = scmp.ne.s32.totalorder %s87, %s89
    %p96 = scmp.eq.s32.totalorder %s16, 1
    %p97 = por %p95, %p96
    %p98 = scmp.ne.s32.totalorder %s89, %s90
    %p99 = scmp.eq.s32.totalorder %s16, 0
    %p100 = por %p98, %p99
    %p101 = scmp.ne.s32.totalorder %s89, %s90
    %p102 = scmp.eq.s32.totalorder %s17, 1
    %p103 = por %p101, %p102
    %p105 = scmp.ne.s32.totalorder %s90, %s104
    %p106 = scmp.eq.s32.totalorder %s17, 0
    %p107 = por %p105, %p106
    %s109 = sadd.s32 %s108, 1
    %p112 = scmp.eq.s32.totalorder %s11, 1
    %p113 = scmp.ne.s32.totalorder %s108, %s110
    %p114 = scmp.eq.s32.totalorder %s11, 0
    %p115 = por %p113, %p114
    %p116 = scmp.ne.s32.totalorder %s108, %s110
    %p117 = scmp.eq.s32.totalorder %s16, 1
    %p118 = por %p116, %p117
    %p119 = scmp.ne.s32.totalorder %s110, %s111
    %p120 = scmp.eq.s32.totalorder %s16, 0
    %p121 = por %p119, %p120
    %p122 = scmp.ne.s32.totalorder %s110, %s111
    %p123 = scmp.eq.s32.totalorder %s17, 1
    %p124 = por %p122, %p123
    %p126 = scmp.ne.s32.totalorder %s111, %s125
    %p127 = scmp.eq.s32.totalorder %s17, 0
    %p128 = por %p126, %p127
    %s129 = ssub.s32 %s11, %s18
    %p130 = scmp.eq.s32.totalorder %s129, 0
    %s132 = sadd.s32 %s131, 1
    %s133 = scalar_select %p130, %s131, %s132
    %p136 = pneg %p130
    %p137 = scmp.eq.s32.totalorder %s11, 1
    %p138 = por %p136, %p137
    %p139 = scmp.ne.s32.totalorder %s131, %s134
    %p140 = scmp.eq.s32.totalorder %s11, 0
    %p141 = por %p139, %p140
    %p142 = scmp.ne.s32.totalorder %s131, %s134
    %p143 = scmp.eq.s32.totalorder %s16, 1
    %p144 = por %p142, %p143
    %p145 = scmp.ne.s32.totalorder %s134, %s135
    %p146 = scmp.eq.s32.totalorder %s16, 0
    %p147 = por %p145, %p146
    %p148 = scmp.ne.s32.totalorder %s134, %s135
    %p149 = scmp.eq.s32.totalorder %s17, 1
    %p150 = por %p148, %p149
    %p152 = scmp.ne.s32.totalorder %s135, %s151
    %p153 = scmp.eq.s32.totalorder %s17, 0
    %p154 = por %p152, %p153
    %p155 = scmp.le.s32.totalorder 1, %s11
    %p156 = scmp.lt.s32.totalorder %s11, 3
    %p157 = pnand %p155, %p156
    %p158 = pneg %p157
    // Predicated region
    $region9: #{dpcnn_forward.6} parent=5 // pred_check
      _
    $region10: #{dpcnn_forward.6} parent=5 // pred_check_branch
      %160 = sbr.rel (%p157) target = $region12
    $region11: #{dpcnn_forward.6} parent=5 // pred_region
      %s161 = ssub.s32 %s11, 1
      // Predicated region
      $region13: #{dpcnn_forward.6} parent=11 // pred_check
        %p162 = pneg %p58
      $region14: #{dpcnn_forward.6} parent=11 // pred_check_branch
        %164 = sbr.rel (%p162) target = $region16
      $region15: #{dpcnn_forward.6} parent=11 // pred_region
        _
      $region16: #{dpcnn_forward.6} parent=11 // pred_fallthru
        _
      // Predicated region
      $region17: #{dpcnn_forward.6} parent=11 // pred_check
        %p165 = pneg %p79
      $region18: #{dpcnn_forward.6} parent=11 // pred_check_branch
        %167 = sbr.rel (%p165) target = $region20
      $region19: #{dpcnn_forward.6} parent=11 // pred_region
        _
      $region20: #{dpcnn_forward.6} parent=11 // pred_fallthru
        _
      // Predicated region
      $region21: #{dpcnn_forward.6} parent=11 // pred_check
        %p168 = pneg %p100
      $region22: #{dpcnn_forward.6} parent=11 // pred_check_branch
        %170 = sbr.rel (%p168) target = $region24
      $region23: #{dpcnn_forward.6} parent=11 // pred_region
        _
      $region24: #{dpcnn_forward.6} parent=11 // pred_fallthru
        _
      // Predicated region
      $region25: #{dpcnn_forward.6} parent=11 // pred_check
        %p171 = pneg %p121
      $region26: #{dpcnn_forward.6} parent=11 // pred_check_branch
        %173 = sbr.rel (%p171) target = $region28
      $region27: #{dpcnn_forward.6} parent=11 // pred_region
        _
      $region28: #{dpcnn_forward.6} parent=11 // pred_fallthru
        _
    $region12: #{dpcnn_forward.6} parent=5 // pred_fallthru
      _
    %p174 = scmp.lt.s32.totalorder %s11, 2
    // Predicated region
    $region29: #{dpcnn_forward.6} parent=5 // pred_check
      %p175 = pneg %p174
    $region30: #{dpcnn_forward.6} parent=5 // pred_check_branch
      %177 = sbr.rel (%p175) target = $region32
    $region31: #{dpcnn_forward.6} parent=5 // pred_region
      // Predicated region
      $region33: #{dpcnn_forward.6} parent=31 // pred_check
        %p178 = pneg %p31
      $region34: #{dpcnn_forward.6} parent=31 // pred_check_branch
        %180 = sbr.rel (%p178) target = $region36
      $region35: #{dpcnn_forward.6} parent=31 // pred_region
        %p181 = scmp.lt.s32.totalorder %s11, 1
        %s182 = scalar_select %p181, %s11, 1
        %s183 = smul.addr %s182, 2
        %s184 = smul.addr %s183, 4
        %s185 = scalar_lea.vmem %s0, %s184
      $region36: #{dpcnn_forward.6} parent=31 // pred_fallthru
        _
    $region32: #{dpcnn_forward.6} parent=5 // pred_fallthru
      _
    %p186 = scmp.le.s32.totalorder 1, %s11
    %p187 = scmp.lt.s32.totalorder %s11, 3
    %p188 = pnand %p186, %p187
    %p189 = pneg %p188
    // Predicated region
    $region37: #{dpcnn_forward.6} parent=5 // pred_check
      _
    $region38: #{dpcnn_forward.6} parent=5 // pred_check_branch
      %191 = sbr.rel (%p188) target = $region40
    $region39: #{dpcnn_forward.6} parent=5 // pred_region
      %s192 = ssub.s32 %s11, 1
      %p193 = scmp.lt.s32.totalorder %s16, 1
      %s194 = scalar_select %p193, %s16, 1
      %s195 = smul.addr %s194, 2
      %s196 = smul.addr %s195, 4
      %s197 = scalar_lea.vmem %s0, %s196
      %p198 = pneg %p37
      %p199 = pneg %p34
      %p200 = pneg %p58
      %p201 = pneg %p55
      %p202 = pneg %p79
      %p203 = pneg %p76
      %p204 = pneg %p100
      %p205 = pneg %p97
      %p206 = pneg %p121
      %p207 = pneg %p118
      %p208 = pneg %p147
      %p209 = pneg %p144
      %p210 = scmp.lt.s32.totalorder %s16, 1
      %s211 = scalar_select %p210, %s16, 1
      %s212 = smul.addr %s211, 2
      %s213 = smul.addr %s212, 2
      %s214 = scalar_lea.vmem %s5, %s213
      %p215 = scmp.lt.s32.totalorder %s16, 1
      %s216 = scalar_select %p215, %s16, 1
      %s217 = smul.addr %s216, 2
      %s218 = smul.addr %s217, 4
      %s219 = scalar_lea.vmem %s0, %s218
      %p220 = scmp.lt.s32.totalorder %s16, 1
      %s221 = scalar_select %p220, %s16, 1
      %s222 = smul.addr %s221, 2
      %s223 = smul.addr %s222, 2
      %s224 = scalar_lea.vmem %s5, %s223
      %v226 = vld [vmem:[%s219] sm:$0xff]
      %v227 = vunpack.c.l.bf16 %v226
      %v228 = vunpack.c.h.bf16 %v226
      %v231 = vrot.slane %v227, 7
      %v232 = vrot.slane %v228, 7
      %vm235 = vcmask 1040384
      %v236 = vsel %vm235, %v227, %v231
      %v237 = vsel %vm235, %v228, %v232
      %v238 = vrot.slane %v227, 1
      %v239 = vrot.slane %v228, 1
      %vm242 = vcmask 1046528
      %v243 = vsel %vm242, %v238, %v227
      %v244 = vsel %vm242, %v239, %v228
      %v245 = vmax.f32 %v236, %v227
      %v246 = vmax.f32 %v237, %v228
      %v247 = vmax.f32 %v245, %v243
      %v248 = vmax.f32 %v246, %v244
      %v249 = vlaneseq
      %v250 = vshrl.u32 %v249, 7
      %v251 = vlaneseq
      %v252 = vand.u32 %v251, 127
      %v253 = vmul.u32 %v250, 2
      %vm254 = vcmp.eq.s32.totalorder %v252, %v253
      %v255 = vsel %vm254, 1.0, 0.0
      %v256 = vpack.c.bf16 %v255, %v255
      %v257 = vpack.c.bf16 %v247, %v247
      %v258 = vpack.c.bf16 %v248, %v248
      %vm259 = vcmask 64512
      %v261 = vsel %vm259, %v256, 0
      %vm263 = vcmask 1043456
      %v265 = vsel %vm263, %v257, 0
      %v268 = vsel %vm263, %v258, 0
      %270 = vmatprep.subr.bf16.mxu0 0
      %271 = vmatpush1.bf16.msra.mxu0 0
      %272 = vmatprep.subr.bf16.mxu0 0
      %273 = vmatpush1.bf16.msra.mxu0 0
      %274 = vmatprep.subr.bf16.mxu0 0
      %275 = vmatpush1.bf16.msra.mxu0 0
      %276 = vmatprep.subr.bf16.mxu0 0
      %277 = vmatpush1.bf16.msra.mxu0 0
      %278 = vmatprep.subr.bf16.mxu0 0
      %279 = vmatpush1.bf16.msra.mxu0 0
      %280 = vmatprep.subr.bf16.mxu0 0
      %281 = vmatpush1.bf16.msra.mxu0 0
      %282 = vmatprep.subr.bf16.mxu0 0
      %283 = vmatpush1.bf16.msra.mxu0 0
      %284 = vmatprep.subr.bf16.mxu0 %v268
      %285 = vmatpush1.bf16.msra.mxu0 %v265
      %286 = vmatprep.subr.bf16.mxu0 0
      %287 = vmatpush2.bf16.msra.mxu0 0
      %288 = vmatprep.subr.bf16.mxu0 0
      %289 = vmatpush2.bf16.msra.mxu0 0
      %290 = vmatprep.subr.bf16.mxu0 0
      %291 = vmatpush2.bf16.msra.mxu0 0
      %292 = vmatprep.subr.bf16.mxu0 0
      %293 = vmatpush2.bf16.msra.mxu0 0
      %294 = vmatprep.subr.bf16.mxu0 0
      %295 = vmatpush2.bf16.msra.mxu0 0
      %296 = vmatprep.subr.bf16.mxu0 0
      %297 = vmatpush2.bf16.msra.mxu0 0
      %298 = vmatprep.subr.bf16.mxu0 0
      %299 = vmatpush2.bf16.msra.mxu0 0
      %300 = vmatprep.subr.bf16.mxu0 0
      %301 = vmatpush2.bf16.msra.mxu0 0
      %302 = vmatprep.mubr.bf16.mxu0 0
      %303 = vmatmul.mubr.bf16.gmra.mxu0 %v261
      %v304 = vpop.f32.mrf.mxu0
      %v305 = vadd.f32 0.0, %v304
      %v306 = vpop.f32.mrf.mxu0
      %v307 = vadd.f32 0.0, %v306
      %v308 = vpop.f32.mrf.mxu0
      %v309 = vpop.f32.mrf.mxu0
      %310 = vdwg.mxu0
      %v311 = vmax.f32 %v305, 0.0
      %v312 = vmax.f32 %v307, 0.0
      %v315 = vrot.slane %v311, 7
      %v316 = vrot.slane %v312, 7
      %v319 = vsel %vm235, 0.0, %v315
      %v320 = vsel %vm235, 0.0, %v316
      %v321 = vrot.slane %v311, 1
      %v322 = vrot.slane %v312, 1
      %vm325 = vcmask 1042432
      %v326 = vsel %vm325, %v321, 0.0
      %v327 = vsel %vm325, %v322, 0.0
      %v328 = vpack.c.bf16 %v319, %v319
      %v329 = vpack.c.bf16 %v320, %v320
      %v330 = vpack.c.bf16 %v311, %v311
      %v331 = vpack.c.bf16 %v312, %v312
      %v332 = vpack.c.bf16 %v326, %v326
      %v333 = vpack.c.bf16 %v327, %v327
      %v334 = vld [vmem:[%s1] sm:$0xff]
      %v335 = vld [vmem:[%s1 + $0x8] sm:$0xff]
      %v336 = vld [vmem:[%s1 + $0x10] sm:$0xff]
      %v337 = vld [vmem:[%s1 + $0x18] sm:$0xff]
      %v338 = vld [vmem:[%s1 + $0x20] sm:$0xff]
      %v339 = vld [vmem:[%s1 + $0x28] sm:$0xff]
      %v340 = vld [vmem:[%s1 + $0x30] sm:$0xff]
      %v341 = vld [vmem:[%s1 + $0x38] sm:$0xff]
      %v342 = vld [vmem:[%s1 + $0x40] sm:$0xff]
      %v343 = vld [vmem:[%s1 + $0x48] sm:$0xff]
      %v344 = vld [vmem:[%s1 + $0x50] sm:$0xff]
      %v345 = vld [vmem:[%s1 + $0x58] sm:$0xff]
      %v346 = vld [vmem:[%s1 + $0x60] sm:$0xff]
      %v347 = vld [vmem:[%s1 + $0x68] sm:$0xff]
      %v348 = vld [vmem:[%s1 + $0x70] sm:$0xff]
      %v349 = vld [vmem:[%s1 + $0x78] sm:$0xff]
      %v350 = vld [vmem:[%s1 + $0x80] sm:$0xff]
      %v351 = vld [vmem:[%s1 + $0x88] sm:$0xff]
      %v352 = vld [vmem:[%s1 + $0x90] sm:$0xff]
      %v353 = vld [vmem:[%s1 + $0x98] sm:$0xff]
      %v354 = vld [vmem:[%s1 + $0xa0] sm:$0xff]
      %v355 = vld [vmem:[%s1 + $0xa8] sm:$0xff]
      %v356 = vld [vmem:[%s1 + $0xb0] sm:$0xff]
      %v357 = vld [vmem:[%s1 + $0xb8] sm:$0xff]
      %v358 = vld [vmem:[%s1 + $0xc0] sm:$0xff]
      %v359 = vld [vmem:[%s1 + $0xc8] sm:$0xff]
      %v360 = vld [vmem:[%s1 + $0xd0] sm:$0xff]
      %v361 = vld [vmem:[%s1 + $0xd8] sm:$0xff]
      %v362 = vld [vmem:[%s1 + $0xe0] sm:$0xff]
      %v363 = vld [vmem:[%s1 + $0xe8] sm:$0xff]
      %v364 = vld [vmem:[%s1 + $0xf0] sm:$0xff]
      %v365 = vld [vmem:[%s1 + $0xf8] sm:$0xff]
      %v366 = vld [vmem:[%s1 + $0x100] sm:$0xff]
      %v367 = vld [vmem:[%s1 + $0x108] sm:$0xff]
      %v368 = vld [vmem:[%s1 + $0x110] sm:$0xff]
      %v369 = vld [vmem:[%s1 + $0x118] sm:$0xff]
      %v370 = vld [vmem:[%s1 + $0x120] sm:$0xff]
      %v371 = vld [vmem:[%s1 + $0x128] sm:$0xff]
      %v372 = vld [vmem:[%s1 + $0x130] sm:$0xff]
      %v373 = vld [vmem:[%s1 + $0x138] sm:$0xff]
      %v374 = vld [vmem:[%s1 + $0x140] sm:$0xff]
      %v375 = vld [vmem:[%s1 + $0x148] sm:$0xff]
      %v376 = vld [vmem:[%s1 + $0x150] sm:$0xff]
      %v377 = vld [vmem:[%s1 + $0x158] sm:$0xff]
      %v378 = vld [vmem:[%s1 + $0x160] sm:$0xff]
      %v379 = vld [vmem:[%s1 + $0x168] sm:$0xff]
      %v380 = vld [vmem:[%s1 + $0x170] sm:$0xff]
      %v381 = vld [vmem:[%s1 + $0x178] sm:$0xff]
      %v382 = vld [vmem:[%s1 + $0x180] sm:$0xff]
      %v383 = vld [vmem:[%s1 + $0x188] sm:$0xff]
      %v384 = vld [vmem:[%s1 + $0x190] sm:$0xff]
      %v385 = vld [vmem:[%s1 + $0x198] sm:$0xff]
      %v386 = vld [vmem:[%s1 + $0x1a0] sm:$0xff]
      %v387 = vld [vmem:[%s1 + $0x1a8] sm:$0xff]
      %v388 = vld [vmem:[%s1 + $0x1b0] sm:$0xff]
      %v389 = vld [vmem:[%s1 + $0x1b8] sm:$0xff]
      %v390 = vld [vmem:[%s1 + $0x1c0] sm:$0xff]
      %v391 = vld [vmem:[%s1 + $0x1c8] sm:$0xff]
      %v392 = vld [vmem:[%s1 + $0x1d0] sm:$0xff]
      %v393 = vld [vmem:[%s1 + $0x1d8] sm:$0xff]
      %v394 = vld [vmem:[%s1 + $0x1e0] sm:$0xff]
      %v395 = vld [vmem:[%s1 + $0x1e8] sm:$0xff]
      %v396 = vld [vmem:[%s1 + $0x1f0] sm:$0xff]
      %v397 = vld [vmem:[%s1 + $0x1f8] sm:$0xff]
      %v398 = vld [vmem:[%s1 + $0x200] sm:$0xff]
      %v399 = vld [vmem:[%s1 + $0x208] sm:$0xff]
      %v400 = vld [vmem:[%s1 + $0x210] sm:$0xff]
      %v401 = vld [vmem:[%s1 + $0x218] sm:$0xff]
      %v402 = vld [vmem:[%s1 + $0x220] sm:$0xff]
      %v403 = vld [vmem:[%s1 + $0x228] sm:$0xff]
      %v404 = vld [vmem:[%s1 + $0x230] sm:$0xff]
      %v405 = vld [vmem:[%s1 + $0x238] sm:$0xff]
      %v406 = vld [vmem:[%s1 + $0x240] sm:$0xff]
      %v407 = vld [vmem:[%s1 + $0x248] sm:$0xff]
      %v408 = vld [vmem:[%s1 + $0x250] sm:$0xff]
      %v409 = vld [vmem:[%s1 + $0x258] sm:$0xff]
      %v410 = vld [vmem:[%s1 + $0x260] sm:$0xff]
      %v411 = vld [vmem:[%s1 + $0x268] sm:$0xff]
      %v412 = vld [vmem:[%s1 + $0x270] sm:$0xff]
      %v413 = vld [vmem:[%s1 + $0x278] sm:$0xff]
      %v414 = vld [vmem:[%s1 + $0x280] sm:$0xff]
      %v415 = vld [vmem:[%s1 + $0x288] sm:$0xff]
      %v416 = vld [vmem:[%s1 + $0x290] sm:$0xff]
      %v417 = vld [vmem:[%s1 + $0x298] sm:$0xff]
      %v418 = vld [vmem:[%s1 + $0x2a0] sm:$0xff]
      %v419 = vld [vmem:[%s1 + $0x2a8] sm:$0xff]
      %v420 = vld [vmem:[%s1 + $0x2b0] sm:$0xff]
      %v421 = vld [vmem:[%s1 + $0x2b8] sm:$0xff]
      %v422 = vld [vmem:[%s1 + $0x2c0] sm:$0xff]
      %v423 = vld [vmem:[%s1 + $0x2c8] sm:$0xff]
      %v424 = vld [vmem:[%s1 + $0x2d0] sm:$0xff]
      %v425 = vld [vmem:[%s1 + $0x2d8] sm:$0xff]
      %v426 = vld [vmem:[%s1 + $0x2e0] sm:$0xff]
      %v427 = vld [vmem:[%s1 + $0x2e8] sm:$0xff]
      %v428 = vld [vmem:[%s1 + $0x2f0] sm:$0xff]
      %v429 = vld [vmem:[%s1 + $0x2f8] sm:$0xff]
      %v430 = vld [vmem:[%s2] sm:$0x3]
      %v432 = vlaneseq
      %v433 = vshrl.u32 %v432, 7
      %v434 = vsub.s32 0, %v433
      %v435 = vrot.slane %v430, %v434
      %v436 = vlaneseq
      %v437 = vshrl.u32 %v436, 7
      %v438 = vsub.s32 1, %v437
      %v439 = vrot.slane %v430, %v438
      %v538 = vunpack.c.l.b16 %v334
      %v539 = vunpack.c.h.b16 %v334
      %v540 = vunpack.c.l.b16 %v335
      %v541 = vunpack.c.h.b16 %v335
      %v542 = vunpack.c.l.b16 %v336
      %v543 = vunpack.c.h.b16 %v336
      %v544 = vunpack.c.l.b16 %v337
      %v545 = vunpack.c.h.b16 %v337
      %v546 = vunpack.c.l.b16 %v338
      %v547 = vunpack.c.h.b16 %v338
      %v548 = vunpack.c.l.b16 %v339
      %v549 = vunpack.c.h.b16 %v339
      %v550 = vunpack.c.l.b16 %v340
      %v551 = vunpack.c.h.b16 %v340
      %v552 = vunpack.c.l.b16 %v341
      %v553 = vunpack.c.h.b16 %v341
      %v554 = vunpack.c.l.b16 %v342
      %v555 = vunpack.c.h.b16 %v342
      %v556 = vunpack.c.l.b16 %v343
      %v557 = vunpack.c.h.b16 %v343
      %v558 = vunpack.c.l.b16 %v344
      %v559 = vunpack.c.h.b16 %v344
      %v560 = vunpack.c.l.b16 %v345
      %v561 = vunpack.c.h.b16 %v345
      %v562 = vunpack.c.l.b16 %v346
      %v563 = vunpack.c.h.b16 %v346
      %v564 = vunpack.c.l.b16 %v347
      %v565 = vunpack.c.h.b16 %v347
      %v566 = vunpack.c.l.b16 %v348
      %v567 = vunpack.c.h.b16 %v348
      %v568 = vunpack.c.l.b16 %v349
      %v569 = vunpack.c.h.b16 %v349
      %v570 = vunpack.c.l.b16 %v350
      %v571 = vunpack.c.h.b16 %v350
      %v572 = vunpack.c.l.b16 %v351
      %v573 = vunpack.c.h.b16 %v351
      %v574 = vunpack.c.l.b16 %v352
      %v575 = vunpack.c.h.b16 %v352
      %v576 = vunpack.c.l.b16 %v353
      %v577 = vunpack.c.h.b16 %v353
      %v578 = vunpack.c.l.b16 %v354
      %v579 = vunpack.c.h.b16 %v354
      %v580 = vunpack.c.l.b16 %v355
      %v581 = vunpack.c.h.b16 %v355
      %v582 = vunpack.c.l.b16 %v356
      %v583 = vunpack.c.h.b16 %v356
      %v584 = vunpack.c.l.b16 %v357
      %v585 = vunpack.c.h.b16 %v357
      %v586 = vunpack.c.l.b16 %v358
      %v587 = vunpack.c.h.b16 %v358
      %v588 = vunpack.c.l.b16 %v359
      %v589 = vunpack.c.h.b16 %v359
      %v590 = vunpack.c.l.b16 %v360
      %v591 = vunpack.c.h.b16 %v360
      %v592 = vunpack.c.l.b16 %v361
      %v593 = vunpack.c.h.b16 %v361
      %v594 = vunpack.c.l.b16 %v362
      %v595 = vunpack.c.h.b16 %v362
      %v596 = vunpack.c.l.b16 %v363
      %v597 = vunpack.c.h.b16 %v363
      %v598 = vunpack.c.l.b16 %v364
      %v599 = vunpack.c.h.b16 %v364
      %v600 = vunpack.c.l.b16 %v365
      %v601 = vunpack.c.h.b16 %v365
      %v602 = vunpack.c.l.b16 %v366
      %v603 = vunpack.c.h.b16 %v366
      %v604 = vunpack.c.l.b16 %v367
      %v605 = vunpack.c.h.b16 %v367
      %v606 = vunpack.c.l.b16 %v368
      %v607 = vunpack.c.h.b16 %v368
      %v608 = vunpack.c.l.b16 %v369
      %v609 = vunpack.c.h.b16 %v369
      %v610 = vunpack.c.l.b16 %v370
      %v611 = vunpack.c.h.b16 %v370
      %v612 = vunpack.c.l.b16 %v371
      %v613 = vunpack.c.h.b16 %v371
      %v614 = vunpack.c.l.b16 %v372
      %v615 = vunpack.c.h.b16 %v372
      %v616 = vunpack.c.l.b16 %v373
      %v617 = vunpack.c.h.b16 %v373
      %v618 = vunpack.c.l.b16 %v374
      %v619 = vunpack.c.h.b16 %v374
      %v620 = vunpack.c.l.b16 %v375
      %v621 = vunpack.c.h.b16 %v375
      %v622 = vunpack.c.l.b16 %v376
      %v623 = vunpack.c.h.b16 %v376
      %v624 = vunpack.c.l.b16 %v377
      %v625 = vunpack.c.h.b16 %v377
      %v626 = vunpack.c.l.b16 %v378
      %v627 = vunpack.c.h.b16 %v378
      %v628 = vunpack.c.l.b16 %v379
      %v629 = vunpack.c.h.b16 %v379
      %v630 = vunpack.c.l.b16 %v380
      %v631 = vunpack.c.h.b16 %v380
      %v632 = vunpack.c.l.b16 %v381
      %v633 = vunpack.c.h.b16 %v381
      %v634 = vunpack.c.l.b16 %v382
      %v635 = vunpack.c.h.b16 %v382
      %v636 = vunpack.c.l.b16 %v383
      %v637 = vunpack.c.h.b16 %v383
      %v638 = vunpack.c.l.b16 %v384
      %v639 = vunpack.c.h.b16 %v384
      %v640 = vunpack.c.l.b16 %v385
      %v641 = vunpack.c.h.b16 %v385
      %v642 = vunpack.c.l.b16 %v386
      %v643 = vunpack.c.h.b16 %v386
      %v644 = vunpack.c.l.b16 %v387
      %v645 = vunpack.c.h.b16 %v387
      %v646 = vunpack.c.l.b16 %v388
      %v647 = vunpack.c.h.b16 %v388
      %v648 = vunpack.c.l.b16 %v389
      %v649 = vunpack.c.h.b16 %v389
      %v650 = vunpack.c.l.b16 %v390
      %v651 = vunpack.c.h.b16 %v390
      %v652 = vunpack.c.l.b16 %v391
      %v653 = vunpack.c.h.b16 %v391
      %v654 = vunpack.c.l.b16 %v392
      %v655 = vunpack.c.h.b16 %v392
      %v656 = vunpack.c.l.b16 %v393
      %v657 = vunpack.c.h.b16 %v393
      %v658 = vunpack.c.l.b16 %v394
      %v659 = vunpack.c.h.b16 %v394
      %v660 = vunpack.c.l.b16 %v395
      %v661 = vunpack.c.h.b16 %v395
      %v662 = vunpack.c.l.b16 %v396
      %v663 = vunpack.c.h.b16 %v396
      %v664 = vunpack.c.l.b16 %v397
      %v665 = vunpack.c.h.b16 %v397
      %v666 = vunpack.c.l.b16 %v398
      %v667 = vunpack.c.h.b16 %v398
      %v668 = vunpack.c.l.b16 %v399
      %v669 = vunpack.c.h.b16 %v399
      %v670 = vunpack.c.l.b16 %v400
      %v671 = vunpack.c.h.b16 %v400
      %v672 = vunpack.c.l.b16 %v401
      %v673 = vunpack.c.h.b16 %v401
      %v674 = vunpack.c.l.b16 %v402
      %v675 = vunpack.c.h.b16 %v402
      %v676 = vunpack.c.l.b16 %v403
      %v677 = vunpack.c.h.b16 %v403
      %v678 = vunpack.c.l.b16 %v404
      %v679 = vunpack.c.h.b16 %v404
      %v680 = vunpack.c.l.b16 %v405
      %v681 = vunpack.c.h.b16 %v405
      %v682 = vunpack.c.l.b16 %v406
      %v683 = vunpack.c.h.b16 %v406
      %v684 = vunpack.c.l.b16 %v407
      %v685 = vunpack.c.h.b16 %v407
      %v686 = vunpack.c.l.b16 %v408
      %v687 = vunpack.c.h.b16 %v408
      %v688 = vunpack.c.l.b16 %v409
      %v689 = vunpack.c.h.b16 %v409
      %v690 = vunpack.c.l.b16 %v410
      %v691 = vunpack.c.h.b16 %v410
      %v692 = vunpack.c.l.b16 %v411
      %v693 = vunpack.c.h.b16 %v411
      %v694 = vunpack.c.l.b16 %v412
      %v695 = vunpack.c.h.b16 %v412
      %v696 = vunpack.c.l.b16 %v413
      %v697 = vunpack.c.h.b16 %v413
      %v698 = vunpack.c.l.b16 %v414
      %v699 = vunpack.c.h.b16 %v414
      %v700 = vunpack.c.l.b16 %v415
      %v701 = vunpack.c.h.b16 %v415
      %v702 = vunpack.c.l.b16 %v416
      %v703 = vunpack.c.h.b16 %v416
      %v704 = vunpack.c.l.b16 %v417
      %v705 = vunpack.c.h.b16 %v417
      %v706 = vunpack.c.l.b16 %v418
      %v707 = vunpack.c.h.b16 %v418
      %v708 = vunpack.c.l.b16 %v419
      %v709 = vunpack.c.h.b16 %v419
      %v710 = vunpack.c.l.b16 %v420
      %v711 = vunpack.c.h.b16 %v420
      %v712 = vunpack.c.l.b16 %v421
      %v713 = vunpack.c.h.b16 %v421
      %v714 = vunpack.c.l.b16 %v422
      %v715 = vunpack.c.h.b16 %v422
      %v716 = vunpack.c.l.b16 %v423
      %v717 = vunpack.c.h.b16 %v423
      %v718 = vunpack.c.l.b16 %v424
      %v719 = vunpack.c.h.b16 %v424
      %v720 = vunpack.c.l.b16 %v425
      %v721 = vunpack.c.h.b16 %v425
      %v722 = vunpack.c.l.b16 %v426
      %v723 = vunpack.c.h.b16 %v426
      %v724 = vunpack.c.l.b16 %v427
      %v725 = vunpack.c.h.b16 %v427
      %v726 = vunpack.c.l.b16 %v428
      %v727 = vunpack.c.h.b16 %v428
      %v728 = vunpack.c.l.b16 %v429
      %v729 = vunpack.c.h.b16 %v429
      %v730 = vpack.c.b16 %v540, %v538
      %v731 = vpack.c.b16 %v541, %v539
      %v732 = vpack.c.b16 %v544, %v542
      %v733 = vpack.c.b16 %v545, %v543
      %v734 = vpack.c.b16 %v548, %v546
      %v735 = vpack.c.b16 %v549, %v547
      %v736 = vpack.c.b16 %v552, %v550
      %v737 = vpack.c.b16 %v553, %v551
      %v738 = vpack.c.b16 %v556, %v554
      %v739 = vpack.c.b16 %v557, %v555
      %v740 = vpack.c.b16 %v560, %v558
      %v741 = vpack.c.b16 %v561, %v559
      %v742 = vpack.c.b16 %v564, %v562
      %v743 = vpack.c.b16 %v565, %v563
      %v744 = vpack.c.b16 %v568, %v566
      %v745 = vpack.c.b16 %v569, %v567
      %v746 = vpack.c.b16 %v572, %v570
      %v747 = vpack.c.b16 %v573, %v571
      %v748 = vpack.c.b16 %v576, %v574
      %v749 = vpack.c.b16 %v577, %v575
      %v750 = vpack.c.b16 %v580, %v578
      %v751 = vpack.c.b16 %v581, %v579
      %v752 = vpack.c.b16 %v584, %v582
      %v753 = vpack.c.b16 %v585, %v583
      %v754 = vpack.c.b16 %v588, %v586
      %v755 = vpack.c.b16 %v589, %v587
      %v756 = vpack.c.b16 %v592, %v590
      %v757 = vpack.c.b16 %v593, %v591
      %v758 = vpack.c.b16 %v596, %v594
      %v759 = vpack.c.b16 %v597, %v595
      %v760 = vpack.c.b16 %v600, %v598
      %v761 = vpack.c.b16 %v601, %v599
      %v762 = vpack.c.b16 %v604, %v602
      %v763 = vpack.c.b16 %v605, %v603
      %v764 = vpack.c.b16 %v608, %v606
      %v765 = vpack.c.b16 %v609, %v607
      %v766 = vpack.c.b16 %v612, %v610
      %v767 = vpack.c.b16 %v613, %v611
      %v768 = vpack.c.b16 %v616, %v614
      %v769 = vpack.c.b16 %v617, %v615
      %v770 = vpack.c.b16 %v620, %v618
      %v771 = vpack.c.b16 %v621, %v619
      %v772 = vpack.c.b16 %v624, %v622
      %v773 = vpack.c.b16 %v625, %v623
      %v774 = vpack.c.b16 %v628, %v626
      %v775 = vpack.c.b16 %v629, %v627
      %v776 = vpack.c.b16 %v632, %v630
      %v777 = vpack.c.b16 %v633, %v631
      %v778 = vpack.c.b16 %v636, %v634
      %v779 = vpack.c.b16 %v637, %v635
      %v780 = vpack.c.b16 %v640, %v638
      %v781 = vpack.c.b16 %v641, %v639
      %v782 = vpack.c.b16 %v644, %v642
      %v783 = vpack.c.b16 %v645, %v643
      %v784 = vpack.c.b16 %v648, %v646
      %v785 = vpack.c.b16 %v649, %v647
      %v786 = vpack.c.b16 %v652, %v650
      %v787 = vpack.c.b16 %v653, %v651
      %v788 = vpack.c.b16 %v656, %v654
      %v789 = vpack.c.b16 %v657, %v655
      %v790 = vpack.c.b16 %v660, %v658
      %v791 = vpack.c.b16 %v661, %v659
      %v792 = vpack.c.b16 %v664, %v662
      %v793 = vpack.c.b16 %v665, %v663
      %v794 = vpack.c.b16 %v668, %v666
      %v795 = vpack.c.b16 %v669, %v667
      %v796 = vpack.c.b16 %v672, %v670
      %v797 = vpack.c.b16 %v673, %v671
      %v798 = vpack.c.b16 %v676, %v674
      %v799 = vpack.c.b16 %v677, %v675
      %v800 = vpack.c.b16 %v680, %v678
      %v801 = vpack.c.b16 %v681, %v679
      %v802 = vpack.c.b16 %v684, %v682
      %v803 = vpack.c.b16 %v685, %v683
      %v804 = vpack.c.b16 %v688, %v686
      %v805 = vpack.c.b16 %v689, %v687
      %v806 = vpack.c.b16 %v692, %v690
      %v807 = vpack.c.b16 %v693, %v691
      %v808 = vpack.c.b16 %v696, %v694
      %v809 = vpack.c.b16 %v697, %v695
      %v810 = vpack.c.b16 %v700, %v698
      %v811 = vpack.c.b16 %v701, %v699
      %v812 = vpack.c.b16 %v704, %v702
      %v813 = vpack.c.b16 %v705, %v703
      %v814 = vpack.c.b16 %v708, %v706
      %v815 = vpack.c.b16 %v709, %v707
      %v816 = vpack.c.b16 %v712, %v710
      %v817 = vpack.c.b16 %v713, %v711
      %v818 = vpack.c.b16 %v716, %v714
      %v819 = vpack.c.b16 %v717, %v715
      %v820 = vpack.c.b16 %v720, %v718
      %v821 = vpack.c.b16 %v721, %v719
      %v822 = vpack.c.b16 %v724, %v722
      %v823 = vpack.c.b16 %v725, %v723
      %v824 = vpack.c.b16 %v728, %v726
      %v825 = vpack.c.b16 %v729, %v727
      %922 = vmatprep.subr.bf16.mxu0 %v745
      %923 = vmatpush1.bf16.msra.mxu0 %v744
      %924 = vmatprep.subr.bf16.mxu0 %v743
      %925 = vmatpush1.bf16.msra.mxu0 %v742
      %926 = vmatprep.subr.bf16.mxu0 %v741
      %927 = vmatpush1.bf16.msra.mxu0 %v740
      %928 = vmatprep.subr.bf16.mxu0 %v739
      %929 = vmatpush1.bf16.msra.mxu0 %v738
      %930 = vmatprep.subr.bf16.mxu0 %v737
      %931 = vmatpush1.bf16.msra.mxu0 %v736
      %932 = vmatprep.subr.bf16.mxu0 %v735
      %933 = vmatpush1.bf16.msra.mxu0 %v734
      %934 = vmatprep.subr.bf16.mxu0 %v733
      %935 = vmatpush1.bf16.msra.mxu0 %v732
      %936 = vmatprep.subr.bf16.mxu0 %v731
      %937 = vmatpush1.bf16.msra.mxu0 %v730
      %938 = vmatprep.subr.bf16.mxu0 %v761
      %939 = vmatpush2.bf16.msra.mxu0 %v760
      %940 = vmatprep.subr.bf16.mxu0 %v759
      %941 = vmatpush2.bf16.msra.mxu0 %v758
      %942 = vmatprep.subr.bf16.mxu0 %v757
      %943 = vmatpush2.bf16.msra.mxu0 %v756
      %944 = vmatprep.subr.bf16.mxu0 %v755
      %945 = vmatpush2.bf16.msra.mxu0 %v754
      %946 = vmatprep.subr.bf16.mxu0 %v753
      %947 = vmatpush2.bf16.msra.mxu0 %v752
      %948 = vmatprep.subr.bf16.mxu0 %v751
      %949 = vmatpush2.bf16.msra.mxu0 %v750
      %950 = vmatprep.subr.bf16.mxu0 %v749
      %951 = vmatpush2.bf16.msra.mxu0 %v748
      %952 = vmatprep.subr.bf16.mxu0 %v747
      %953 = vmatpush2.bf16.msra.mxu0 %v746
      %954 = vmatprep.mubr.bf16.mxu0 %v329
      %955 = vmatmul.mubr.bf16.gmra.mxu0 %v328
      %v956 = vpop.f32.mrf.mxu0
      %v957 = vadd.f32 %v435, %v956
      %v958 = vpop.f32.mrf.mxu0
      %v959 = vadd.f32 %v439, %v958
      %v960 = vpop.f32.mrf.mxu0
      %v961 = vpop.f32.mrf.mxu0
      %962 = vdwg.mxu0
      %963 = vmatprep.subr.bf16.mxu0 %v777
      %964 = vmatpush1.bf16.msra.mxu0 %v776
      %965 = vmatprep.subr.bf16.mxu0 %v775
      %966 = vmatpush1.bf16.msra.mxu0 %v774
      %967 = vmatprep.subr.bf16.mxu0 %v773
      %968 = vmatpush1.bf16.msra.mxu0 %v772
      %969 = vmatprep.subr.bf16.mxu0 %v771
      %970 = vmatpush1.bf16.msra.mxu0 %v770
      %971 = vmatprep.subr.bf16.mxu0 %v769
      %972 = vmatpush1.bf16.msra.mxu0 %v768
      %973 = vmatprep.subr.bf16.mxu0 %v767
      %974 = vmatpush1.bf16.msra.mxu0 %v766
      %975 = vmatprep.subr.bf16.mxu0 %v765
      %976 = vmatpush1.bf16.msra.mxu0 %v764
      %977 = vmatprep.subr.bf16.mxu0 %v763
      %978 = vmatpush1.bf16.msra.mxu0 %v762
      %979 = vmatprep.subr.bf16.mxu0 %v793
      %980 = vmatpush2.bf16.msra.mxu0 %v792
      %981 = vmatprep.subr.bf16.mxu0 %v791
      %982 = vmatpush2.bf16.msra.mxu0 %v790
      %983 = vmatprep.subr.bf16.mxu0 %v789
      %984 = vmatpush2.bf16.msra.mxu0 %v788
      %985 = vmatprep.subr.bf16.mxu0 %v787
      %986 = vmatpush2.bf16.msra.mxu0 %v786
      %987 = vmatprep.subr.bf16.mxu0 %v785
      %988 = vmatpush2.bf16.msra.mxu0 %v784
      %989 = vmatprep.subr.bf16.mxu0 %v783
      %990 = vmatpush2.bf16.msra.mxu0 %v782
      %991 = vmatprep.subr.bf16.mxu0 %v781
      %992 = vmatpush2.bf16.msra.mxu0 %v780
      %993 = vmatprep.subr.bf16.mxu0 %v779
      %994 = vmatpush2.bf16.msra.mxu0 %v778
      %995 = vmatprep.mubr.bf16.mxu0 %v331
      %996 = vmatmul.mubr.bf16.gmra.mxu0 %v330
      %v997 = vpop.f32.mrf.mxu0
      %v998 = vadd.f32 %v957, %v997
      %v999 = vpop.f32.mrf.mxu0
      %v1000 = vadd.f32 %v959, %v999
      %v1001 = vpop.f32.mrf.mxu0
      %v1002 = vpop.f32.mrf.mxu0
      %1003 = vdwg.mxu0
      %1004 = vmatprep.subr.bf16.mxu0 %v809
      %1005 = vmatpush1.bf16.msra.mxu0 %v808
      %1006 = vmatprep.subr.bf16.mxu0 %v807
      %1007 = vmatpush1.bf16.msra.mxu0 %v806
      %1008 = vmatprep.subr.bf16.mxu0 %v805
      %1009 = vmatpush1.bf16.msra.mxu0 %v804
      %1010 = vmatprep.subr.bf16.mxu0 %v803
      %1011 = vmatpush1.bf16.msra.mxu0 %v802
      %1012 = vmatprep.subr.bf16.mxu0 %v801
      %1013 = vmatpush1.bf16.msra.mxu0 %v800
      %1014 = vmatprep.subr.bf16.mxu0 %v799
      %1015 = vmatpush1.bf16.msra.mxu0 %v798
      %1016 = vmatprep.subr.bf16.mxu0 %v797
      %1017 = vmatpush1.bf16.msra.mxu0 %v796
      %1018 = vmatprep.subr.bf16.mxu0 %v795
      %1019 = vmatpush1.bf16.msra.mxu0 %v794
      %1020 = vmatprep.subr.bf16.mxu0 %v825
      %1021 = vmatpush2.bf16.msra.mxu0 %v824
      %1022 = vmatprep.subr.bf16.mxu0 %v823
      %1023 = vmatpush2.bf16.msra.mxu0 %v822
      %1024 = vmatprep.subr.bf16.mxu0 %v821
      %1025 = vmatpush2.bf16.msra.mxu0 %v820
      %1026 = vmatprep.subr.bf16.mxu0 %v819
      %1027 = vmatpush2.bf16.msra.mxu0 %v818
      %1028 = vmatprep.subr.bf16.mxu0 %v817
      %1029 = vmatpush2.bf16.msra.mxu0 %v816
      %1030 = vmatprep.subr.bf16.mxu0 %v815
      %1031 = vmatpush2.bf16.msra.mxu0 %v814
      %1032 = vmatprep.subr.bf16.mxu0 %v813
      %1033 = vmatpush2.bf16.msra.mxu0 %v812
      %1034 = vmatprep.subr.bf16.mxu0 %v811
      %1035 = vmatpush2.bf16.msra.mxu0 %v810
      %1036 = vmatprep.mubr.bf16.mxu0 %v333
      %1037 = vmatmul.mubr.bf16.gmra.mxu0 %v332
      %v1038 = vpop.f32.mrf.mxu0
      %v1039 = vadd.f32 %v998, %v1038
      %v1040 = vpop.f32.mrf.mxu0
      %v1041 = vadd.f32 %v1000, %v1040
      %v1042 = vpop.f32.mrf.mxu0
      %v1043 = vpop.f32.mrf.mxu0
      %1044 = vdwg.mxu0
      %v1045 = vmax.f32 %v1039, 0.0
      %v1046 = vmax.f32 %v1041, 0.0
      %v1049 = vrot.slane %v1045, 7
      %v1050 = vrot.slane %v1046, 7
      %v1053 = vsel %vm235, 0.0, %v1049
      %v1054 = vsel %vm235, 0.0, %v1050
      %v1055 = vrot.slane %v1045, 1
      %v1056 = vrot.slane %v1046, 1
      %v1059 = vsel %vm325, %v1055, 0.0
      %v1060 = vsel %vm325, %v1056, 0.0
      %v1061 = vpack.c.bf16 %v1053, %v1053
      %v1062 = vpack.c.bf16 %v1054, %v1054
      %v1063 = vpack.c.bf16 %v1045, %v1045
      %v1064 = vpack.c.bf16 %v1046, %v1046
      %v1065 = vpack.c.bf16 %v1059, %v1059
      %v1066 = vpack.c.bf16 %v1060, %v1060
      %v1067 = vld [vmem:[%s3] sm:$0xff]
      %v1068 = vld [vmem:[%s3 + $0x8] sm:$0xff]
      %v1069 = vld [vmem:[%s3 + $0x10] sm:$0xff]
      %v1070 = vld [vmem:[%s3 + $0x18] sm:$0xff]
      %v1071 = vld [vmem:[%s3 + $0x20] sm:$0xff]
      %v1072 = vld [vmem:[%s3 + $0x28] sm:$0xff]
      %v1073 = vld [vmem:[%s3 + $0x30] sm:$0xff]
      %v1074 = vld [vmem:[%s3 + $0x38] sm:$0xff]
      %v1075 = vld [vmem:[%s3 + $0x40] sm:$0xff]
      %v1076 = vld [vmem:[%s3 + $0x48] sm:$0xff]
      %v1077 = vld [vmem:[%s3 + $0x50] sm:$0xff]
      %v1078 = vld [vmem:[%s3 + $0x58] sm:$0xff]
      %v1079 = vld [vmem:[%s3 + $0x60] sm:$0xff]
      %v1080 = vld [vmem:[%s3 + $0x68] sm:$0xff]
      %v1081 = vld [vmem:[%s3 + $0x70] sm:$0xff]
      %v1082 = vld [vmem:[%s3 + $0x78] sm:$0xff]
      %v1083 = vld [vmem:[%s3 + $0x80] sm:$0xff]
      %v1084 = vld [vmem:[%s3 + $0x88] sm:$0xff]
      %v1085 = vld [vmem:[%s3 + $0x90] sm:$0xff]
      %v1086 = vld [vmem:[%s3 + $0x98] sm:$0xff]
      %v1087 = vld [vmem:[%s3 + $0xa0] sm:$0xff]
      %v1088 = vld [vmem:[%s3 + $0xa8] sm:$0xff]
      %v1089 = vld [vmem:[%s3 + $0xb0] sm:$0xff]
      %v1090 = vld [vmem:[%s3 + $0xb8] sm:$0xff]
      %v1091 = vld [vmem:[%s3 + $0xc0] sm:$0xff]
      %v1092 = vld [vmem:[%s3 + $0xc8] sm:$0xff]
      %v1093 = vld [vmem:[%s3 + $0xd0] sm:$0xff]
      %v1094 = vld [vmem:[%s3 + $0xd8] sm:$0xff]
      %v1095 = vld [vmem:[%s3 + $0xe0] sm:$0xff]
      %v1096 = vld [vmem:[%s3 + $0xe8] sm:$0xff]
      %v1097 = vld [vmem:[%s3 + $0xf0] sm:$0xff]
      %v1098 = vld [vmem:[%s3 + $0xf8] sm:$0xff]
      %v1099 = vld [vmem:[%s3 + $0x100] sm:$0xff]
      %v1100 = vld [vmem:[%s3 + $0x108] sm:$0xff]
      %v1101 = vld [vmem:[%s3 + $0x110] sm:$0xff]
      %v1102 = vld [vmem:[%s3 + $0x118] sm:$0xff]
      %v1103 = vld [vmem:[%s3 + $0x120] sm:$0xff]
      %v1104 = vld [vmem:[%s3 + $0x128] sm:$0xff]
      %v1105 = vld [vmem:[%s3 + $0x130] sm:$0xff]
      %v1106 = vld [vmem:[%s3 + $0x138] sm:$0xff]
      %v1107 = vld [vmem:[%s3 + $0x140] sm:$0xff]
      %v1108 = vld [vmem:[%s3 + $0x148] sm:$0xff]
      %v1109 = vld [vmem:[%s3 + $0x150] sm:$0xff]
      %v1110 = vld [vmem:[%s3 + $0x158] sm:$0xff]
      %v1111 = vld [vmem:[%s3 + $0x160] sm:$0xff]
      %v1112 = vld [vmem:[%s3 + $0x168] sm:$0xff]
      %v1113 = vld [vmem:[%s3 + $0x170] sm:$0xff]
      %v1114 = vld [vmem:[%s3 + $0x178] sm:$0xff]
      %v1115 = vld [vmem:[%s3 + $0x180] sm:$0xff]
      %v1116 = vld [vmem:[%s3 + $0x188] sm:$0xff]
      %v1117 = vld [vmem:[%s3 + $0x190] sm:$0xff]
      %v1118 = vld [vmem:[%s3 + $0x198] sm:$0xff]
      %v1119 = vld [vmem:[%s3 + $0x1a0] sm:$0xff]
      %v1120 = vld [vmem:[%s3 + $0x1a8] sm:$0xff]
      %v1121 = vld [vmem:[%s3 + $0x1b0] sm:$0xff]
      %v1122 = vld [vmem:[%s3 + $0x1b8] sm:$0xff]
      %v1123 = vld [vmem:[%s3 + $0x1c0] sm:$0xff]
      %v1124 = vld [vmem:[%s3 + $0x1c8] sm:$0xff]
      %v1125 = vld [vmem:[%s3 + $0x1d0] sm:$0xff]
      %v1126 = vld [vmem:[%s3 + $0x1d8] sm:$0xff]
      %v1127 = vld [vmem:[%s3 + $0x1e0] sm:$0xff]
      %v1128 = vld [vmem:[%s3 + $0x1e8] sm:$0xff]
      %v1129 = vld [vmem:[%s3 + $0x1f0] sm:$0xff]
      %v1130 = vld [vmem:[%s3 + $0x1f8] sm:$0xff]
      %v1131 = vld [vmem:[%s3 + $0x200] sm:$0xff]
      %v1132 = vld [vmem:[%s3 + $0x208] sm:$0xff]
      %v1133 = vld [vmem:[%s3 + $0x210] sm:$0xff]
      %v1134 = vld [vmem:[%s3 + $0x218] sm:$0xff]
      %v1135 = vld [vmem:[%s3 + $0x220] sm:$0xff]
      %v1136 = vld [vmem:[%s3 + $0x228] sm:$0xff]
      %v1137 = vld [vmem:[%s3 + $0x230] sm:$0xff]
      %v1138 = vld [vmem:[%s3 + $0x238] sm:$0xff]
      %v1139 = vld [vmem:[%s3 + $0x240] sm:$0xff]
      %v1140 = vld [vmem:[%s3 + $0x248] sm:$0xff]
      %v1141 = vld [vmem:[%s3 + $0x250] sm:$0xff]
      %v1142 = vld [vmem:[%s3 + $0x258] sm:$0xff]
      %v1143 = vld [vmem:[%s3 + $0x260] sm:$0xff]
      %v1144 = vld [vmem:[%s3 + $0x268] sm:$0xff]
      %v1145 = vld [vmem:[%s3 + $0x270] sm:$0xff]
      %v1146 = vld [vmem:[%s3 + $0x278] sm:$0xff]
      %v1147 = vld [vmem:[%s3 + $0x280] sm:$0xff]
      %v1148 = vld [vmem:[%s3 + $0x288] sm:$0xff]
      %v1149 = vld [vmem:[%s3 + $0x290] sm:$0xff]
      %v1150 = vld [vmem:[%s3 + $0x298] sm:$0xff]
      %v1151 = vld [vmem:[%s3 + $0x2a0] sm:$0xff]
      %v1152 = vld [vmem:[%s3 + $0x2a8] sm:$0xff]
      %v1153 = vld [vmem:[%s3 + $0x2b0] sm:$0xff]
      %v1154 = vld [vmem:[%s3 + $0x2b8] sm:$0xff]
      %v1155 = vld [vmem:[%s3 + $0x2c0] sm:$0xff]
      %v1156 = vld [vmem:[%s3 + $0x2c8] sm:$0xff]
      %v1157 = vld [vmem:[%s3 + $0x2d0] sm:$0xff]
      %v1158 = vld [vmem:[%s3 + $0x2d8] sm:$0xff]
      %v1159 = vld [vmem:[%s3 + $0x2e0] sm:$0xff]
      %v1160 = vld [vmem:[%s3 + $0x2e8] sm:$0xff]
      %v1161 = vld [vmem:[%s3 + $0x2f0] sm:$0xff]
      %v1162 = vld [vmem:[%s3 + $0x2f8] sm:$0xff]
      %v1163 = vld [vmem:[%s4] sm:$0x3]
      %v1165 = vlaneseq
      %v1166 = vshrl.u32 %v1165, 7
      %v1167 = vsub.s32 0, %v1166
      %v1168 = vrot.slane %v1163, %v1167
      %v1169 = vlaneseq
      %v1170 = vshrl.u32 %v1169, 7
      %v1171 = vsub.s32 1, %v1170
      %v1172 = vrot.slane %v1163, %v1171
      %v1271 = vunpack.c.l.b16 %v1067
      %v1272 = vunpack.c.h.b16 %v1067
      %v1273 = vunpack.c.l.b16 %v1068
      %v1274 = vunpack.c.h.b16 %v1068
      %v1275 = vunpack.c.l.b16 %v1069
      %v1276 = vunpack.c.h.b16 %v1069
      %v1277 = vunpack.c.l.b16 %v1070
      %v1278 = vunpack.c.h.b16 %v1070
      %v1279 = vunpack.c.l.b16 %v1071
      %v1280 = vunpack.c.h.b16 %v1071
      %v1281 = vunpack.c.l.b16 %v1072
      %v1282 = vunpack.c.h.b16 %v1072
      %v1283 = vunpack.c.l.b16 %v1073
      %v1284 = vunpack.c.h.b16 %v1073
      %v1285 = vunpack.c.l.b16 %v1074
      %v1286 = vunpack.c.h.b16 %v1074
      %v1287 = vunpack.c.l.b16 %v1075
      %v1288 = vunpack.c.h.b16 %v1075
      %v1289 = vunpack.c.l.b16 %v1076
      %v1290 = vunpack.c.h.b16 %v1076
      %v1291 = vunpack.c.l.b16 %v1077
      %v1292 = vunpack.c.h.b16 %v1077
      %v1293 = vunpack.c.l.b16 %v1078
      %v1294 = vunpack.c.h.b16 %v1078
      %v1295 = vunpack.c.l.b16 %v1079
      %v1296 = vunpack.c.h.b16 %v1079
      %v1297 = vunpack.c.l.b16 %v1080
      %v1298 = vunpack.c.h.b16 %v1080
      %v1299 = vunpack.c.l.b16 %v1081
      %v1300 = vunpack.c.h.b16 %v1081
      %v1301 = vunpack.c.l.b16 %v1082
      %v1302 = vunpack.c.h.b16 %v1082
      %v1303 = vunpack.c.l.b16 %v1083
      %v1304 = vunpack.c.h.b16 %v1083
      %v1305 = vunpack.c.l.b16 %v1084
      %v1306 = vunpack.c.h.b16 %v1084
      %v1307 = vunpack.c.l.b16 %v1085
      %v1308 = vunpack.c.h.b16 %v1085
      %v1309 = vunpack.c.l.b16 %v1086
      %v1310 = vunpack.c.h.b16 %v1086
      %v1311 = vunpack.c.l.b16 %v1087
      %v1312 = vunpack.c.h.b16 %v1087
      %v1313 = vunpack.c.l.b16 %v1088
      %v1314 = vunpack.c.h.b16 %v1088
      %v1315 = vunpack.c.l.b16 %v1089
      %v1316 = vunpack.c.h.b16 %v1089
      %v1317 = vunpack.c.l.b16 %v1090
      %v1318 = vunpack.c.h.b16 %v1090
      %v1319 = vunpack.c.l.b16 %v1091
      %v1320 = vunpack.c.h.b16 %v1091
      %v1321 = vunpack.c.l.b16 %v1092
      %v1322 = vunpack.c.h.b16 %v1092
      %v1323 = vunpack.c.l.b16 %v1093
      %v1324 = vunpack.c.h.b16 %v1093
      %v1325 = vunpack.c.l.b16 %v1094
      %v1326 = vunpack.c.h.b16 %v1094
      %v1327 = vunpack.c.l.b16 %v1095
      %v1328 = vunpack.c.h.b16 %v1095
      %v1329 = vunpack.c.l.b16 %v1096
      %v1330 = vunpack.c.h.b16 %v1096
      %v1331 = vunpack.c.l.b16 %v1097
      %v1332 = vunpack.c.h.b16 %v1097
      %v1333 = vunpack.c.l.b16 %v1098
      %v1334 = vunpack.c.h.b16 %v1098
      %v1335 = vunpack.c.l.b16 %v1099
      %v1336 = vunpack.c.h.b16 %v1099
      %v1337 = vunpack.c.l.b16 %v1100
      %v1338 = vunpack.c.h.b16 %v1100
      %v1339 = vunpack.c.l.b16 %v1101
      %v1340 = vunpack.c.h.b16 %v1101
      %v1341 = vunpack.c.l.b16 %v1102
      %v1342 = vunpack.c.h.b16 %v1102
      %v1343 = vunpack.c.l.b16 %v1103
      %v1344 = vunpack.c.h.b16 %v1103
      %v1345 = vunpack.c.l.b16 %v1104
      %v1346 = vunpack.c.h.b16 %v1104
      %v1347 = vunpack.c.l.b16 %v1105
      %v1348 = vunpack.c.h.b16 %v1105
      %v1349 = vunpack.c.l.b16 %v1106
      %v1350 = vunpack.c.h.b16 %v1106
      %v1351 = vunpack.c.l.b16 %v1107
      %v1352 = vunpack.c.h.b16 %v1107
      %v1353 = vunpack.c.l.b16 %v1108
      %v1354 = vunpack.c.h.b16 %v1108
      %v1355 = vunpack.c.l.b16 %v1109
      %v1356 = vunpack.c.h.b16 %v1109
      %v1357 = vunpack.c.l.b16 %v1110
      %v1358 = vunpack.c.h.b16 %v1110
      %v1359 = vunpack.c.l.b16 %v1111
      %v1360 = vunpack.c.h.b16 %v1111
      %v1361 = vunpack.c.l.b16 %v1112
      %v1362 = vunpack.c.h.b16 %v1112
      %v1363 = vunpack.c.l.b16 %v1113
      %v1364 = vunpack.c.h.b16 %v1113
      %v1365 = vunpack.c.l.b16 %v1114
      %v1366 = vunpack.c.h.b16 %v1114
      %v1367 = vunpack.c.l.b16 %v1115
      %v1368 = vunpack.c.h.b16 %v1115
      %v1369 = vunpack.c.l.b16 %v1116
      %v1370 = vunpack.c.h.b16 %v1116
      %v1371 = vunpack.c.l.b16 %v1117
      %v1372 = vunpack.c.h.b16 %v1117
      %v1373 = vunpack.c.l.b16 %v1118
      %v1374 = vunpack.c.h.b16 %v1118
      %v1375 = vunpack.c.l.b16 %v1119
      %v1376 = vunpack.c.h.b16 %v1119
      %v1377 = vunpack.c.l.b16 %v1120
      %v1378 = vunpack.c.h.b16 %v1120
      %v1379 = vunpack.c.l.b16 %v1121
      %v1380 = vunpack.c.h.b16 %v1121
      %v1381 = vunpack.c.l.b16 %v1122
      %v1382 = vunpack.c.h.b16 %v1122
      %v1383 = vunpack.c.l.b16 %v1123
      %v1384 = vunpack.c.h.b16 %v1123
      %v1385 = vunpack.c.l.b16 %v1124
      %v1386 = vunpack.c.h.b16 %v1124
      %v1387 = vunpack.c.l.b16 %v1125
      %v1388 = vunpack.c.h.b16 %v1125
      %v1389 = vunpack.c.l.b16 %v1126
      %v1390 = vunpack.c.h.b16 %v1126
      %v1391 = vunpack.c.l.b16 %v1127
      %v1392 = vunpack.c.h.b16 %v1127
      %v1393 = vunpack.c.l.b16 %v1128
      %v1394 = vunpack.c.h.b16 %v1128
      %v1395 = vunpack.c.l.b16 %v1129
      %v1396 = vunpack.c.h.b16 %v1129
      %v1397 = vunpack.c.l.b16 %v1130
      %v1398 = vunpack.c.h.b16 %v1130
      %v1399 = vunpack.c.l.b16 %v1131
      %v1400 = vunpack.c.h.b16 %v1131
      %v1401 = vunpack.c.l.b16 %v1132
      %v1402 = vunpack.c.h.b16 %v1132
      %v1403 = vunpack.c.l.b16 %v1133
      %v1404 = vunpack.c.h.b16 %v1133
      %v1405 = vunpack.c.l.b16 %v1134
      %v1406 = vunpack.c.h.b16 %v1134
      %v1407 = vunpack.c.l.b16 %v1135
      %v1408 = vunpack.c.h.b16 %v1135
      %v1409 = vunpack.c.l.b16 %v1136
      %v1410 = vunpack.c.h.b16 %v1136
      %v1411 = vunpack.c.l.b16 %v1137
      %v1412 = vunpack.c.h.b16 %v1137
      %v1413 = vunpack.c.l.b16 %v1138
      %v1414 = vunpack.c.h.b16 %v1138
      %v1415 = vunpack.c.l.b16 %v1139
      %v1416 = vunpack.c.h.b16 %v1139
      %v1417 = vunpack.c.l.b16 %v1140
      %v1418 = vunpack.c.h.b16 %v1140
      %v1419 = vunpack.c.l.b16 %v1141
      %v1420 = vunpack.c.h.b16 %v1141
      %v1421 = vunpack.c.l.b16 %v1142
      %v1422 = vunpack.c.h.b16 %v1142
      %v1423 = vunpack.c.l.b16 %v1143
      %v1424 = vunpack.c.h.b16 %v1143
      %v1425 = vunpack.c.l.b16 %v1144
      %v1426 = vunpack.c.h.b16 %v1144
      %v1427 = vunpack.c.l.b16 %v1145
      %v1428 = vunpack.c.h.b16 %v1145
      %v1429 = vunpack.c.l.b16 %v1146
      %v1430 = vunpack.c.h.b16 %v1146
      %v1431 = vunpack.c.l.b16 %v1147
      %v1432 = vunpack.c.h.b16 %v1147
      %v1433 = vunpack.c.l.b16 %v1148
      %v1434 = vunpack.c.h.b16 %v1148
      %v1435 = vunpack.c.l.b16 %v1149
      %v1436 = vunpack.c.h.b16 %v1149
      %v1437 = vunpack.c.l.b16 %v1150
      %v1438 = vunpack.c.h.b16 %v1150
      %v1439 = vunpack.c.l.b16 %v1151
      %v1440 = vunpack.c.h.b16 %v1151
      %v1441 = vunpack.c.l.b16 %v1152
      %v1442 = vunpack.c.h.b16 %v1152
      %v1443 = vunpack.c.l.b16 %v1153
      %v1444 = vunpack.c.h.b16 %v1153
      %v1445 = vunpack.c.l.b16 %v1154
      %v1446 = vunpack.c.h.b16 %v1154
      %v1447 = vunpack.c.l.b16 %v1155
      %v1448 = vunpack.c.h.b16 %v1155
      %v1449 = vunpack.c.l.b16 %v1156
      %v1450 = vunpack.c.h.b16 %v1156
      %v1451 = vunpack.c.l.b16 %v1157
      %v1452 = vunpack.c.h.b16 %v1157
      %v1453 = vunpack.c.l.b16 %v1158
      %v1454 = vunpack.c.h.b16 %v1158
      %v1455 = vunpack.c.l.b16 %v1159
      %v1456 = vunpack.c.h.b16 %v1159
      %v1457 = vunpack.c.l.b16 %v1160
      %v1458 = vunpack.c.h.b16 %v1160
      %v1459 = vunpack.c.l.b16 %v1161
      %v1460 = vunpack.c.h.b16 %v1161
      %v1461 = vunpack.c.l.b16 %v1162
      %v1462 = vunpack.c.h.b16 %v1162
      %v1463 = vpack.c.b16 %v1273, %v1271
      %v1464 = vpack.c.b16 %v1274, %v1272
      %v1465 = vpack.c.b16 %v1277, %v1275
      %v1466 = vpack.c.b16 %v1278, %v1276
      %v1467 = vpack.c.b16 %v1281, %v1279
      %v1468 = vpack.c.b16 %v1282, %v1280
      %v1469 = vpack.c.b16 %v1285, %v1283
      %v1470 = vpack.c.b16 %v1286, %v1284
      %v1471 = vpack.c.b16 %v1289, %v1287
      %v1472 = vpack.c.b16 %v1290, %v1288
      %v1473 = vpack.c.b16 %v1293, %v1291
      %v1474 = vpack.c.b16 %v1294, %v1292
      %v1475 = vpack.c.b16 %v1297, %v1295
      %v1476 = vpack.c.b16 %v1298, %v1296
      %v1477 = vpack.c.b16 %v1301, %v1299
      %v1478 = vpack.c.b16 %v1302, %v1300
      %v1479 = vpack.c.b16 %v1305, %v1303
      %v1480 = vpack.c.b16 %v1306, %v1304
      %v1481 = vpack.c.b16 %v1309, %v1307
      %v1482 = vpack.c.b16 %v1310, %v1308
      %v1483 = vpack.c.b16 %v1313, %v1311
      %v1484 = vpack.c.b16 %v1314, %v1312
      %v1485 = vpack.c.b16 %v1317, %v1315
      %v1486 = vpack.c.b16 %v1318, %v1316
      %v1487 = vpack.c.b16 %v1321, %v1319
      %v1488 = vpack.c.b16 %v1322, %v1320
      %v1489 = vpack.c.b16 %v1325, %v1323
      %v1490 = vpack.c.b16 %v1326, %v1324
      %v1491 = vpack.c.b16 %v1329, %v1327
      %v1492 = vpack.c.b16 %v1330, %v1328
      %v1493 = vpack.c.b16 %v1333, %v1331
      %v1494 = vpack.c.b16 %v1334, %v1332
      %v1495 = vpack.c.b16 %v1337, %v1335
      %v1496 = vpack.c.b16 %v1338, %v1336
      %v1497 = vpack.c.b16 %v1341, %v1339
      %v1498 = vpack.c.b16 %v1342, %v1340
      %v1499 = vpack.c.b16 %v1345, %v1343
      %v1500 = vpack.c.b16 %v1346, %v1344
      %v1501 = vpack.c.b16 %v1349, %v1347
      %v1502 = vpack.c.b16 %v1350, %v1348
      %v1503 = vpack.c.b16 %v1353, %v1351
      %v1504 = vpack.c.b16 %v1354, %v1352
      %v1505 = vpack.c.b16 %v1357, %v1355
      %v1506 = vpack.c.b16 %v1358, %v1356
      %v1507 = vpack.c.b16 %v1361, %v1359
      %v1508 = vpack.c.b16 %v1362, %v1360
      %v1509 = vpack.c.b16 %v1365, %v1363
      %v1510 = vpack.c.b16 %v1366, %v1364
      %v1511 = vpack.c.b16 %v1369, %v1367
      %v1512 = vpack.c.b16 %v1370, %v1368
      %v1513 = vpack.c.b16 %v1373, %v1371
      %v1514 = vpack.c.b16 %v1374, %v1372
      %v1515 = vpack.c.b16 %v1377, %v1375
      %v1516 = vpack.c.b16 %v1378, %v1376
      %v1517 = vpack.c.b16 %v1381, %v1379
      %v1518 = vpack.c.b16 %v1382, %v1380
      %v1519 = vpack.c.b16 %v1385, %v1383
      %v1520 = vpack.c.b16 %v1386, %v1384
      %v1521 = vpack.c.b16 %v1389, %v1387
      %v1522 = vpack.c.b16 %v1390, %v1388
      %v1523 = vpack.c.b16 %v1393, %v1391
      %v1524 = vpack.c.b16 %v1394, %v1392
      %v1525 = vpack.c.b16 %v1397, %v1395
      %v1526 = vpack.c.b16 %v1398, %v1396
      %v1527 = vpack.c.b16 %v1401, %v1399
      %v1528 = vpack.c.b16 %v1402, %v1400
      %v1529 = vpack.c.b16 %v1405, %v1403
      %v1530 = vpack.c.b16 %v1406, %v1404
      %v1531 = vpack.c.b16 %v1409, %v1407
      %v1532 = vpack.c.b16 %v1410, %v1408
      %v1533 = vpack.c.b16 %v1413, %v1411
      %v1534 = vpack.c.b16 %v1414, %v1412
      %v1535 = vpack.c.b16 %v1417, %v1415
      %v1536 = vpack.c.b16 %v1418, %v1416
      %v1537 = vpack.c.b16 %v1421, %v1419
      %v1538 = vpack.c.b16 %v1422, %v1420
      %v1539 = vpack.c.b16 %v1425, %v1423
      %v1540 = vpack.c.b16 %v1426, %v1424
      %v1541 = vpack.c.b16 %v1429, %v1427
      %v1542 = vpack.c.b16 %v1430, %v1428
      %v1543 = vpack.c.b16 %v1433, %v1431
      %v1544 = vpack.c.b16 %v1434, %v1432
      %v1545 = vpack.c.b16 %v1437, %v1435
      %v1546 = vpack.c.b16 %v1438, %v1436
      %v1547 = vpack.c.b16 %v1441, %v1439
      %v1548 = vpack.c.b16 %v1442, %v1440
      %v1549 = vpack.c.b16 %v1445, %v1443
      %v1550 = vpack.c.b16 %v1446, %v1444
      %v1551 = vpack.c.b16 %v1449, %v1447
      %v1552 = vpack.c.b16 %v1450, %v1448
      %v1553 = vpack.c.b16 %v1453, %v1451
      %v1554 = vpack.c.b16 %v1454, %v1452
      %v1555 = vpack.c.b16 %v1457, %v1455
      %v1556 = vpack.c.b16 %v1458, %v1456
      %v1557 = vpack.c.b16 %v1461, %v1459
      %v1558 = vpack.c.b16 %v1462, %v1460
      %1655 = vmatprep.subr.bf16.mxu0 %v1478
      %1656 = vmatpush1.bf16.msra.mxu0 %v1477
      %1657 = vmatprep.subr.bf16.mxu0 %v1476
      %1658 = vmatpush1.bf16.msra.mxu0 %v1475
      %1659 = vmatprep.subr.bf16.mxu0 %v1474
      %1660 = vmatpush1.bf16.msra.mxu0 %v1473
      %1661 = vmatprep.subr.bf16.mxu0 %v1472
      %1662 = vmatpush1.bf16.msra.mxu0 %v1471
      %1663 = vmatprep.subr.bf16.mxu0 %v1470
      %1664 = vmatpush1.bf16.msra.mxu0 %v1469
      %1665 = vmatprep.subr.bf16.mxu0 %v1468
      %1666 = vmatpush1.bf16.msra.mxu0 %v1467
      %1667 = vmatprep.subr.bf16.mxu0 %v1466
      %1668 = vmatpush1.bf16.msra.mxu0 %v1465
      %1669 = vmatprep.subr.bf16.mxu0 %v1464
      %1670 = vmatpush1.bf16.msra.mxu0 %v1463
      %1671 = vmatprep.subr.bf16.mxu0 %v1494
      %1672 = vmatpush2.bf16.msra.mxu0 %v1493
      %1673 = vmatprep.subr.bf16.mxu0 %v1492
      %1674 = vmatpush2.bf16.msra.mxu0 %v1491
      %1675 = vmatprep.subr.bf16.mxu0 %v1490
      %1676 = vmatpush2.bf16.msra.mxu0 %v1489
      %1677 = vmatprep.subr.bf16.mxu0 %v1488
      %1678 = vmatpush2.bf16.msra.mxu0 %v1487
      %1679 = vmatprep.subr.bf16.mxu0 %v1486
      %1680 = vmatpush2.bf16.msra.mxu0 %v1485
      %1681 = vmatprep.subr.bf16.mxu0 %v1484
      %1682 = vmatpush2.bf16.msra.mxu0 %v1483
      %1683 = vmatprep.subr.bf16.mxu0 %v1482
      %1684 = vmatpush2.bf16.msra.mxu0 %v1481
      %1685 = vmatprep.subr.bf16.mxu0 %v1480
      %1686 = vmatpush2.bf16.msra.mxu0 %v1479
      %1687 = vmatprep.mubr.bf16.mxu0 %v1062
      %1688 = vmatmul.mubr.bf16.gmra.mxu0 %v1061
      %v1689 = vpop.f32.mrf.mxu0
      %v1690 = vadd.f32 %v1168, %v1689
      %v1691 = vpop.f32.mrf.mxu0
      %v1692 = vadd.f32 %v1172, %v1691
      %v1693 = vpop.f32.mrf.mxu0
      %v1694 = vpop.f32.mrf.mxu0
      %1695 = vdwg.mxu0
      %1696 = vmatprep.subr.bf16.mxu0 %v1510
      %1697 = vmatpush1.bf16.msra.mxu0 %v1509
      %1698 = vmatprep.subr.bf16.mxu0 %v1508
      %1699 = vmatpush1.bf16.msra.mxu0 %v1507
      %1700 = vmatprep.subr.bf16.mxu0 %v1506
      %1701 = vmatpush1.bf16.msra.mxu0 %v1505
      %1702 = vmatprep.subr.bf16.mxu0 %v1504
      %1703 = vmatpush1.bf16.msra.mxu0 %v1503
      %1704 = vmatprep.subr.bf16.mxu0 %v1502
      %1705 = vmatpush1.bf16.msra.mxu0 %v1501
      %1706 = vmatprep.subr.bf16.mxu0 %v1500
      %1707 = vmatpush1.bf16.msra.mxu0 %v1499
      %1708 = vmatprep.subr.bf16.mxu0 %v1498
      %1709 = vmatpush1.bf16.msra.mxu0 %v1497
      %1710 = vmatprep.subr.bf16.mxu0 %v1496
      %1711 = vmatpush1.bf16.msra.mxu0 %v1495
      %1712 = vmatprep.subr.bf16.mxu0 %v1526
      %1713 = vmatpush2.bf16.msra.mxu0 %v1525
      %1714 = vmatprep.subr.bf16.mxu0 %v1524
      %1715 = vmatpush2.bf16.msra.mxu0 %v1523
      %1716 = vmatprep.subr.bf16.mxu0 %v1522
      %1717 = vmatpush2.bf16.msra.mxu0 %v1521
      %1718 = vmatprep.subr.bf16.mxu0 %v1520
      %1719 = vmatpush2.bf16.msra.mxu0 %v1519
      %1720 = vmatprep.subr.bf16.mxu0 %v1518
      %1721 = vmatpush2.bf16.msra.mxu0 %v1517
      %1722 = vmatprep.subr.bf16.mxu0 %v1516
      %1723 = vmatpush2.bf16.msra.mxu0 %v1515
      %1724 = vmatprep.subr.bf16.mxu0 %v1514
      %1725 = vmatpush2.bf16.msra.mxu0 %v1513
      %1726 = vmatprep.subr.bf16.mxu0 %v1512
      %1727 = vmatpush2.bf16.msra.mxu0 %v1511
      %1728 = vmatprep.mubr.bf16.mxu0 %v1064
      %1729 = vmatmul.mubr.bf16.gmra.mxu0 %v1063
      %v1730 = vpop.f32.mrf.mxu0
      %v1731 = vadd.f32 %v1690, %v1730
      %v1732 = vpop.f32.mrf.mxu0
      %v1733 = vadd.f32 %v1692, %v1732
      %v1734 = vpop.f32.mrf.mxu0
      %v1735 = vpop.f32.mrf.mxu0
      %1736 = vdwg.mxu0
      %1737 = vmatprep.subr.bf16.mxu0 %v1542
      %1738 = vmatpush1.bf16.msra.mxu0 %v1541
      %1739 = vmatprep.subr.bf16.mxu0 %v1540
      %1740 = vmatpush1.bf16.msra.mxu0 %v1539
      %1741 = vmatprep.subr.bf16.mxu0 %v1538
      %1742 = vmatpush1.bf16.msra.mxu0 %v1537
      %1743 = vmatprep.subr.bf16.mxu0 %v1536
      %1744 = vmatpush1.bf16.msra.mxu0 %v1535
      %1745 = vmatprep.subr.bf16.mxu0 %v1534
      %1746 = vmatpush1.bf16.msra.mxu0 %v1533
      %1747 = vmatprep.subr.bf16.mxu0 %v1532
      %1748 = vmatpush1.bf16.msra.mxu0 %v1531
      %1749 = vmatprep.subr.bf16.mxu0 %v1530
      %1750 = vmatpush1.bf16.msra.mxu0 %v1529
      %1751 = vmatprep.subr.bf16.mxu0 %v1528
      %1752 = vmatpush1.bf16.msra.mxu0 %v1527
      %1753 = vmatprep.subr.bf16.mxu0 %v1558
      %1754 = vmatpush2.bf16.msra.mxu0 %v1557
      %1755 = vmatprep.subr.bf16.mxu0 %v1556
      %1756 = vmatpush2.bf16.msra.mxu0 %v1555
      %1757 = vmatprep.subr.bf16.mxu0 %v1554
      %1758 = vmatpush2.bf16.msra.mxu0 %v1553
      %1759 = vmatprep.subr.bf16.mxu0 %v1552
      %1760 = vmatpush2.bf16.msra.mxu0 %v1551
      %1761 = vmatprep.subr.bf16.mxu0 %v1550
      %1762 = vmatpush2.bf16.msra.mxu0 %v1549
      %1763 = vmatprep.subr.bf16.mxu0 %v1548
      %1764 = vmatpush2.bf16.msra.mxu0 %v1547
      %1765 = vmatprep.subr.bf16.mxu0 %v1546
      %1766 = vmatpush2.bf16.msra.mxu0 %v1545
      %1767 = vmatprep.subr.bf16.mxu0 %v1544
      %1768 = vmatpush2.bf16.msra.mxu0 %v1543
      %1769 = vmatprep.mubr.bf16.mxu0 %v1066
      %1770 = vmatmul.mubr.bf16.gmra.mxu0 %v1065
      %v1771 = vpop.f32.mrf.mxu0
      %v1772 = vadd.f32 %v1731, %v1771
      %v1773 = vpop.f32.mrf.mxu0
      %v1774 = vadd.f32 %v1733, %v1773
      %v1775 = vpop.f32.mrf.mxu0
      %v1776 = vpop.f32.mrf.mxu0
      %1777 = vdwg.mxu0
      %v1778 = vadd.f32 %v1772, %v305
      %v1779 = vadd.f32 %v1774, %v307
      %v1780 = vpack.c.bf16 %v1778, %v1778
      %v1781 = vpack.c.bf16 %v1779, %v1779
      %v1784 = vcombine.low %v1780, %v1781
      %v1786 = vunpack.c.l.s4 1983009808
      %v1787 = vunpack.c.0.s8 %v1786
      %v1788 = vlaneseq
      %v1789 = vshrl.u32 %v1788, 7
      %v1790 = vsub.s32 %v1787, %v1789
      %v1791 = vrot.slane %v1784, %v1790
      %1793 = vst [vmem:[%s224] sm:$0xf] %v1791
      %p1794 = scmp.lt.s32.totalorder %s16, 1
      %s1795 = scalar_select %p1794, %s16, 1
      %s1796 = smul.addr %s1795, 2
      %s1797 = smul.addr %s1796, 2
      %s1798 = scalar_lea.vmem %s5, %s1797
      // Predicated region
      $region41: #{dpcnn_forward.6} parent=39 // pred_check
        %p1799 = pneg %p144
      $region42: #{dpcnn_forward.6} parent=39 // pred_check_branch
        %1801 = sbr.rel (%p1799) target = $region44
      $region43: #{dpcnn_forward.6} parent=39 // pred_region
        _
      $region44: #{dpcnn_forward.6} parent=39 // pred_fallthru
        _
    $region40: #{dpcnn_forward.6} parent=5 // pred_fallthru
      _
    %p1802 = scmp.le.s32.totalorder 2, %s11
    // Predicated region
    $region45: #{dpcnn_forward.6} parent=5 // pred_check
      %p1803 = pneg %p1802
    $region46: #{dpcnn_forward.6} parent=5 // pred_check_branch
      %1805 = sbr.rel (%p1803) target = $region48
    $region47: #{dpcnn_forward.6} parent=5 // pred_region
      %s1806 = ssub.s32 %s11, 2
      // Predicated region
      $region49: #{dpcnn_forward.6} parent=47 // pred_check
        %p1807 = pneg %p150
      $region50: #{dpcnn_forward.6} parent=47 // pred_check_branch
        %1809 = sbr.rel (%p1807) target = $region52
      $region51: #{dpcnn_forward.6} parent=47 // pred_region
        %p1810 = scmp.lt.s32.totalorder %s17, 1
        %s1811 = scalar_select %p1810, %s17, 1
        %s1812 = smul.addr %s1811, 2
        %s1813 = smul.addr %s1812, 2
        %s1814 = scalar_lea.vmem %s5, %s1813
      $region52: #{dpcnn_forward.6} parent=47 // pred_fallthru
        _
    $region48: #{dpcnn_forward.6} parent=5 // pred_fallthru
      _
  $region6: #{dpcnn_forward.6} parent=0 // loop_footer
    %s15 = sadd.s32 1, %s11
  $region7: #{dpcnn_forward.6} parent=0 // loop_footer_branch
    %10 = sbr.rel target = $region3
  $region8: #{dpcnn_forward.6} parent=0 // loop_exit
    _

// kernel: dpcnn_forward.4
$region0: #{dpcnn_forward.4}
  #allocation0 [shape = 'u32[]', space=smem, size = 0x4, offset = 0x4, fixed_abs, tag = 'smem constant byte address 0x4 - core index']
  #allocation1 [shape = 'u32[144,128]{1,0:T(1,128)}', space=vmem, size = 0x12000, scoped, tag = 'internal scratch']
  %s0 = inlined_call_operand.vmem [shape: bf16[2,16,128], index: 0, kind: input, shape index: {}]
  %s1 = inlined_call_operand.hbm [shape: bf16[384,256], index: 1, kind: input, shape index: {}]
  %s2 = inlined_call_operand.vmem [shape: f32[1,256], index: 2, kind: input, shape index: {}]
  %s3 = inlined_call_operand.hbm [shape: bf16[768,256], index: 3, kind: input, shape index: {}]
  %s4 = inlined_call_operand.vmem [shape: f32[1,256], index: 4, kind: input, shape index: {}]
  %s5 = inlined_call_operand.hbm [shape: bf16[768,256], index: 5, kind: input, shape index: {}]
  %s6 = inlined_call_operand.vmem [shape: f32[1,256], index: 6, kind: input, shape index: {}]
  %s7 = inlined_call_operand.vmem [shape: bf16[2,16,256], index: 7, kind: output, shape index: {}]
  %s8 = sld [smem:[#allocation0]]
  $region73: #{dpcnn_forward.4} parent=0
    _
  %s10 = ssub.s32 1, %s8
  %s11 = scalar_select 0, %s10, %s8
  $region1: #{dpcnn_forward.4} parent=0
    #allocation2 [shape = 'u8[196608]{0}', space=vmem, size = 0x30000, scoped, tag = 'input window, operand 1, single buffered']
    #allocation3 [shape = 's32[2]{0}', space=sflag, size = 0x8, scoped, tag = 'scoped memory for dpcnn_forward.4']
    #allocation4 [shape = 'u8[393216]{0}', space=vmem, size = 0x60000, scoped, tag = 'input window, operand 3, single buffered']
    #allocation5 [shape = 's32[1]{0}', space=sflag, size = 0x4, scoped, tag = 'scoped memory for dpcnn_forward.4']
    #allocation6 [shape = 'u8[393216]{0}', space=vmem, size = 0x60000, scoped, tag = 'input window, operand 5, single buffered']
    %12 = vsyncpa [#allocation3], 0
    %13 = vsyncpa [#allocation5], 0
    loop: start=0, step=1, limit=4
    $region2: #{dpcnn_forward.4} parent=1 // loop_pre_header
      _
    $region3: #{dpcnn_forward.4} parent=1 // loop_header
      %s15 = sphi 0, %s19
      %p16 = scmp.ge.s32.totalorder %s15, 4
      %s25 = sphi 0, %s27
      %s28 = sphi 0, %s25
      %s29 = sphi 0, %s28
      %s45 = sphi 0, %s29
      %s49 = sphi 0, %s49
      %s51 = sphi 0, %s49
      %s52 = sphi 0, %s51
      %s66 = sphi 0, %s52
      %s70 = sphi 0, %s70
      %s72 = sphi 0, %s70
      %s73 = sphi 0, %s72
      %s87 = sphi 0, %s73
      %s91 = sphi 0, %s91
      %s93 = sphi 0, %s91
      %s94 = sphi 0, %s93
      %s108 = sphi 0, %s94
      %s112 = sphi 0, %s112
      %s114 = sphi 0, %s112
      %s115 = sphi 0, %s114
      %s129 = sphi 0, %s115
      %s133 = sphi 0, %s133
      %s135 = sphi 0, %s133
      %s136 = sphi 0, %s135
      %s150 = sphi 0, %s136
      %s154 = sphi 0, %s154
      %s156 = sphi 0, %s154
      %s157 = sphi 0, %s156
      %s171 = sphi 0, %s157
      %s177 = sphi 0, %s179
      %s180 = sphi 0, %s177
      %s181 = sphi 0, %s180
      %s197 = sphi 0, %s181
    $region4: #{dpcnn_forward.4} parent=1 // loop_header_branch
      %18 = sbr.rel (%p16) target = $region8
    $region5: #{dpcnn_forward.4} parent=1 // loop_body
      %s20 = ssub.s32 %s15, 1
      %s21 = ssub.s32 %s15, 2
      %s22 = sadd.s32 %s15, 1
      %s23 = ssub.s32 %s15, %s22
      %p24 = scmp.eq.s32.totalorder %s23, 0
      %s26 = sadd.s32 %s25, 1
      %s27 = scalar_select %p24, %s25, %s26
      %p30 = pneg %p24
      %p31 = scmp.eq.s32.totalorder %s15, 1
      %p32 = por %p30, %p31
      %p33 = scmp.ne.s32.totalorder %s25, %s28
      %p34 = scmp.eq.s32.totalorder %s15, 0
      %p35 = por %p33, %p34
      %p36 = scmp.ne.s32.totalorder %s25, %s28
      %p37 = scmp.eq.s32.totalorder %s20, 1
      %p38 = por %p36, %p37
      %p39 = scmp.ne.s32.totalorder %s28, %s29
      %p40 = scmp.eq.s32.totalorder %s20, 0
      %p41 = por %p39, %p40
      %p42 = scmp.ne.s32.totalorder %s28, %s29
      %p43 = scmp.eq.s32.totalorder %s21, 1
      %p44 = por %p42, %p43
      %p46 = scmp.ne.s32.totalorder %s29, %s45
      %p47 = scmp.eq.s32.totalorder %s21, 0
      %p48 = por %p46, %p47
      %s50 = sadd.s32 %s49, 1
      %p53 = scmp.eq.s32.totalorder %s15, 1
      %p54 = scmp.ne.s32.totalorder %s49, %s51
      %p55 = scmp.eq.s32.totalorder %s15, 0
      %p56 = por %p54, %p55
      %p57 = scmp.ne.s32.totalorder %s49, %s51
      %p58 = scmp.eq.s32.totalorder %s20, 1
      %p59 = por %p57, %p58
      %p60 = scmp.ne.s32.totalorder %s51, %s52
      %p61 = scmp.eq.s32.totalorder %s20, 0
      %p62 = por %p60, %p61
      %p63 = scmp.ne.s32.totalorder %s51, %s52
      %p64 = scmp.eq.s32.totalorder %s21, 1
      %p65 = por %p63, %p64
      %p67 = scmp.ne.s32.totalorder %s52, %s66
      %p68 = scmp.eq.s32.totalorder %s21, 0
      %p69 = por %p67, %p68
      %s71 = sadd.s32 %s70, 1
      %p74 = scmp.eq.s32.totalorder %s15, 1
      %p75 = scmp.ne.s32.totalorder %s70, %s72
      %p76 = scmp.eq.s32.totalorder %s15, 0
      %p77 = por %p75, %p76
      %p78 = scmp.ne.s32.totalorder %s70, %s72
      %p79 = scmp.eq.s32.totalorder %s20, 1
      %p80 = por %p78, %p79
      %p81 = scmp.ne.s32.totalorder %s72, %s73
      %p82 = scmp.eq.s32.totalorder %s20, 0
      %p83 = por %p81, %p82
      %p84 = scmp.ne.s32.totalorder %s72, %s73
      %p85 = scmp.eq.s32.totalorder %s21, 1
      %p86 = por %p84, %p85
      %p88 = scmp.ne.s32.totalorder %s73, %s87
      %p89 = scmp.eq.s32.totalorder %s21, 0
      %p90 = por %p88, %p89
      %s92 = sadd.s32 %s91, 1
      %p95 = scmp.eq.s32.totalorder %s15, 1
      %p96 = scmp.ne.s32.totalorder %s91, %s93
      %p97 = scmp.eq.s32.totalorder %s15, 0
      %p98 = por %p96, %p97
      %p99 = scmp.ne.s32.totalorder %s91, %s93
      %p100 = scmp.eq.s32.totalorder %s20, 1
      %p101 = por %p99, %p100
      %p102 = scmp.ne.s32.totalorder %s93, %s94
      %p103 = scmp.eq.s32.totalorder %s20, 0
      %p104 = por %p102, %p103
      %p105 = scmp.ne.s32.totalorder %s93, %s94
      %p106 = scmp.eq.s32.totalorder %s21, 1
      %p107 = por %p105, %p106
      %p109 = scmp.ne.s32.totalorder %s94, %s108
      %p110 = scmp.eq.s32.totalorder %s21, 0
      %p111 = por %p109, %p110
      %s113 = sadd.s32 %s112, 1
      %p116 = scmp.eq.s32.totalorder %s15, 1
      %p117 = scmp.ne.s32.totalorder %s112, %s114
      %p118 = scmp.eq.s32.totalorder %s15, 0
      %p119 = por %p117, %p118
      %p120 = scmp.ne.s32.totalorder %s112, %s114
      %p121 = scmp.eq.s32.totalorder %s20, 1
      %p122 = por %p120, %p121
      %p123 = scmp.ne.s32.totalorder %s114, %s115
      %p124 = scmp.eq.s32.totalorder %s20, 0
      %p125 = por %p123, %p124
      %p126 = scmp.ne.s32.totalorder %s114, %s115
      %p127 = scmp.eq.s32.totalorder %s21, 1
      %p128 = por %p126, %p127
      %p130 = scmp.ne.s32.totalorder %s115, %s129
      %p131 = scmp.eq.s32.totalorder %s21, 0
      %p132 = por %p130, %p131
      %s134 = sadd.s32 %s133, 1
      %p137 = scmp.eq.s32.totalorder %s15, 1
      %p138 = scmp.ne.s32.totalorder %s133, %s135
      %p139 = scmp.eq.s32.totalorder %s15, 0
      %p140 = por %p138, %p139
      %p141 = scmp.ne.s32.totalorder %s133, %s135
      %p142 = scmp.eq.s32.totalorder %s20, 1
      %p143 = por %p141, %p142
      %p144 = scmp.ne.s32.totalorder %s135, %s136
      %p145 = scmp.eq.s32.totalorder %s20, 0
      %p146 = por %p144, %p145
      %p147 = scmp.ne.s32.totalorder %s135, %s136
      %p148 = scmp.eq.s32.totalorder %s21, 1
      %p149 = por %p147, %p148
      %p151 = scmp.ne.s32.totalorder %s136, %s150
      %p152 = scmp.eq.s32.totalorder %s21, 0
      %p153 = por %p151, %p152
      %s155 = sadd.s32 %s154, 1
      %p158 = scmp.eq.s32.totalorder %s15, 1
      %p159 = scmp.ne.s32.totalorder %s154, %s156
      %p160 = scmp.eq.s32.totalorder %s15, 0
      %p161 = por %p159, %p160
      %p162 = scmp.ne.s32.totalorder %s154, %s156
      %p163 = scmp.eq.s32.totalorder %s20, 1
      %p164 = por %p162, %p163
      %p165 = scmp.ne.s32.totalorder %s156, %s157
      %p166 = scmp.eq.s32.totalorder %s20, 0
      %p167 = por %p165, %p166
      %p168 = scmp.ne.s32.totalorder %s156, %s157
      %p169 = scmp.eq.s32.totalorder %s21, 1
      %p170 = por %p168, %p169
      %p172 = scmp.ne.s32.totalorder %s157, %s171
      %p173 = scmp.eq.s32.totalorder %s21, 0
      %p174 = por %p172, %p173
      %s175 = ssub.s32 %s15, %s22
      %p176 = scmp.eq.s32.totalorder %s175, 0
      %s178 = sadd.s32 %s177, 1
      %s179 = scalar_select %p176, %s177, %s178
      %p182 = pneg %p176
      %p183 = scmp.eq.s32.totalorder %s15, 1
      %p184 = por %p182, %p183
      %p185 = scmp.ne.s32.totalorder %s177, %s180
      %p186 = scmp.eq.s32.totalorder %s15, 0
      %p187 = por %p185, %p186
      %p188 = scmp.ne.s32.totalorder %s177, %s180
      %p189 = scmp.eq.s32.totalorder %s20, 1
      %p190 = por %p188, %p189
      %p191 = scmp.ne.s32.totalorder %s180, %s181
      %p192 = scmp.eq.s32.totalorder %s20, 0
      %p193 = por %p191, %p192
      %p194 = scmp.ne.s32.totalorder %s180, %s181
      %p195 = scmp.eq.s32.totalorder %s21, 1
      %p196 = por %p194, %p195
      %p198 = scmp.ne.s32.totalorder %s181, %s197
      %p199 = scmp.eq.s32.totalorder %s21, 0
      %p200 = por %p198, %p199
      %p201 = scmp.le.s32.totalorder 1, %s15
      %p202 = scmp.lt.s32.totalorder %s15, 3
      %p203 = pnand %p201, %p202
      %p204 = pneg %p203
      // Predicated region
      $region9: #{dpcnn_forward.4} parent=5 // pred_check
        _
      $region10: #{dpcnn_forward.4} parent=5 // pred_check_branch
        %206 = sbr.rel (%p203) target = $region12
      $region11: #{dpcnn_forward.4} parent=5 // pred_region
        %s207 = ssub.s32 %s15, 1
        // Predicated region
        $region13: #{dpcnn_forward.4} parent=11 // pred_check
          %p208 = pneg %p62
        $region14: #{dpcnn_forward.4} parent=11 // pred_check_branch
          %210 = sbr.rel (%p208) target = $region16
        $region15: #{dpcnn_forward.4} parent=11 // pred_region
          %s212 = ssub.s32 6144, 6144
          %213 = vsyncadd [#allocation3], %s212
          %s214 = sshll.u32 [#allocation2], 4
          %s215 = int_to_ptr.vmem [resolvable:$true] %s214
          %220 = dma.hbm_to_vmem [thread:$0]  %s1, 6144, %s215, [#allocation3], 128, 128, 8
        $region16: #{dpcnn_forward.4} parent=11 // pred_fallthru
          _
        // Predicated region
        $region17: #{dpcnn_forward.4} parent=11 // pred_check
          %p221 = pneg %p83
        $region18: #{dpcnn_forward.4} parent=11 // pred_check_branch
          %223 = sbr.rel (%p221) target = $region20
        $region19: #{dpcnn_forward.4} parent=11 // pred_region
          _
        $region20: #{dpcnn_forward.4} parent=11 // pred_fallthru
          _
        // Predicated region
        $region21: #{dpcnn_forward.4} parent=11 // pred_check
          %p224 = pneg %p104
        $region22: #{dpcnn_forward.4} parent=11 // pred_check_branch
          %226 = sbr.rel (%p224) target = $region24
        $region23: #{dpcnn_forward.4} parent=11 // pred_region
          %s228 = ssub.s32 12288, 12288
          %229 = vsyncadd [#allocation5], %s228
          %s230 = sshll.u32 [#allocation4], 4
          %s231 = int_to_ptr.vmem [resolvable:$true] %s230
          %236 = dma.hbm_to_vmem [thread:$0]  %s3, 12288, %s231, [#allocation5], 128, 128, 8
        $region24: #{dpcnn_forward.4} parent=11 // pred_fallthru
          _
        // Predicated region
        $region25: #{dpcnn_forward.4} parent=11 // pred_check
          %p237 = pneg %p125
        $region26: #{dpcnn_forward.4} parent=11 // pred_check_branch
          %239 = sbr.rel (%p237) target = $region28
        $region27: #{dpcnn_forward.4} parent=11 // pred_region
          _
        $region28: #{dpcnn_forward.4} parent=11 // pred_fallthru
          _
        // Predicated region
        $region29: #{dpcnn_forward.4} parent=11 // pred_check
          %p240 = pneg %p146
        $region30: #{dpcnn_forward.4} parent=11 // pred_check_branch
          %242 = sbr.rel (%p240) target = $region32
        $region31: #{dpcnn_forward.4} parent=11 // pred_region
          %s244 = ssub.s32 12288, 12288
          %245 = vsyncadd [#allocation5], %s244
          %s246 = sshll.u32 [#allocation6], 4
          %s247 = int_to_ptr.vmem [resolvable:$true] %s246
          %252 = dma.hbm_to_vmem [thread:$0]  %s5, 12288, %s247, [#allocation5], 128, 128, 8
        $region32: #{dpcnn_forward.4} parent=11 // pred_fallthru
          _
        // Predicated region
        $region33: #{dpcnn_forward.4} parent=11 // pred_check
          %p253 = pneg %p167
        $region34: #{dpcnn_forward.4} parent=11 // pred_check_branch
          %255 = sbr.rel (%p253) target = $region36
        $region35: #{dpcnn_forward.4} parent=11 // pred_region
          _
        $region36: #{dpcnn_forward.4} parent=11 // pred_fallthru
          _
      $region12: #{dpcnn_forward.4} parent=5 // pred_fallthru
        _
      %p256 = scmp.lt.s32.totalorder %s15, 2
      // Predicated region
      $region37: #{dpcnn_forward.4} parent=5 // pred_check
        %p257 = pneg %p256
      $region38: #{dpcnn_forward.4} parent=5 // pred_check_branch
        %259 = sbr.rel (%p257) target = $region40
      $region39: #{dpcnn_forward.4} parent=5 // pred_region
        // Predicated region
        $region41: #{dpcnn_forward.4} parent=39 // pred_check
          %p260 = pneg %p35
        $region42: #{dpcnn_forward.4} parent=39 // pred_check_branch
          %262 = sbr.rel (%p260) target = $region44
        $region43: #{dpcnn_forward.4} parent=39 // pred_region
          %p263 = scmp.lt.s32.totalorder %s15, 1
          %s264 = scalar_select %p263, %s15, 1
          %s265 = smul.addr %s264, 2
          %s266 = smul.addr %s265, 4
          %s267 = scalar_lea.vmem %s0, %s266
        $region44: #{dpcnn_forward.4} parent=39 // pred_fallthru
          _
      $region40: #{dpcnn_forward.4} parent=5 // pred_fallthru
        _
      %p268 = scmp.le.s32.totalorder 1, %s15
      %p269 = scmp.lt.s32.totalorder %s15, 3
      %p270 = pnand %p268, %p269
      %p271 = pneg %p270
      // Predicated region
      $region45: #{dpcnn_forward.4} parent=5 // pred_check
        _
      $region46: #{dpcnn_forward.4} parent=5 // pred_check_branch
        %273 = sbr.rel (%p270) target = $region48
      $region47: #{dpcnn_forward.4} parent=5 // pred_region
        %s274 = ssub.s32 %s15, 1
        // Predicated region
        $region49: #{dpcnn_forward.4} parent=47 // pred_check
          %p275 = pneg %p62
        $region50: #{dpcnn_forward.4} parent=47 // pred_check_branch
          %277 = sbr.rel (%p275) target = $region52
        $region51: #{dpcnn_forward.4} parent=47 // pred_region
          %278 = dma.done [#allocation3], 6144
        $region52: #{dpcnn_forward.4} parent=47 // pred_fallthru
          _
        // Predicated region
        $region53: #{dpcnn_forward.4} parent=47 // pred_check
          %p279 = pneg %p104
        $region54: #{dpcnn_forward.4} parent=47 // pred_check_branch
          %281 = sbr.rel (%p279) target = $region56
        $region55: #{dpcnn_forward.4} parent=47 // pred_region
          %282 = dma.done [#allocation5], 12288
        $region56: #{dpcnn_forward.4} parent=47 // pred_fallthru
          _
        // Predicated region
        $region57: #{dpcnn_forward.4} parent=47 // pred_check
          %p283 = pneg %p146
        $region58: #{dpcnn_forward.4} parent=47 // pred_check_branch
          %285 = sbr.rel (%p283) target = $region60
        $region59: #{dpcnn_forward.4} parent=47 // pred_region
          %286 = dma.done [#allocation5], 12288
        $region60: #{dpcnn_forward.4} parent=47 // pred_fallthru
          _
        %p287 = scmp.lt.s32.totalorder %s20, 1
        %s288 = scalar_select %p287, %s20, 1
        %s289 = smul.addr %s288, 2
        %s290 = smul.addr %s289, 4
        %s291 = scalar_lea.vmem %s0, %s290
        %p292 = pneg %p41
        %p293 = pneg %p38
        %p294 = pneg %p62
        %p295 = pneg %p59
        %p296 = pneg %p83
        %p297 = pneg %p80
        %p298 = pneg %p104
        %p299 = pneg %p101
        %p300 = pneg %p125
        %p301 = pneg %p122
        %p302 = pneg %p146
        %p303 = pneg %p143
        %p304 = pneg %p167
        %p305 = pneg %p164
        %p306 = pneg %p193
        %p307 = pneg %p190
        %p308 = scmp.lt.s32.totalorder %s20, 1
        %s309 = scalar_select %p308, %s20, 1
        %s310 = smul.addr %s309, 4
        %s311 = smul.addr %s310, 4
        %s312 = scalar_lea.vmem %s7, %s311
        %p313 = scmp.lt.s32.totalorder %s20, 1
        %s314 = scalar_select %p313, %s20, 1
        %s315 = smul.addr %s314, 2
        %s316 = smul.addr %s315, 4
        %s317 = scalar_lea.vmem %s0, %s316
        %p318 = scmp.lt.s32.totalorder %s20, 1
        %s319 = scalar_select %p318, %s20, 1
        %s320 = smul.addr %s319, 4
        %s321 = smul.addr %s320, 4
        %s322 = scalar_lea.vmem %s7, %s321
        %v324 = vld [vmem:[%s317] sm:$0xf]
        %v325 = vld [vmem:[%s317 + $0x4] sm:$0xf]
        %v326 = vunpack.c.l.bf16 %v324
        %v327 = vunpack.c.l.bf16 %v325
        %vm330 = vcmask 1040384
        %v331 = vrot.slane %v326, 7
        %v332 = vrot.slane %v327, 7
        %v333 = vsel %vm330, %v331, %v332
        %v336 = vsel %vm330, 0.0, %v331
        %vm337 = vcmask 1046528
        %v338 = vrot.slane %v326, 1
        %v339 = vrot.slane %v327, 1
        %v340 = vsel %vm337, %v338, %v339
        %v343 = vsel %vm337, %v339, 0.0
        %v344 = vpack.c.bf16 %v333, %v336
        %v345 = vpack.c.bf16 %v327, %v326
        %v346 = vpack.c.bf16 %v343, %v340
        %v347 = vld [vmem:[#allocation2] sm:$0xff]
        %v348 = vld [vmem:[#allocation2 + $0x8] sm:$0xff]
        %v349 = vld [vmem:[#allocation2 + $0x10] sm:$0xff]
        %v350 = vld [vmem:[#allocation2 + $0x18] sm:$0xff]
        %v351 = vld [vmem:[#allocation2 + $0x20] sm:$0xff]
        %v352 = vld [vmem:[#allocation2 + $0x28] sm:$0xff]
        %v353 = vld [vmem:[#allocation2 + $0x30] sm:$0xff]
        %v354 = vld [vmem:[#allocation2 + $0x38] sm:$0xff]
        %v355 = vld [vmem:[#allocation2 + $0x40] sm:$0xff]
        %v356 = vld [vmem:[#allocation2 + $0x48] sm:$0xff]
        %v357 = vld [vmem:[#allocation2 + $0x50] sm:$0xff]
        %v358 = vld [vmem:[#allocation2 + $0x58] sm:$0xff]
        %v359 = vld [vmem:[#allocation2 + $0x60] sm:$0xff]
        %v360 = vld [vmem:[#allocation2 + $0x68] sm:$0xff]
        %v361 = vld [vmem:[#allocation2 + $0x70] sm:$0xff]
        %v362 = vld [vmem:[#allocation2 + $0x78] sm:$0xff]
        %v363 = vld [vmem:[#allocation2 + $0x80] sm:$0xff]
        %v364 = vld [vmem:[#allocation2 + $0x88] sm:$0xff]
        %v365 = vld [vmem:[#allocation2 + $0x90] sm:$0xff]
        %v366 = vld [vmem:[#allocation2 + $0x98] sm:$0xff]
        %v367 = vld [vmem:[#allocation2 + $0xa0] sm:$0xff]
        %v368 = vld [vmem:[#allocation2 + $0xa8] sm:$0xff]
        %v369 = vld [vmem:[#allocation2 + $0xb0] sm:$0xff]
        %v370 = vld [vmem:[#allocation2 + $0xb8] sm:$0xff]
        %v371 = vld [vmem:[#allocation2 + $0xc0] sm:$0xff]
        %v372 = vld [vmem:[#allocation2 + $0xc8] sm:$0xff]
        %v373 = vld [vmem:[#allocation2 + $0xd0] sm:$0xff]
        %v374 = vld [vmem:[#allocation2 + $0xd8] sm:$0xff]
        %v375 = vld [vmem:[#allocation2 + $0xe0] sm:$0xff]
        %v376 = vld [vmem:[#allocation2 + $0xe8] sm:$0xff]
        %v377 = vld [vmem:[#allocation2 + $0xf0] sm:$0xff]
        %v378 = vld [vmem:[#allocation2 + $0xf8] sm:$0xff]
        %v379 = vld [vmem:[#allocation2 + $0x100] sm:$0xff]
        %v380 = vld [vmem:[#allocation2 + $0x108] sm:$0xff]
        %v381 = vld [vmem:[#allocation2 + $0x110] sm:$0xff]
        %v382 = vld [vmem:[#allocation2 + $0x118] sm:$0xff]
        %v383 = vld [vmem:[#allocation2 + $0x120] sm:$0xff]
        %v384 = vld [vmem:[#allocation2 + $0x128] sm:$0xff]
        %v385 = vld [vmem:[#allocation2 + $0x130] sm:$0xff]
        %v386 = vld [vmem:[#allocation2 + $0x138] sm:$0xff]
        %v387 = vld [vmem:[#allocation2 + $0x140] sm:$0xff]
        %v388 = vld [vmem:[#allocation2 + $0x148] sm:$0xff]
        %v389 = vld [vmem:[#allocation2 + $0x150] sm:$0xff]
        %v390 = vld [vmem:[#allocation2 + $0x158] sm:$0xff]
        %v391 = vld [vmem:[#allocation2 + $0x160] sm:$0xff]
        %v392 = vld [vmem:[#allocation2 + $0x168] sm:$0xff]
        %v393 = vld [vmem:[#allocation2 + $0x170] sm:$0xff]
        %v394 = vld [vmem:[#allocation2 + $0x178] sm:$0xff]
        %v395 = vld [vmem:[%s2] sm:$0x3]
        %v397 = vlaneseq
        %v398 = vshrl.u32 %v397, 7
        %v399 = vsub.s32 0, %v398
        %v400 = vrot.slane %v395, %v399
        %v401 = vlaneseq
        %v402 = vshrl.u32 %v401, 7
        %v403 = vsub.s32 1, %v402
        %v404 = vrot.slane %v395, %v403
        %v455 = vunpack.c.l.b16 %v347
        %v456 = vunpack.c.h.b16 %v347
        %v457 = vunpack.c.l.b16 %v348
        %v458 = vunpack.c.h.b16 %v348
        %v459 = vunpack.c.l.b16 %v349
        %v460 = vunpack.c.h.b16 %v349
        %v461 = vunpack.c.l.b16 %v350
        %v462 = vunpack.c.h.b16 %v350
        %v463 = vunpack.c.l.b16 %v351
        %v464 = vunpack.c.h.b16 %v351
        %v465 = vunpack.c.l.b16 %v352
        %v466 = vunpack.c.h.b16 %v352
        %v467 = vunpack.c.l.b16 %v353
        %v468 = vunpack.c.h.b16 %v353
        %v469 = vunpack.c.l.b16 %v354
        %v470 = vunpack.c.h.b16 %v354
        %v471 = vunpack.c.l.b16 %v355
        %v472 = vunpack.c.h.b16 %v355
        %v473 = vunpack.c.l.b16 %v356
        %v474 = vunpack.c.h.b16 %v356
        %v475 = vunpack.c.l.b16 %v357
        %v476 = vunpack.c.h.b16 %v357
        %v477 = vunpack.c.l.b16 %v358
        %v478 = vunpack.c.h.b16 %v358
        %v479 = vunpack.c.l.b16 %v359
        %v480 = vunpack.c.h.b16 %v359
        %v481 = vunpack.c.l.b16 %v360
        %v482 = vunpack.c.h.b16 %v360
        %v483 = vunpack.c.l.b16 %v361
        %v484 = vunpack.c.h.b16 %v361
        %v485 = vunpack.c.l.b16 %v362
        %v486 = vunpack.c.h.b16 %v362
        %v487 = vunpack.c.l.b16 %v363
        %v488 = vunpack.c.h.b16 %v363
        %v489 = vunpack.c.l.b16 %v364
        %v490 = vunpack.c.h.b16 %v364
        %v491 = vunpack.c.l.b16 %v365
        %v492 = vunpack.c.h.b16 %v365
        %v493 = vunpack.c.l.b16 %v366
        %v494 = vunpack.c.h.b16 %v366
        %v495 = vunpack.c.l.b16 %v367
        %v496 = vunpack.c.h.b16 %v367
        %v497 = vunpack.c.l.b16 %v368
        %v498 = vunpack.c.h.b16 %v368
        %v499 = vunpack.c.l.b16 %v369
        %v500 = vunpack.c.h.b16 %v369
        %v501 = vunpack.c.l.b16 %v370
        %v502 = vunpack.c.h.b16 %v370
        %v503 = vunpack.c.l.b16 %v371
        %v504 = vunpack.c.h.b16 %v371
        %v505 = vunpack.c.l.b16 %v372
        %v506 = vunpack.c.h.b16 %v372
        %v507 = vunpack.c.l.b16 %v373
        %v508 = vunpack.c.h.b16 %v373
        %v509 = vunpack.c.l.b16 %v374
        %v510 = vunpack.c.h.b16 %v374
        %v511 = vunpack.c.l.b16 %v375
        %v512 = vunpack.c.h.b16 %v375
        %v513 = vunpack.c.l.b16 %v376
        %v514 = vunpack.c.h.b16 %v376
        %v515 = vunpack.c.l.b16 %v377
        %v516 = vunpack.c.h.b16 %v377
        %v517 = vunpack.c.l.b16 %v378
        %v518 = vunpack.c.h.b16 %v378
        %v519 = vunpack.c.l.b16 %v379
        %v520 = vunpack.c.h.b16 %v379
        %v521 = vunpack.c.l.b16 %v380
        %v522 = vunpack.c.h.b16 %v380
        %v523 = vunpack.c.l.b16 %v381
        %v524 = vunpack.c.h.b16 %v381
        %v525 = vunpack.c.l.b16 %v382
        %v526 = vunpack.c.h.b16 %v382
        %v527 = vunpack.c.l.b16 %v383
        %v528 = vunpack.c.h.b16 %v383
        %v529 = vunpack.c.l.b16 %v384
        %v530 = vunpack.c.h.b16 %v384
        %v531 = vunpack.c.l.b16 %v385
        %v532 = vunpack.c.h.b16 %v385
        %v533 = vunpack.c.l.b16 %v386
        %v534 = vunpack.c.h.b16 %v386
        %v535 = vunpack.c.l.b16 %v387
        %v536 = vunpack.c.h.b16 %v387
        %v537 = vunpack.c.l.b16 %v388
        %v538 = vunpack.c.h.b16 %v388
        %v539 = vunpack.c.l.b16 %v389
        %v540 = vunpack.c.h.b16 %v389
        %v541 = vunpack.c.l.b16 %v390
        %v542 = vunpack.c.h.b16 %v390
        %v543 = vunpack.c.l.b16 %v391
        %v544 = vunpack.c.h.b16 %v391
        %v545 = vunpack.c.l.b16 %v392
        %v546 = vunpack.c.h.b16 %v392
        %v547 = vunpack.c.l.b16 %v393
        %v548 = vunpack.c.h.b16 %v393
        %v549 = vunpack.c.l.b16 %v394
        %v550 = vunpack.c.h.b16 %v394
        %v551 = vpack.c.b16 %v457, %v455
        %v552 = vpack.c.b16 %v458, %v456
        %v553 = vpack.c.b16 %v461, %v459
        %v554 = vpack.c.b16 %v462, %v460
        %v555 = vpack.c.b16 %v465, %v463
        %v556 = vpack.c.b16 %v466, %v464
        %v557 = vpack.c.b16 %v469, %v467
        %v558 = vpack.c.b16 %v470, %v468
        %v559 = vpack.c.b16 %v473, %v471
        %v560 = vpack.c.b16 %v474, %v472
        %v561 = vpack.c.b16 %v477, %v475
        %v562 = vpack.c.b16 %v478, %v476
        %v563 = vpack.c.b16 %v481, %v479
        %v564 = vpack.c.b16 %v482, %v480
        %v565 = vpack.c.b16 %v485, %v483
        %v566 = vpack.c.b16 %v486, %v484
        %v567 = vpack.c.b16 %v489, %v487
        %v568 = vpack.c.b16 %v490, %v488
        %v569 = vpack.c.b16 %v493, %v491
        %v570 = vpack.c.b16 %v494, %v492
        %v571 = vpack.c.b16 %v497, %v495
        %v572 = vpack.c.b16 %v498, %v496
        %v573 = vpack.c.b16 %v501, %v499
        %v574 = vpack.c.b16 %v502, %v500
        %v575 = vpack.c.b16 %v505, %v503
        %v576 = vpack.c.b16 %v506, %v504
        %v577 = vpack.c.b16 %v509, %v507
        %v578 = vpack.c.b16 %v510, %v508
        %v579 = vpack.c.b16 %v513, %v511
        %v580 = vpack.c.b16 %v514, %v512
        %v581 = vpack.c.b16 %v517, %v515
        %v582 = vpack.c.b16 %v518, %v516
        %v583 = vpack.c.b16 %v521, %v519
        %v584 = vpack.c.b16 %v522, %v520
        %v585 = vpack.c.b16 %v525, %v523
        %v586 = vpack.c.b16 %v526, %v524
        %v587 = vpack.c.b16 %v529, %v527
        %v588 = vpack.c.b16 %v530, %v528
        %v589 = vpack.c.b16 %v533, %v531
        %v590 = vpack.c.b16 %v534, %v532
        %v591 = vpack.c.b16 %v537, %v535
        %v592 = vpack.c.b16 %v538, %v536
        %v593 = vpack.c.b16 %v541, %v539
        %v594 = vpack.c.b16 %v542, %v540
        %v595 = vpack.c.b16 %v545, %v543
        %v596 = vpack.c.b16 %v546, %v544
        %v597 = vpack.c.b16 %v549, %v547
        %v598 = vpack.c.b16 %v550, %v548
        %647 = vmatprep.subr.bf16.mxu0 %v566
        %648 = vmatpush1.bf16.msra.mxu0 %v565
        %649 = vmatprep.subr.bf16.mxu0 %v564
        %650 = vmatpush1.bf16.msra.mxu0 %v563
        %651 = vmatprep.subr.bf16.mxu0 %v562
        %652 = vmatpush1.bf16.msra.mxu0 %v561
        %653 = vmatprep.subr.bf16.mxu0 %v560
        %654 = vmatpush1.bf16.msra.mxu0 %v559
        %655 = vmatprep.subr.bf16.mxu0 %v558
        %656 = vmatpush1.bf16.msra.mxu0 %v557
        %657 = vmatprep.subr.bf16.mxu0 %v556
        %658 = vmatpush1.bf16.msra.mxu0 %v555
        %659 = vmatprep.subr.bf16.mxu0 %v554
        %660 = vmatpush1.bf16.msra.mxu0 %v553
        %661 = vmatprep.subr.bf16.mxu0 %v552
        %662 = vmatpush1.bf16.msra.mxu0 %v551
        %663 = vmatprep.subr.bf16.mxu0 %v582
        %664 = vmatpush2.bf16.msra.mxu0 %v581
        %665 = vmatprep.subr.bf16.mxu0 %v580
        %666 = vmatpush2.bf16.msra.mxu0 %v579
        %667 = vmatprep.subr.bf16.mxu0 %v578
        %668 = vmatpush2.bf16.msra.mxu0 %v577
        %669 = vmatprep.subr.bf16.mxu0 %v576
        %670 = vmatpush2.bf16.msra.mxu0 %v575
        %671 = vmatprep.subr.bf16.mxu0 %v574
        %672 = vmatpush2.bf16.msra.mxu0 %v573
        %673 = vmatprep.subr.bf16.mxu0 %v572
        %674 = vmatpush2.bf16.msra.mxu0 %v571
        %675 = vmatprep.subr.bf16.mxu0 %v570
        %676 = vmatpush2.bf16.msra.mxu0 %v569
        %677 = vmatprep.subr.bf16.mxu0 %v568
        %678 = vmatpush2.bf16.msra.mxu0 %v567
        %679 = vmatprep.mubr.bf16.mxu0 %v345
        %680 = vmatmul.mubr.bf16.gmra.mxu0 %v344
        %v681 = vpop.f32.mrf.mxu0
        %v682 = vadd.f32 %v400, %v681
        %v683 = vpop.f32.mrf.mxu0
        %v684 = vadd.f32 %v404, %v683
        %v685 = vpop.f32.mrf.mxu0
        %v686 = vadd.f32 %v400, %v685
        %v687 = vpop.f32.mrf.mxu0
        %v688 = vadd.f32 %v404, %v687
        %689 = vdwg.mxu0
        %690 = vmatprep.subr.bf16.mxu0 %v598
        %691 = vmatpush1.bf16.msra.mxu0 %v597
        %692 = vmatprep.subr.bf16.mxu0 %v596
        %693 = vmatpush1.bf16.msra.mxu0 %v595
        %694 = vmatprep.subr.bf16.mxu0 %v594
        %695 = vmatpush1.bf16.msra.mxu0 %v593
        %696 = vmatprep.subr.bf16.mxu0 %v592
        %697 = vmatpush1.bf16.msra.mxu0 %v591
        %698 = vmatprep.subr.bf16.mxu0 %v590
        %699 = vmatpush1.bf16.msra.mxu0 %v589
        %700 = vmatprep.subr.bf16.mxu0 %v588
        %701 = vmatpush1.bf16.msra.mxu0 %v587
        %702 = vmatprep.subr.bf16.mxu0 %v586
        %703 = vmatpush1.bf16.msra.mxu0 %v585
        %704 = vmatprep.subr.bf16.mxu0 %v584
        %705 = vmatpush1.bf16.msra.mxu0 %v583
        %706 = vmatprep.subr.bf16.mxu0 0
        %707 = vmatpush2.bf16.msra.mxu0 0
        %708 = vmatprep.subr.bf16.mxu0 0
        %709 = vmatpush2.bf16.msra.mxu0 0
        %710 = vmatprep.subr.bf16.mxu0 0
        %711 = vmatpush2.bf16.msra.mxu0 0
        %712 = vmatprep.subr.bf16.mxu0 0
        %713 = vmatpush2.bf16.msra.mxu0 0
        %714 = vmatprep.subr.bf16.mxu0 0
        %715 = vmatpush2.bf16.msra.mxu0 0
        %716 = vmatprep.subr.bf16.mxu0 0
        %717 = vmatpush2.bf16.msra.mxu0 0
        %718 = vmatprep.subr.bf16.mxu0 0
        %719 = vmatpush2.bf16.msra.mxu0 0
        %720 = vmatprep.subr.bf16.mxu0 0
        %721 = vmatpush2.bf16.msra.mxu0 0
        %722 = vmatprep.mubr.bf16.mxu0 0
        %723 = vmatmul.mubr.bf16.gmra.mxu0 %v346
        %v724 = vpop.f32.mrf.mxu0
        %v725 = vadd.f32 %v682, %v724
        %v726 = vpop.f32.mrf.mxu0
        %v727 = vadd.f32 %v684, %v726
        %v728 = vpop.f32.mrf.mxu0
        %v729 = vadd.f32 %v686, %v728
        %v730 = vpop.f32.mrf.mxu0
        %v731 = vadd.f32 %v688, %v730
        %732 = vdwg.mxu0
        %v733 = vmax.f32 %v725, 0.0
        %v734 = vmax.f32 %v727, 0.0
        %v735 = vmax.f32 %v729, 0.0
        %v736 = vmax.f32 %v731, 0.0
        %v741 = vrot.slane %v733, 7
        %v742 = vrot.slane %v734, 7
        %v743 = vrot.slane %v735, 7
        %v744 = vsel %vm330, %v741, %v743
        %v745 = vrot.slane %v736, 7
        %v746 = vsel %vm330, %v742, %v745
        %v751 = vsel %vm330, 0.0, %v741
        %v752 = vsel %vm330, 0.0, %v742
        %v753 = vrot.slane %v733, 1
        %v754 = vrot.slane %v735, 1
        %v755 = vsel %vm337, %v753, %v754
        %v756 = vrot.slane %v734, 1
        %v757 = vrot.slane %v736, 1
        %v758 = vsel %vm337, %v756, %v757
        %v763 = vsel %vm337, %v754, 0.0
        %v764 = vsel %vm337, %v757, 0.0
        %v765 = vpack.c.bf16 %v744, %v751
        %v766 = vpack.c.bf16 %v746, %v752
        %v767 = vpack.c.bf16 %v735, %v733
        %v768 = vpack.c.bf16 %v736, %v734
        %v769 = vpack.c.bf16 %v763, %v755
        %v770 = vpack.c.bf16 %v764, %v758
        %v771 = vld [vmem:[#allocation4] sm:$0xff]
        %v772 = vld [vmem:[#allocation4 + $0x8] sm:$0xff]
        %v773 = vld [vmem:[#allocation4 + $0x10] sm:$0xff]
        %v774 = vld [vmem:[#allocation4 + $0x18] sm:$0xff]
        %v775 = vld [vmem:[#allocation4 + $0x20] sm:$0xff]
        %v776 = vld [vmem:[#allocation4 + $0x28] sm:$0xff]
        %v777 = vld [vmem:[#allocation4 + $0x30] sm:$0xff]
        %v778 = vld [vmem:[#allocation4 + $0x38] sm:$0xff]
        %v779 = vld [vmem:[#allocation4 + $0x40] sm:$0xff]
        %v780 = vld [vmem:[#allocation4 + $0x48] sm:$0xff]
        %v781 = vld [vmem:[#allocation4 + $0x50] sm:$0xff]
        %v782 = vld [vmem:[#allocation4 + $0x58] sm:$0xff]
        %v783 = vld [vmem:[#allocation4 + $0x60] sm:$0xff]
        %v784 = vld [vmem:[#allocation4 + $0x68] sm:$0xff]
        %v785 = vld [vmem:[#allocation4 + $0x70] sm:$0xff]
        %v786 = vld [vmem:[#allocation4 + $0x78] sm:$0xff]
        %v787 = vld [vmem:[#allocation4 + $0x80] sm:$0xff]
        %v788 = vld [vmem:[#allocation4 + $0x88] sm:$0xff]
        %v789 = vld [vmem:[#allocation4 + $0x90] sm:$0xff]
        %v790 = vld [vmem:[#allocation4 + $0x98] sm:$0xff]
        %v791 = vld [vmem:[#allocation4 + $0xa0] sm:$0xff]
        %v792 = vld [vmem:[#allocation4 + $0xa8] sm:$0xff]
        %v793 = vld [vmem:[#allocation4 + $0xb0] sm:$0xff]
        %v794 = vld [vmem:[#allocation4 + $0xb8] sm:$0xff]
        %v795 = vld [vmem:[#allocation4 + $0xc0] sm:$0xff]
        %v796 = vld [vmem:[#allocation4 + $0xc8] sm:$0xff]
        %v797 = vld [vmem:[#allocation4 + $0xd0] sm:$0xff]
        %v798 = vld [vmem:[#allocation4 + $0xd8] sm:$0xff]
        %v799 = vld [vmem:[#allocation4 + $0xe0] sm:$0xff]
        %v800 = vld [vmem:[#allocation4 + $0xe8] sm:$0xff]
        %v801 = vld [vmem:[#allocation4 + $0xf0] sm:$0xff]
        %v802 = vld [vmem:[#allocation4 + $0xf8] sm:$0xff]
        %v803 = vld [vmem:[#allocation4 + $0x100] sm:$0xff]
        %v804 = vld [vmem:[#allocation4 + $0x108] sm:$0xff]
        %v805 = vld [vmem:[#allocation4 + $0x110] sm:$0xff]
        %v806 = vld [vmem:[#allocation4 + $0x118] sm:$0xff]
        %v807 = vld [vmem:[#allocation4 + $0x120] sm:$0xff]
        %v808 = vld [vmem:[#allocation4 + $0x128] sm:$0xff]
        %v809 = vld [vmem:[#allocation4 + $0x130] sm:$0xff]
        %v810 = vld [vmem:[#allocation4 + $0x138] sm:$0xff]
        %v811 = vld [vmem:[#allocation4 + $0x140] sm:$0xff]
        %v812 = vld [vmem:[#allocation4 + $0x148] sm:$0xff]
        %v813 = vld [vmem:[#allocation4 + $0x150] sm:$0xff]
        %v814 = vld [vmem:[#allocation4 + $0x158] sm:$0xff]
        %v815 = vld [vmem:[#allocation4 + $0x160] sm:$0xff]
        %v816 = vld [vmem:[#allocation4 + $0x168] sm:$0xff]
        %v817 = vld [vmem:[#allocation4 + $0x170] sm:$0xff]
        %v818 = vld [vmem:[#allocation4 + $0x178] sm:$0xff]
        %v819 = vld [vmem:[#allocation4 + $0x180] sm:$0xff]
        %v820 = vld [vmem:[#allocation4 + $0x188] sm:$0xff]
        %v821 = vld [vmem:[#allocation4 + $0x190] sm:$0xff]
        %v822 = vld [vmem:[#allocation4 + $0x198] sm:$0xff]
        %v823 = vld [vmem:[#allocation4 + $0x1a0] sm:$0xff]
        %v824 = vld [vmem:[#allocation4 + $0x1a8] sm:$0xff]
        %v825 = vld [vmem:[#allocation4 + $0x1b0] sm:$0xff]
        %v826 = vld [vmem:[#allocation4 + $0x1b8] sm:$0xff]
        %v827 = vld [vmem:[#allocation4 + $0x1c0] sm:$0xff]
        %v828 = vld [vmem:[#allocation4 + $0x1c8] sm:$0xff]
        %v829 = vld [vmem:[#allocation4 + $0x1d0] sm:$0xff]
        %v830 = vld [vmem:[#allocation4 + $0x1d8] sm:$0xff]
        %v831 = vld [vmem:[#allocation4 + $0x1e0] sm:$0xff]
        %v832 = vld [vmem:[#allocation4 + $0x1e8] sm:$0xff]
        %v833 = vld [vmem:[#allocation4 + $0x1f0] sm:$0xff]
        %v834 = vld [vmem:[#allocation4 + $0x1f8] sm:$0xff]
        %v835 = vld [vmem:[#allocation4 + $0x200] sm:$0xff]
        %v836 = vld [vmem:[#allocation4 + $0x208] sm:$0xff]
        %v837 = vld [vmem:[#allocation4 + $0x210] sm:$0xff]
        %v838 = vld [vmem:[#allocation4 + $0x218] sm:$0xff]
        %v839 = vld [vmem:[#allocation4 + $0x220] sm:$0xff]
        %v840 = vld [vmem:[#allocation4 + $0x228] sm:$0xff]
        %v841 = vld [vmem:[#allocation4 + $0x230] sm:$0xff]
        %v842 = vld [vmem:[#allocation4 + $0x238] sm:$0xff]
        %v843 = vld [vmem:[#allocation4 + $0x240] sm:$0xff]
        %v844 = vld [vmem:[#allocation4 + $0x248] sm:$0xff]
        %v845 = vld [vmem:[#allocation4 + $0x250] sm:$0xff]
        %v846 = vld [vmem:[#allocation4 + $0x258] sm:$0xff]
        %v847 = vld [vmem:[#allocation4 + $0x260] sm:$0xff]
        %v848 = vld [vmem:[#allocation4 + $0x268] sm:$0xff]
        %v849 = vld [vmem:[#allocation4 + $0x270] sm:$0xff]
        %v850 = vld [vmem:[#allocation4 + $0x278] sm:$0xff]
        %v851 = vld [vmem:[#allocation4 + $0x280] sm:$0xff]
        %v852 = vld [vmem:[#allocation4 + $0x288] sm:$0xff]
        %v853 = vld [vmem:[#allocation4 + $0x290] sm:$0xff]
        %v854 = vld [vmem:[#allocation4 + $0x298] sm:$0xff]
        %v855 = vld [vmem:[#allocation4 + $0x2a0] sm:$0xff]
        %v856 = vld [vmem:[#allocation4 + $0x2a8] sm:$0xff]
        %v857 = vld [vmem:[#allocation4 + $0x2b0] sm:$0xff]
        %v858 = vld [vmem:[#allocation4 + $0x2b8] sm:$0xff]
        %v859 = vld [vmem:[#allocation4 + $0x2c0] sm:$0xff]
        %v860 = vld [vmem:[#allocation4 + $0x2c8] sm:$0xff]
        %v861 = vld [vmem:[#allocation4 + $0x2d0] sm:$0xff]
        %v862 = vld [vmem:[#allocation4 + $0x2d8] sm:$0xff]
        %v863 = vld [vmem:[#allocation4 + $0x2e0] sm:$0xff]
        %v864 = vld [vmem:[#allocation4 + $0x2e8] sm:$0xff]
        %v865 = vld [vmem:[#allocation4 + $0x2f0] sm:$0xff]
        %v866 = vld [vmem:[#allocation4 + $0x2f8] sm:$0xff]
        %v867 = vld [vmem:[%s4] sm:$0x3]
        %v869 = vlaneseq
        %v870 = vshrl.u32 %v869, 7
        %v871 = vsub.s32 0, %v870
        %v872 = vrot.slane %v867, %v871
        %v873 = vlaneseq
        %v874 = vshrl.u32 %v873, 7
        %v875 = vsub.s32 1, %v874
        %v876 = vrot.slane %v867, %v875
        %v975 = vunpack.c.l.b16 %v771
        %v976 = vunpack.c.h.b16 %v771
        %v977 = vunpack.c.l.b16 %v772
        %v978 = vunpack.c.h.b16 %v772
        %v979 = vunpack.c.l.b16 %v773
        %v980 = vunpack.c.h.b16 %v773
        %v981 = vunpack.c.l.b16 %v774
        %v982 = vunpack.c.h.b16 %v774
        %v983 = vunpack.c.l.b16 %v775
        %v984 = vunpack.c.h.b16 %v775
        %v985 = vunpack.c.l.b16 %v776
        %v986 = vunpack.c.h.b16 %v776
        %v987 = vunpack.c.l.b16 %v777
        %v988 = vunpack.c.h.b16 %v777
        %v989 = vunpack.c.l.b16 %v778
        %v990 = vunpack.c.h.b16 %v778
        %v991 = vunpack.c.l.b16 %v779
        %v992 = vunpack.c.h.b16 %v779
        %v993 = vunpack.c.l.b16 %v780
        %v994 = vunpack.c.h.b16 %v780
        %v995 = vunpack.c.l.b16 %v781
        %v996 = vunpack.c.h.b16 %v781
        %v997 = vunpack.c.l.b16 %v782
        %v998 = vunpack.c.h.b16 %v782
        %v999 = vunpack.c.l.b16 %v783
        %v1000 = vunpack.c.h.b16 %v783
        %v1001 = vunpack.c.l.b16 %v784
        %v1002 = vunpack.c.h.b16 %v784
        %v1003 = vunpack.c.l.b16 %v785
        %v1004 = vunpack.c.h.b16 %v785
        %v1005 = vunpack.c.l.b16 %v786
        %v1006 = vunpack.c.h.b16 %v786
        %v1007 = vunpack.c.l.b16 %v787
        %v1008 = vunpack.c.h.b16 %v787
        %v1009 = vunpack.c.l.b16 %v788
        %v1010 = vunpack.c.h.b16 %v788
        %v1011 = vunpack.c.l.b16 %v789
        %v1012 = vunpack.c.h.b16 %v789
        %v1013 = vunpack.c.l.b16 %v790
        %v1014 = vunpack.c.h.b16 %v790
        %v1015 = vunpack.c.l.b16 %v791
        %v1016 = vunpack.c.h.b16 %v791
        %v1017 = vunpack.c.l.b16 %v792
        %v1018 = vunpack.c.h.b16 %v792
        %v1019 = vunpack.c.l.b16 %v793
        %v1020 = vunpack.c.h.b16 %v793
        %v1021 = vunpack.c.l.b16 %v794
        %v1022 = vunpack.c.h.b16 %v794
        %v1023 = vunpack.c.l.b16 %v795
        %v1024 = vunpack.c.h.b16 %v795
        %v1025 = vunpack.c.l.b16 %v796
        %v1026 = vunpack.c.h.b16 %v796
        %v1027 = vunpack.c.l.b16 %v797
        %v1028 = vunpack.c.h.b16 %v797
        %v1029 = vunpack.c.l.b16 %v798
        %v1030 = vunpack.c.h.b16 %v798
        %v1031 = vunpack.c.l.b16 %v799
        %v1032 = vunpack.c.h.b16 %v799
        %v1033 = vunpack.c.l.b16 %v800
        %v1034 = vunpack.c.h.b16 %v800
        %v1035 = vunpack.c.l.b16 %v801
        %v1036 = vunpack.c.h.b16 %v801
        %v1037 = vunpack.c.l.b16 %v802
        %v1038 = vunpack.c.h.b16 %v802
        %v1039 = vunpack.c.l.b16 %v803
        %v1040 = vunpack.c.h.b16 %v803
        %v1041 = vunpack.c.l.b16 %v804
        %v1042 = vunpack.c.h.b16 %v804
        %v1043 = vunpack.c.l.b16 %v805
        %v1044 = vunpack.c.h.b16 %v805
        %v1045 = vunpack.c.l.b16 %v806
        %v1046 = vunpack.c.h.b16 %v806
        %v1047 = vunpack.c.l.b16 %v807
        %v1048 = vunpack.c.h.b16 %v807
        %v1049 = vunpack.c.l.b16 %v808
        %v1050 = vunpack.c.h.b16 %v808
        %v1051 = vunpack.c.l.b16 %v809
        %v1052 = vunpack.c.h.b16 %v809
        %v1053 = vunpack.c.l.b16 %v810
        %v1054 = vunpack.c.h.b16 %v810
        %v1055 = vunpack.c.l.b16 %v811
        %v1056 = vunpack.c.h.b16 %v811
        %v1057 = vunpack.c.l.b16 %v812
        %v1058 = vunpack.c.h.b16 %v812
        %v1059 = vunpack.c.l.b16 %v813
        %v1060 = vunpack.c.h.b16 %v813
        %v1061 = vunpack.c.l.b16 %v814
        %v1062 = vunpack.c.h.b16 %v814
        %v1063 = vunpack.c.l.b16 %v815
        %v1064 = vunpack.c.h.b16 %v815
        %v1065 = vunpack.c.l.b16 %v816
        %v1066 = vunpack.c.h.b16 %v816
        %v1067 = vunpack.c.l.b16 %v817
        %v1068 = vunpack.c.h.b16 %v817
        %v1069 = vunpack.c.l.b16 %v818
        %v1070 = vunpack.c.h.b16 %v818
        %v1071 = vunpack.c.l.b16 %v819
        %v1072 = vunpack.c.h.b16 %v819
        %v1073 = vunpack.c.l.b16 %v820
        %v1074 = vunpack.c.h.b16 %v820
        %v1075 = vunpack.c.l.b16 %v821
        %v1076 = vunpack.c.h.b16 %v821
        %v1077 = vunpack.c.l.b16 %v822
        %v1078 = vunpack.c.h.b16 %v822
        %v1079 = vunpack.c.l.b16 %v823
        %v1080 = vunpack.c.h.b16 %v823
        %v1081 = vunpack.c.l.b16 %v824
        %v1082 = vunpack.c.h.b16 %v824
        %v1083 = vunpack.c.l.b16 %v825
        %v1084 = vunpack.c.h.b16 %v825
        %v1085 = vunpack.c.l.b16 %v826
        %v1086 = vunpack.c.h.b16 %v826
        %v1087 = vunpack.c.l.b16 %v827
        %v1088 = vunpack.c.h.b16 %v827
        %v1089 = vunpack.c.l.b16 %v828
        %v1090 = vunpack.c.h.b16 %v828
        %v1091 = vunpack.c.l.b16 %v829
        %v1092 = vunpack.c.h.b16 %v829
        %v1093 = vunpack.c.l.b16 %v830
        %v1094 = vunpack.c.h.b16 %v830
        %v1095 = vunpack.c.l.b16 %v831
        %v1096 = vunpack.c.h.b16 %v831
        %v1097 = vunpack.c.l.b16 %v832
        %v1098 = vunpack.c.h.b16 %v832
        %v1099 = vunpack.c.l.b16 %v833
        %v1100 = vunpack.c.h.b16 %v833
        %v1101 = vunpack.c.l.b16 %v834
        %v1102 = vunpack.c.h.b16 %v834
        %v1103 = vunpack.c.l.b16 %v835
        %v1104 = vunpack.c.h.b16 %v835
        %v1105 = vunpack.c.l.b16 %v836
        %v1106 = vunpack.c.h.b16 %v836
        %v1107 = vunpack.c.l.b16 %v837
        %v1108 = vunpack.c.h.b16 %v837
        %v1109 = vunpack.c.l.b16 %v838
        %v1110 = vunpack.c.h.b16 %v838
        %v1111 = vunpack.c.l.b16 %v839
        %v1112 = vunpack.c.h.b16 %v839
        %v1113 = vunpack.c.l.b16 %v840
        %v1114 = vunpack.c.h.b16 %v840
        %v1115 = vunpack.c.l.b16 %v841
        %v1116 = vunpack.c.h.b16 %v841
        %v1117 = vunpack.c.l.b16 %v842
        %v1118 = vunpack.c.h.b16 %v842
        %v1119 = vunpack.c.l.b16 %v843
        %v1120 = vunpack.c.h.b16 %v843
        %v1121 = vunpack.c.l.b16 %v844
        %v1122 = vunpack.c.h.b16 %v844
        %v1123 = vunpack.c.l.b16 %v845
        %v1124 = vunpack.c.h.b16 %v845
        %v1125 = vunpack.c.l.b16 %v846
        %v1126 = vunpack.c.h.b16 %v846
        %v1127 = vunpack.c.l.b16 %v847
        %v1128 = vunpack.c.h.b16 %v847
        %v1129 = vunpack.c.l.b16 %v848
        %v1130 = vunpack.c.h.b16 %v848
        %v1131 = vunpack.c.l.b16 %v849
        %v1132 = vunpack.c.h.b16 %v849
        %v1133 = vunpack.c.l.b16 %v850
        %v1134 = vunpack.c.h.b16 %v850
        %v1135 = vunpack.c.l.b16 %v851
        %v1136 = vunpack.c.h.b16 %v851
        %v1137 = vunpack.c.l.b16 %v852
        %v1138 = vunpack.c.h.b16 %v852
        %v1139 = vunpack.c.l.b16 %v853
        %v1140 = vunpack.c.h.b16 %v853
        %v1141 = vunpack.c.l.b16 %v854
        %v1142 = vunpack.c.h.b16 %v854
        %v1143 = vunpack.c.l.b16 %v855
        %v1144 = vunpack.c.h.b16 %v855
        %v1145 = vunpack.c.l.b16 %v856
        %v1146 = vunpack.c.h.b16 %v856
        %v1147 = vunpack.c.l.b16 %v857
        %v1148 = vunpack.c.h.b16 %v857
        %v1149 = vunpack.c.l.b16 %v858
        %v1150 = vunpack.c.h.b16 %v858
        %v1151 = vunpack.c.l.b16 %v859
        %v1152 = vunpack.c.h.b16 %v859
        %v1153 = vunpack.c.l.b16 %v860
        %v1154 = vunpack.c.h.b16 %v860
        %v1155 = vunpack.c.l.b16 %v861
        %v1156 = vunpack.c.h.b16 %v861
        %v1157 = vunpack.c.l.b16 %v862
        %v1158 = vunpack.c.h.b16 %v862
        %v1159 = vunpack.c.l.b16 %v863
        %v1160 = vunpack.c.h.b16 %v863
        %v1161 = vunpack.c.l.b16 %v864
        %v1162 = vunpack.c.h.b16 %v864
        %v1163 = vunpack.c.l.b16 %v865
        %v1164 = vunpack.c.h.b16 %v865
        %v1165 = vunpack.c.l.b16 %v866
        %v1166 = vunpack.c.h.b16 %v866
        %v1167 = vpack.c.b16 %v977, %v975
        %v1168 = vpack.c.b16 %v978, %v976
        %v1169 = vpack.c.b16 %v981, %v979
        %v1170 = vpack.c.b16 %v982, %v980
        %v1171 = vpack.c.b16 %v985, %v983
        %v1172 = vpack.c.b16 %v986, %v984
        %v1173 = vpack.c.b16 %v989, %v987
        %v1174 = vpack.c.b16 %v990, %v988
        %v1175 = vpack.c.b16 %v993, %v991
        %v1176 = vpack.c.b16 %v994, %v992
        %v1177 = vpack.c.b16 %v997, %v995
        %v1178 = vpack.c.b16 %v998, %v996
        %v1179 = vpack.c.b16 %v1001, %v999
        %v1180 = vpack.c.b16 %v1002, %v1000
        %v1181 = vpack.c.b16 %v1005, %v1003
        %v1182 = vpack.c.b16 %v1006, %v1004
        %v1183 = vpack.c.b16 %v1009, %v1007
        %v1184 = vpack.c.b16 %v1010, %v1008
        %v1185 = vpack.c.b16 %v1013, %v1011
        %v1186 = vpack.c.b16 %v1014, %v1012
        %v1187 = vpack.c.b16 %v1017, %v1015
        %v1188 = vpack.c.b16 %v1018, %v1016
        %v1189 = vpack.c.b16 %v1021, %v1019
        %v1190 = vpack.c.b16 %v1022, %v1020
        %v1191 = vpack.c.b16 %v1025, %v1023
        %v1192 = vpack.c.b16 %v1026, %v1024
        %v1193 = vpack.c.b16 %v1029, %v1027
        %v1194 = vpack.c.b16 %v1030, %v1028
        %v1195 = vpack.c.b16 %v1033, %v1031
        %v1196 = vpack.c.b16 %v1034, %v1032
        %v1197 = vpack.c.b16 %v1037, %v1035
        %v1198 = vpack.c.b16 %v1038, %v1036
        %v1199 = vpack.c.b16 %v1041, %v1039
        %v1200 = vpack.c.b16 %v1042, %v1040
        %v1201 = vpack.c.b16 %v1045, %v1043
        %v1202 = vpack.c.b16 %v1046, %v1044
        %v1203 = vpack.c.b16 %v1049, %v1047
        %v1204 = vpack.c.b16 %v1050, %v1048
        %v1205 = vpack.c.b16 %v1053, %v1051
        %v1206 = vpack.c.b16 %v1054, %v1052
        %v1207 = vpack.c.b16 %v1057, %v1055
        %v1208 = vpack.c.b16 %v1058, %v1056
        %v1209 = vpack.c.b16 %v1061, %v1059
        %v1210 = vpack.c.b16 %v1062, %v1060
        %v1211 = vpack.c.b16 %v1065, %v1063
        %v1212 = vpack.c.b16 %v1066, %v1064
        %v1213 = vpack.c.b16 %v1069, %v1067
        %v1214 = vpack.c.b16 %v1070, %v1068
        %v1215 = vpack.c.b16 %v1073, %v1071
        %v1216 = vpack.c.b16 %v1074, %v1072
        %v1217 = vpack.c.b16 %v1077, %v1075
        %v1218 = vpack.c.b16 %v1078, %v1076
        %v1219 = vpack.c.b16 %v1081, %v1079
        %v1220 = vpack.c.b16 %v1082, %v1080
        %v1221 = vpack.c.b16 %v1085, %v1083
        %v1222 = vpack.c.b16 %v1086, %v1084
        %v1223 = vpack.c.b16 %v1089, %v1087
        %v1224 = vpack.c.b16 %v1090, %v1088
        %v1225 = vpack.c.b16 %v1093, %v1091
        %v1226 = vpack.c.b16 %v1094, %v1092
        %v1227 = vpack.c.b16 %v1097, %v1095
        %v1228 = vpack.c.b16 %v1098, %v1096
        %v1229 = vpack.c.b16 %v1101, %v1099
        %v1230 = vpack.c.b16 %v1102, %v1100
        %v1231 = vpack.c.b16 %v1105, %v1103
        %v1232 = vpack.c.b16 %v1106, %v1104
        %v1233 = vpack.c.b16 %v1109, %v1107
        %v1234 = vpack.c.b16 %v1110, %v1108
        %v1235 = vpack.c.b16 %v1113, %v1111
        %v1236 = vpack.c.b16 %v1114, %v1112
        %v1237 = vpack.c.b16 %v1117, %v1115
        %v1238 = vpack.c.b16 %v1118, %v1116
        %v1239 = vpack.c.b16 %v1121, %v1119
        %v1240 = vpack.c.b16 %v1122, %v1120
        %v1241 = vpack.c.b16 %v1125, %v1123
        %v1242 = vpack.c.b16 %v1126, %v1124
        %v1243 = vpack.c.b16 %v1129, %v1127
        %v1244 = vpack.c.b16 %v1130, %v1128
        %v1245 = vpack.c.b16 %v1133, %v1131
        %v1246 = vpack.c.b16 %v1134, %v1132
        %v1247 = vpack.c.b16 %v1137, %v1135
        %v1248 = vpack.c.b16 %v1138, %v1136
        %v1249 = vpack.c.b16 %v1141, %v1139
        %v1250 = vpack.c.b16 %v1142, %v1140
        %v1251 = vpack.c.b16 %v1145, %v1143
        %v1252 = vpack.c.b16 %v1146, %v1144
        %v1253 = vpack.c.b16 %v1149, %v1147
        %v1254 = vpack.c.b16 %v1150, %v1148
        %v1255 = vpack.c.b16 %v1153, %v1151
        %v1256 = vpack.c.b16 %v1154, %v1152
        %v1257 = vpack.c.b16 %v1157, %v1155
        %v1258 = vpack.c.b16 %v1158, %v1156
        %v1259 = vpack.c.b16 %v1161, %v1159
        %v1260 = vpack.c.b16 %v1162, %v1160
        %v1261 = vpack.c.b16 %v1165, %v1163
        %v1262 = vpack.c.b16 %v1166, %v1164
        %1359 = vmatprep.subr.bf16.mxu0 %v1182
        %1360 = vmatpush1.bf16.msra.mxu0 %v1181
        %1361 = vmatprep.subr.bf16.mxu0 %v1180
        %1362 = vmatpush1.bf16.msra.mxu0 %v1179
        %1363 = vmatprep.subr.bf16.mxu0 %v1178
        %1364 = vmatpush1.bf16.msra.mxu0 %v1177
        %1365 = vmatprep.subr.bf16.mxu0 %v1176
        %1366 = vmatpush1.bf16.msra.mxu0 %v1175
        %1367 = vmatprep.subr.bf16.mxu0 %v1174
        %1368 = vmatpush1.bf16.msra.mxu0 %v1173
        %1369 = vmatprep.subr.bf16.mxu0 %v1172
        %1370 = vmatpush1.bf16.msra.mxu0 %v1171
        %1371 = vmatprep.subr.bf16.mxu0 %v1170
        %1372 = vmatpush1.bf16.msra.mxu0 %v1169
        %1373 = vmatprep.subr.bf16.mxu0 %v1168
        %1374 = vmatpush1.bf16.msra.mxu0 %v1167
        %1375 = vmatprep.subr.bf16.mxu0 %v1198
        %1376 = vmatpush2.bf16.msra.mxu0 %v1197
        %1377 = vmatprep.subr.bf16.mxu0 %v1196
        %1378 = vmatpush2.bf16.msra.mxu0 %v1195
        %1379 = vmatprep.subr.bf16.mxu0 %v1194
        %1380 = vmatpush2.bf16.msra.mxu0 %v1193
        %1381 = vmatprep.subr.bf16.mxu0 %v1192
        %1382 = vmatpush2.bf16.msra.mxu0 %v1191
        %1383 = vmatprep.subr.bf16.mxu0 %v1190
        %1384 = vmatpush2.bf16.msra.mxu0 %v1189
        %1385 = vmatprep.subr.bf16.mxu0 %v1188
        %1386 = vmatpush2.bf16.msra.mxu0 %v1187
        %1387 = vmatprep.subr.bf16.mxu0 %v1186
        %1388 = vmatpush2.bf16.msra.mxu0 %v1185
        %1389 = vmatprep.subr.bf16.mxu0 %v1184
        %1390 = vmatpush2.bf16.msra.mxu0 %v1183
        %1391 = vmatprep.mubr.bf16.mxu0 %v766
        %1392 = vmatmul.mubr.bf16.gmra.mxu0 %v765
        %v1393 = vpop.f32.mrf.mxu0
        %v1394 = vadd.f32 %v872, %v1393
        %v1395 = vpop.f32.mrf.mxu0
        %v1396 = vadd.f32 %v876, %v1395
        %v1397 = vpop.f32.mrf.mxu0
        %v1398 = vadd.f32 %v872, %v1397
        %v1399 = vpop.f32.mrf.mxu0
        %v1400 = vadd.f32 %v876, %v1399
        %1401 = vdwg.mxu0
        %1402 = vmatprep.subr.bf16.mxu0 %v1214
        %1403 = vmatpush1.bf16.msra.mxu0 %v1213
        %1404 = vmatprep.subr.bf16.mxu0 %v1212
        %1405 = vmatpush1.bf16.msra.mxu0 %v1211
        %1406 = vmatprep.subr.bf16.mxu0 %v1210
        %1407 = vmatpush1.bf16.msra.mxu0 %v1209
        %1408 = vmatprep.subr.bf16.mxu0 %v1208
        %1409 = vmatpush1.bf16.msra.mxu0 %v1207
        %1410 = vmatprep.subr.bf16.mxu0 %v1206
        %1411 = vmatpush1.bf16.msra.mxu0 %v1205
        %1412 = vmatprep.subr.bf16.mxu0 %v1204
        %1413 = vmatpush1.bf16.msra.mxu0 %v1203
        %1414 = vmatprep.subr.bf16.mxu0 %v1202
        %1415 = vmatpush1.bf16.msra.mxu0 %v1201
        %1416 = vmatprep.subr.bf16.mxu0 %v1200
        %1417 = vmatpush1.bf16.msra.mxu0 %v1199
        %1418 = vmatprep.subr.bf16.mxu0 %v1230
        %1419 = vmatpush2.bf16.msra.mxu0 %v1229
        %1420 = vmatprep.subr.bf16.mxu0 %v1228
        %1421 = vmatpush2.bf16.msra.mxu0 %v1227
        %1422 = vmatprep.subr.bf16.mxu0 %v1226
        %1423 = vmatpush2.bf16.msra.mxu0 %v1225
        %1424 = vmatprep.subr.bf16.mxu0 %v1224
        %1425 = vmatpush2.bf16.msra.mxu0 %v1223
        %1426 = vmatprep.subr.bf16.mxu0 %v1222
        %1427 = vmatpush2.bf16.msra.mxu0 %v1221
        %1428 = vmatprep.subr.bf16.mxu0 %v1220
        %1429 = vmatpush2.bf16.msra.mxu0 %v1219
        %1430 = vmatprep.subr.bf16.mxu0 %v1218
        %1431 = vmatpush2.bf16.msra.mxu0 %v1217
        %1432 = vmatprep.subr.bf16.mxu0 %v1216
        %1433 = vmatpush2.bf16.msra.mxu0 %v1215
        %1434 = vmatprep.mubr.bf16.mxu0 %v768
        %1435 = vmatmul.mubr.bf16.gmra.mxu0 %v767
        %v1436 = vpop.f32.mrf.mxu0
        %v1437 = vadd.f32 %v1394, %v1436
        %v1438 = vpop.f32.mrf.mxu0
        %v1439 = vadd.f32 %v1396, %v1438
        %v1440 = vpop.f32.mrf.mxu0
        %v1441 = vadd.f32 %v1398, %v1440
        %v1442 = vpop.f32.mrf.mxu0
        %v1443 = vadd.f32 %v1400, %v1442
        %1444 = vdwg.mxu0
        %1445 = vmatprep.subr.bf16.mxu0 %v1246
        %1446 = vmatpush1.bf16.msra.mxu0 %v1245
        %1447 = vmatprep.subr.bf16.mxu0 %v1244
        %1448 = vmatpush1.bf16.msra.mxu0 %v1243
        %1449 = vmatprep.subr.bf16.mxu0 %v1242
        %1450 = vmatpush1.bf16.msra.mxu0 %v1241
        %1451 = vmatprep.subr.bf16.mxu0 %v1240
        %1452 = vmatpush1.bf16.msra.mxu0 %v1239
        %1453 = vmatprep.subr.bf16.mxu0 %v1238
        %1454 = vmatpush1.bf16.msra.mxu0 %v1237
        %1455 = vmatprep.subr.bf16.mxu0 %v1236
        %1456 = vmatpush1.bf16.msra.mxu0 %v1235
        %1457 = vmatprep.subr.bf16.mxu0 %v1234
        %1458 = vmatpush1.bf16.msra.mxu0 %v1233
        %1459 = vmatprep.subr.bf16.mxu0 %v1232
        %1460 = vmatpush1.bf16.msra.mxu0 %v1231
        %1461 = vmatprep.subr.bf16.mxu0 %v1262
        %1462 = vmatpush2.bf16.msra.mxu0 %v1261
        %1463 = vmatprep.subr.bf16.mxu0 %v1260
        %1464 = vmatpush2.bf16.msra.mxu0 %v1259
        %1465 = vmatprep.subr.bf16.mxu0 %v1258
        %1466 = vmatpush2.bf16.msra.mxu0 %v1257
        %1467 = vmatprep.subr.bf16.mxu0 %v1256
        %1468 = vmatpush2.bf16.msra.mxu0 %v1255
        %1469 = vmatprep.subr.bf16.mxu0 %v1254
        %1470 = vmatpush2.bf16.msra.mxu0 %v1253
        %1471 = vmatprep.subr.bf16.mxu0 %v1252
        %1472 = vmatpush2.bf16.msra.mxu0 %v1251
        %1473 = vmatprep.subr.bf16.mxu0 %v1250
        %1474 = vmatpush2.bf16.msra.mxu0 %v1249
        %1475 = vmatprep.subr.bf16.mxu0 %v1248
        %1476 = vmatpush2.bf16.msra.mxu0 %v1247
        %1477 = vmatprep.mubr.bf16.mxu0 %v770
        %1478 = vmatmul.mubr.bf16.gmra.mxu0 %v769
        %v1479 = vpop.f32.mrf.mxu0
        %v1480 = vadd.f32 %v1437, %v1479
        %v1481 = vpop.f32.mrf.mxu0
        %v1482 = vadd.f32 %v1439, %v1481
        %v1483 = vpop.f32.mrf.mxu0
        %v1484 = vadd.f32 %v1441, %v1483
        %v1485 = vpop.f32.mrf.mxu0
        %v1486 = vadd.f32 %v1443, %v1485
        %1487 = vdwg.mxu0
        %v1488 = vmax.f32 %v1480, 0.0
        %v1489 = vmax.f32 %v1482, 0.0
        %v1490 = vmax.f32 %v1484, 0.0
        %v1491 = vmax.f32 %v1486, 0.0
        %v1496 = vrot.slane %v1488, 7
        %v1497 = vrot.slane %v1489, 7
        %v1498 = vrot.slane %v1490, 7
        %v1499 = vsel %vm330, %v1496, %v1498
        %v1500 = vrot.slane %v1491, 7
        %v1501 = vsel %vm330, %v1497, %v1500
        %v1506 = vsel %vm330, 0.0, %v1496
        %v1507 = vsel %vm330, 0.0, %v1497
        %v1508 = vrot.slane %v1488, 1
        %v1509 = vrot.slane %v1490, 1
        %v1510 = vsel %vm337, %v1508, %v1509
        %v1511 = vrot.slane %v1489, 1
        %v1512 = vrot.slane %v1491, 1
        %v1513 = vsel %vm337, %v1511, %v1512
        %v1518 = vsel %vm337, %v1509, 0.0
        %v1519 = vsel %vm337, %v1512, 0.0
        %v1520 = vpack.c.bf16 %v1499, %v1506
        %v1521 = vpack.c.bf16 %v1501, %v1507
        %v1522 = vpack.c.bf16 %v1490, %v1488
        %v1523 = vpack.c.bf16 %v1491, %v1489
        %v1524 = vpack.c.bf16 %v1518, %v1510
        %v1525 = vpack.c.bf16 %v1519, %v1513
        %v1526 = vld [vmem:[#allocation6] sm:$0xff]
        %v1527 = vld [vmem:[#allocation6 + $0x8] sm:$0xff]
        %v1528 = vld [vmem:[#allocation6 + $0x10] sm:$0xff]
        %v1529 = vld [vmem:[#allocation6 + $0x18] sm:$0xff]
        %v1530 = vld [vmem:[#allocation6 + $0x20] sm:$0xff]
        %v1531 = vld [vmem:[#allocation6 + $0x28] sm:$0xff]
        %v1532 = vld [vmem:[#allocation6 + $0x30] sm:$0xff]
        %v1533 = vld [vmem:[#allocation6 + $0x38] sm:$0xff]
        %v1534 = vld [vmem:[#allocation6 + $0x40] sm:$0xff]
        %v1535 = vld [vmem:[#allocation6 + $0x48] sm:$0xff]
        %v1536 = vld [vmem:[#allocation6 + $0x50] sm:$0xff]
        %v1537 = vld [vmem:[#allocation6 + $0x58] sm:$0xff]
        %v1538 = vld [vmem:[#allocation6 + $0x60] sm:$0xff]
        %v1539 = vld [vmem:[#allocation6 + $0x68] sm:$0xff]
        %v1540 = vld [vmem:[#allocation6 + $0x70] sm:$0xff]
        %v1541 = vld [vmem:[#allocation6 + $0x78] sm:$0xff]
        %v1542 = vld [vmem:[#allocation6 + $0x80] sm:$0xff]
        %v1543 = vld [vmem:[#allocation6 + $0x88] sm:$0xff]
        %v1544 = vld [vmem:[#allocation6 + $0x90] sm:$0xff]
        %v1545 = vld [vmem:[#allocation6 + $0x98] sm:$0xff]
        %v1546 = vld [vmem:[#allocation6 + $0xa0] sm:$0xff]
        %v1547 = vld [vmem:[#allocation6 + $0xa8] sm:$0xff]
        %v1548 = vld [vmem:[#allocation6 + $0xb0] sm:$0xff]
        %v1549 = vld [vmem:[#allocation6 + $0xb8] sm:$0xff]
        %v1550 = vld [vmem:[#allocation6 + $0xc0] sm:$0xff]
        %v1551 = vld [vmem:[#allocation6 + $0xc8] sm:$0xff]
        %v1552 = vld [vmem:[#allocation6 + $0xd0] sm:$0xff]
        %v1553 = vld [vmem:[#allocation6 + $0xd8] sm:$0xff]
        %v1554 = vld [vmem:[#allocation6 + $0xe0] sm:$0xff]
        %v1555 = vld [vmem:[#allocation6 + $0xe8] sm:$0xff]
        %v1556 = vld [vmem:[#allocation6 + $0xf0] sm:$0xff]
        %v1557 = vld [vmem:[#allocation6 + $0xf8] sm:$0xff]
        %v1558 = vld [vmem:[#allocation6 + $0x100] sm:$0xff]
        %v1559 = vld [vmem:[#allocation6 + $0x108] sm:$0xff]
        %v1560 = vld [vmem:[#allocation6 + $0x110] sm:$0xff]
        %v1561 = vld [vmem:[#allocation6 + $0x118] sm:$0xff]
        %v1562 = vld [vmem:[#allocation6 + $0x120] sm:$0xff]
        %v1563 = vld [vmem:[#allocation6 + $0x128] sm:$0xff]
        %v1564 = vld [vmem:[#allocation6 + $0x130] sm:$0xff]
        %v1565 = vld [vmem:[#allocation6 + $0x138] sm:$0xff]
        %v1566 = vld [vmem:[#allocation6 + $0x140] sm:$0xff]
        %v1567 = vld [vmem:[#allocation6 + $0x148] sm:$0xff]
        %v1568 = vld [vmem:[#allocation6 + $0x150] sm:$0xff]
        %v1569 = vld [vmem:[#allocation6 + $0x158] sm:$0xff]
        %v1570 = vld [vmem:[#allocation6 + $0x160] sm:$0xff]
        %v1571 = vld [vmem:[#allocation6 + $0x168] sm:$0xff]
        %v1572 = vld [vmem:[#allocation6 + $0x170] sm:$0xff]
        %v1573 = vld [vmem:[#allocation6 + $0x178] sm:$0xff]
        %v1574 = vld [vmem:[#allocation6 + $0x180] sm:$0xff]
        %v1575 = vld [vmem:[#allocation6 + $0x188] sm:$0xff]
        %v1576 = vld [vmem:[#allocation6 + $0x190] sm:$0xff]
        %v1577 = vld [vmem:[#allocation6 + $0x198] sm:$0xff]
        %v1578 = vld [vmem:[#allocation6 + $0x1a0] sm:$0xff]
        %v1579 = vld [vmem:[#allocation6 + $0x1a8] sm:$0xff]
        %v1580 = vld [vmem:[#allocation6 + $0x1b0] sm:$0xff]
        %v1581 = vld [vmem:[#allocation6 + $0x1b8] sm:$0xff]
        %v1582 = vld [vmem:[#allocation6 + $0x1c0] sm:$0xff]
        %v1583 = vld [vmem:[#allocation6 + $0x1c8] sm:$0xff]
        %v1584 = vld [vmem:[#allocation6 + $0x1d0] sm:$0xff]
        %v1585 = vld [vmem:[#allocation6 + $0x1d8] sm:$0xff]
        %v1586 = vld [vmem:[#allocation6 + $0x1e0] sm:$0xff]
        %v1587 = vld [vmem:[#allocation6 + $0x1e8] sm:$0xff]
        %v1588 = vld [vmem:[#allocation6 + $0x1f0] sm:$0xff]
        %v1589 = vld [vmem:[#allocation6 + $0x1f8] sm:$0xff]
        %v1590 = vld [vmem:[#allocation6 + $0x200] sm:$0xff]
        %v1591 = vld [vmem:[#allocation6 + $0x208] sm:$0xff]
        %v1592 = vld [vmem:[#allocation6 + $0x210] sm:$0xff]
        %v1593 = vld [vmem:[#allocation6 + $0x218] sm:$0xff]
        %v1594 = vld [vmem:[#allocation6 + $0x220] sm:$0xff]
        %v1595 = vld [vmem:[#allocation6 + $0x228] sm:$0xff]
        %v1596 = vld [vmem:[#allocation6 + $0x230] sm:$0xff]
        %v1597 = vld [vmem:[#allocation6 + $0x238] sm:$0xff]
        %v1598 = vld [vmem:[#allocation6 + $0x240] sm:$0xff]
        %v1599 = vld [vmem:[#allocation6 + $0x248] sm:$0xff]
        %v1600 = vld [vmem:[#allocation6 + $0x250] sm:$0xff]
        %v1601 = vld [vmem:[#allocation6 + $0x258] sm:$0xff]
        %v1602 = vld [vmem:[#allocation6 + $0x260] sm:$0xff]
        %v1603 = vld [vmem:[#allocation6 + $0x268] sm:$0xff]
        %v1604 = vld [vmem:[#allocation6 + $0x270] sm:$0xff]
        %v1605 = vld [vmem:[#allocation6 + $0x278] sm:$0xff]
        %v1606 = vld [vmem:[#allocation6 + $0x280] sm:$0xff]
        %v1607 = vld [vmem:[#allocation6 + $0x288] sm:$0xff]
        %v1608 = vld [vmem:[#allocation6 + $0x290] sm:$0xff]
        %v1609 = vld [vmem:[#allocation6 + $0x298] sm:$0xff]
        %v1610 = vld [vmem:[#allocation6 + $0x2a0] sm:$0xff]
        %v1611 = vld [vmem:[#allocation6 + $0x2a8] sm:$0xff]
        %v1612 = vld [vmem:[#allocation6 + $0x2b0] sm:$0xff]
        %v1613 = vld [vmem:[#allocation6 + $0x2b8] sm:$0xff]
        %v1614 = vld [vmem:[#allocation6 + $0x2c0] sm:$0xff]
        %v1615 = vld [vmem:[#allocation6 + $0x2c8] sm:$0xff]
        %v1616 = vld [vmem:[#allocation6 + $0x2d0] sm:$0xff]
        %v1617 = vld [vmem:[#allocation6 + $0x2d8] sm:$0xff]
        %v1618 = vld [vmem:[#allocation6 + $0x2e0] sm:$0xff]
        %v1619 = vld [vmem:[#allocation6 + $0x2e8] sm:$0xff]
        %v1620 = vld [vmem:[#allocation6 + $0x2f0] sm:$0xff]
        %v1621 = vld [vmem:[#allocation6 + $0x2f8] sm:$0xff]
        %v1622 = vld [vmem:[%s6] sm:$0x3]
        %v1624 = vlaneseq
        %v1625 = vshrl.u32 %v1624, 7
        %v1626 = vsub.s32 0, %v1625
        %v1627 = vrot.slane %v1622, %v1626
        %v1628 = vlaneseq
        %v1629 = vshrl.u32 %v1628, 7
        %v1630 = vsub.s32 1, %v1629
        %v1631 = vrot.slane %v1622, %v1630
        %v1730 = vunpack.c.l.b16 %v1526
        %v1731 = vunpack.c.h.b16 %v1526
        %v1732 = vunpack.c.l.b16 %v1527
        %v1733 = vunpack.c.h.b16 %v1527
        %v1734 = vunpack.c.l.b16 %v1528
        %v1735 = vunpack.c.h.b16 %v1528
        %v1736 = vunpack.c.l.b16 %v1529
        %v1737 = vunpack.c.h.b16 %v1529
        %v1738 = vunpack.c.l.b16 %v1530
        %v1739 = vunpack.c.h.b16 %v1530
        %v1740 = vunpack.c.l.b16 %v1531
        %v1741 = vunpack.c.h.b16 %v1531
        %v1742 = vunpack.c.l.b16 %v1532
        %v1743 = vunpack.c.h.b16 %v1532
        %v1744 = vunpack.c.l.b16 %v1533
        %v1745 = vunpack.c.h.b16 %v1533
        %v1746 = vunpack.c.l.b16 %v1534
        %v1747 = vunpack.c.h.b16 %v1534
        %v1748 = vunpack.c.l.b16 %v1535
        %v1749 = vunpack.c.h.b16 %v1535
        %v1750 = vunpack.c.l.b16 %v1536
        %v1751 = vunpack.c.h.b16 %v1536
        %v1752 = vunpack.c.l.b16 %v1537
        %v1753 = vunpack.c.h.b16 %v1537
        %v1754 = vunpack.c.l.b16 %v1538
        %v1755 = vunpack.c.h.b16 %v1538
        %v1756 = vunpack.c.l.b16 %v1539
        %v1757 = vunpack.c.h.b16 %v1539
        %v1758 = vunpack.c.l.b16 %v1540
        %v1759 = vunpack.c.h.b16 %v1540
        %v1760 = vunpack.c.l.b16 %v1541
        %v1761 = vunpack.c.h.b16 %v1541
        %v1762 = vunpack.c.l.b16 %v1542
        %v1763 = vunpack.c.h.b16 %v1542
        %v1764 = vunpack.c.l.b16 %v1543
        %v1765 = vunpack.c.h.b16 %v1543
        %v1766 = vunpack.c.l.b16 %v1544
        %v1767 = vunpack.c.h.b16 %v1544
        %v1768 = vunpack.c.l.b16 %v1545
        %v1769 = vunpack.c.h.b16 %v1545
        %v1770 = vunpack.c.l.b16 %v1546
        %v1771 = vunpack.c.h.b16 %v1546
        %v1772 = vunpack.c.l.b16 %v1547
        %v1773 = vunpack.c.h.b16 %v1547
        %v1774 = vunpack.c.l.b16 %v1548
        %v1775 = vunpack.c.h.b16 %v1548
        %v1776 = vunpack.c.l.b16 %v1549
        %v1777 = vunpack.c.h.b16 %v1549
        %v1778 = vunpack.c.l.b16 %v1550
        %v1779 = vunpack.c.h.b16 %v1550
        %v1780 = vunpack.c.l.b16 %v1551
        %v1781 = vunpack.c.h.b16 %v1551
        %v1782 = vunpack.c.l.b16 %v1552
        %v1783 = vunpack.c.h.b16 %v1552
        %v1784 = vunpack.c.l.b16 %v1553
        %v1785 = vunpack.c.h.b16 %v1553
        %v1786 = vunpack.c.l.b16 %v1554
        %v1787 = vunpack.c.h.b16 %v1554
        %v1788 = vunpack.c.l.b16 %v1555
        %v1789 = vunpack.c.h.b16 %v1555
        %v1790 = vunpack.c.l.b16 %v1556
        %v1791 = vunpack.c.h.b16 %v1556
        %v1792 = vunpack.c.l.b16 %v1557
        %v1793 = vunpack.c.h.b16 %v1557
        %v1794 = vunpack.c.l.b16 %v1558
        %v1795 = vunpack.c.h.b16 %v1558
        %v1796 = vunpack.c.l.b16 %v1559
        %v1797 = vunpack.c.h.b16 %v1559
        %v1798 = vunpack.c.l.b16 %v1560
        %v1799 = vunpack.c.h.b16 %v1560
        %v1800 = vunpack.c.l.b16 %v1561
        %v1801 = vunpack.c.h.b16 %v1561
        %v1802 = vunpack.c.l.b16 %v1562
        %v1803 = vunpack.c.h.b16 %v1562
        %v1804 = vunpack.c.l.b16 %v1563
        %v1805 = vunpack.c.h.b16 %v1563
        %v1806 = vunpack.c.l.b16 %v1564
        %v1807 = vunpack.c.h.b16 %v1564
        %v1808 = vunpack.c.l.b16 %v1565
        %v1809 = vunpack.c.h.b16 %v1565
        %v1810 = vunpack.c.l.b16 %v1566
        %v1811 = vunpack.c.h.b16 %v1566
        %v1812 = vunpack.c.l.b16 %v1567
        %v1813 = vunpack.c.h.b16 %v1567
        %v1814 = vunpack.c.l.b16 %v1568
        %v1815 = vunpack.c.h.b16 %v1568
        %v1816 = vunpack.c.l.b16 %v1569
        %v1817 = vunpack.c.h.b16 %v1569
        %v1818 = vunpack.c.l.b16 %v1570
        %v1819 = vunpack.c.h.b16 %v1570
        %v1820 = vunpack.c.l.b16 %v1571
        %v1821 = vunpack.c.h.b16 %v1571
        %v1822 = vunpack.c.l.b16 %v1572
        %v1823 = vunpack.c.h.b16 %v1572
        %v1824 = vunpack.c.l.b16 %v1573
        %v1825 = vunpack.c.h.b16 %v1573
        %v1826 = vunpack.c.l.b16 %v1574
        %v1827 = vunpack.c.h.b16 %v1574
        %v1828 = vunpack.c.l.b16 %v1575
        %v1829 = vunpack.c.h.b16 %v1575
        %v1830 = vunpack.c.l.b16 %v1576
        %v1831 = vunpack.c.h.b16 %v1576
        %v1832 = vunpack.c.l.b16 %v1577
        %v1833 = vunpack.c.h.b16 %v1577
        %v1834 = vunpack.c.l.b16 %v1578
        %v1835 = vunpack.c.h.b16 %v1578
        %v1836 = vunpack.c.l.b16 %v1579
        %v1837 = vunpack.c.h.b16 %v1579
        %v1838 = vunpack.c.l.b16 %v1580
        %v1839 = vunpack.c.h.b16 %v1580
        %v1840 = vunpack.c.l.b16 %v1581
        %v1841 = vunpack.c.h.b16 %v1581
        %v1842 = vunpack.c.l.b16 %v1582
        %v1843 = vunpack.c.h.b16 %v1582
        %v1844 = vunpack.c.l.b16 %v1583
        %v1845 = vunpack.c.h.b16 %v1583
        %v1846 = vunpack.c.l.b16 %v1584
        %v1847 = vunpack.c.h.b16 %v1584
        %v1848 = vunpack.c.l.b16 %v1585
        %v1849 = vunpack.c.h.b16 %v1585
        %v1850 = vunpack.c.l.b16 %v1586
        %v1851 = vunpack.c.h.b16 %v1586
        %v1852 = vunpack.c.l.b16 %v1587
        %v1853 = vunpack.c.h.b16 %v1587
        %v1854 = vunpack.c.l.b16 %v1588
        %v1855 = vunpack.c.h.b16 %v1588
        %v1856 = vunpack.c.l.b16 %v1589
        %v1857 = vunpack.c.h.b16 %v1589
        %v1858 = vunpack.c.l.b16 %v1590
        %v1859 = vunpack.c.h.b16 %v1590
        %v1860 = vunpack.c.l.b16 %v1591
        %v1861 = vunpack.c.h.b16 %v1591
        %v1862 = vunpack.c.l.b16 %v1592
        %v1863 = vunpack.c.h.b16 %v1592
        %v1864 = vunpack.c.l.b16 %v1593
        %v1865 = vunpack.c.h.b16 %v1593
        %v1866 = vunpack.c.l.b16 %v1594
        %v1867 = vunpack.c.h.b16 %v1594
        %v1868 = vunpack.c.l.b16 %v1595
        %v1869 = vunpack.c.h.b16 %v1595
        %v1870 = vunpack.c.l.b16 %v1596
        %v1871 = vunpack.c.h.b16 %v1596
        %v1872 = vunpack.c.l.b16 %v1597
        %v1873 = vunpack.c.h.b16 %v1597
        %v1874 = vunpack.c.l.b16 %v1598
        %v1875 = vunpack.c.h.b16 %v1598
        %v1876 = vunpack.c.l.b16 %v1599
        %v1877 = vunpack.c.h.b16 %v1599
        %v1878 = vunpack.c.l.b16 %v1600
        %v1879 = vunpack.c.h.b16 %v1600
        %v1880 = vunpack.c.l.b16 %v1601
        %v1881 = vunpack.c.h.b16 %v1601
        %v1882 = vunpack.c.l.b16 %v1602
        %v1883 = vunpack.c.h.b16 %v1602
        %v1884 = vunpack.c.l.b16 %v1603
        %v1885 = vunpack.c.h.b16 %v1603
        %v1886 = vunpack.c.l.b16 %v1604
        %v1887 = vunpack.c.h.b16 %v1604
        %v1888 = vunpack.c.l.b16 %v1605
        %v1889 = vunpack.c.h.b16 %v1605
        %v1890 = vunpack.c.l.b16 %v1606
        %v1891 = vunpack.c.h.b16 %v1606
        %v1892 = vunpack.c.l.b16 %v1607
        %v1893 = vunpack.c.h.b16 %v1607
        %v1894 = vunpack.c.l.b16 %v1608
        %v1895 = vunpack.c.h.b16 %v1608
        %v1896 = vunpack.c.l.b16 %v1609
        %v1897 = vunpack.c.h.b16 %v1609
        %v1898 = vunpack.c.l.b16 %v1610
        %v1899 = vunpack.c.h.b16 %v1610
        %v1900 = vunpack.c.l.b16 %v1611
        %v1901 = vunpack.c.h.b16 %v1611
        %v1902 = vunpack.c.l.b16 %v1612
        %v1903 = vunpack.c.h.b16 %v1612
        %v1904 = vunpack.c.l.b16 %v1613
        %v1905 = vunpack.c.h.b16 %v1613
        %v1906 = vunpack.c.l.b16 %v1614
        %v1907 = vunpack.c.h.b16 %v1614
        %v1908 = vunpack.c.l.b16 %v1615
        %v1909 = vunpack.c.h.b16 %v1615
        %v1910 = vunpack.c.l.b16 %v1616
        %v1911 = vunpack.c.h.b16 %v1616
        %v1912 = vunpack.c.l.b16 %v1617
        %v1913 = vunpack.c.h.b16 %v1617
        %v1914 = vunpack.c.l.b16 %v1618
        %v1915 = vunpack.c.h.b16 %v1618
        %v1916 = vunpack.c.l.b16 %v1619
        %v1917 = vunpack.c.h.b16 %v1619
        %v1918 = vunpack.c.l.b16 %v1620
        %v1919 = vunpack.c.h.b16 %v1620
        %v1920 = vunpack.c.l.b16 %v1621
        %v1921 = vunpack.c.h.b16 %v1621
        %v1922 = vpack.c.b16 %v1732, %v1730
        %v1923 = vpack.c.b16 %v1733, %v1731
        %v1924 = vpack.c.b16 %v1736, %v1734
        %v1925 = vpack.c.b16 %v1737, %v1735
        %v1926 = vpack.c.b16 %v1740, %v1738
        %v1927 = vpack.c.b16 %v1741, %v1739
        %v1928 = vpack.c.b16 %v1744, %v1742
        %v1929 = vpack.c.b16 %v1745, %v1743
        %v1930 = vpack.c.b16 %v1748, %v1746
        %v1931 = vpack.c.b16 %v1749, %v1747
        %v1932 = vpack.c.b16 %v1752, %v1750
        %v1933 = vpack.c.b16 %v1753, %v1751
        %v1934 = vpack.c.b16 %v1756, %v1754
        %v1935 = vpack.c.b16 %v1757, %v1755
        %v1936 = vpack.c.b16 %v1760, %v1758
        %v1937 = vpack.c.b16 %v1761, %v1759
        %v1938 = vpack.c.b16 %v1764, %v1762
        %v1939 = vpack.c.b16 %v1765, %v1763
        %v1940 = vpack.c.b16 %v1768, %v1766
        %v1941 = vpack.c.b16 %v1769, %v1767
        %v1942 = vpack.c.b16 %v1772, %v1770
        %v1943 = vpack.c.b16 %v1773, %v1771
        %v1944 = vpack.c.b16 %v1776, %v1774
        %v1945 = vpack.c.b16 %v1777, %v1775
        %v1946 = vpack.c.b16 %v1780, %v1778
        %v1947 = vpack.c.b16 %v1781, %v1779
        %v1948 = vpack.c.b16 %v1784, %v1782
        %v1949 = vpack.c.b16 %v1785, %v1783
        %v1950 = vpack.c.b16 %v1788, %v1786
        %v1951 = vpack.c.b16 %v1789, %v1787
        %v1952 = vpack.c.b16 %v1792, %v1790
        %v1953 = vpack.c.b16 %v1793, %v1791
        %v1954 = vpack.c.b16 %v1796, %v1794
        %v1955 = vpack.c.b16 %v1797, %v1795
        %v1956 = vpack.c.b16 %v1800, %v1798
        %v1957 = vpack.c.b16 %v1801, %v1799
        %v1958 = vpack.c.b16 %v1804, %v1802
        %v1959 = vpack.c.b16 %v1805, %v1803
        %v1960 = vpack.c.b16 %v1808, %v1806
        %v1961 = vpack.c.b16 %v1809, %v1807
        %v1962 = vpack.c.b16 %v1812, %v1810
        %v1963 = vpack.c.b16 %v1813, %v1811
        %v1964 = vpack.c.b16 %v1816, %v1814
        %v1965 = vpack.c.b16 %v1817, %v1815
        %v1966 = vpack.c.b16 %v1820, %v1818
        %v1967 = vpack.c.b16 %v1821, %v1819
        %v1968 = vpack.c.b16 %v1824, %v1822
        %v1969 = vpack.c.b16 %v1825, %v1823
        %v1970 = vpack.c.b16 %v1828, %v1826
        %v1971 = vpack.c.b16 %v1829, %v1827
        %v1972 = vpack.c.b16 %v1832, %v1830
        %v1973 = vpack.c.b16 %v1833, %v1831
        %v1974 = vpack.c.b16 %v1836, %v1834
        %v1975 = vpack.c.b16 %v1837, %v1835
        %v1976 = vpack.c.b16 %v1840, %v1838
        %v1977 = vpack.c.b16 %v1841, %v1839
        %v1978 = vpack.c.b16 %v1844, %v1842
        %v1979 = vpack.c.b16 %v1845, %v1843
        %v1980 = vpack.c.b16 %v1848, %v1846
        %v1981 = vpack.c.b16 %v1849, %v1847
        %v1982 = vpack.c.b16 %v1852, %v1850
        %v1983 = vpack.c.b16 %v1853, %v1851
        %v1984 = vpack.c.b16 %v1856, %v1854
        %v1985 = vpack.c.b16 %v1857, %v1855
        %v1986 = vpack.c.b16 %v1860, %v1858
        %v1987 = vpack.c.b16 %v1861, %v1859
        %v1988 = vpack.c.b16 %v1864, %v1862
        %v1989 = vpack.c.b16 %v1865, %v1863
        %v1990 = vpack.c.b16 %v1868, %v1866
        %v1991 = vpack.c.b16 %v1869, %v1867
        %v1992 = vpack.c.b16 %v1872, %v1870
        %v1993 = vpack.c.b16 %v1873, %v1871
        %v1994 = vpack.c.b16 %v1876, %v1874
        %v1995 = vpack.c.b16 %v1877, %v1875
        %v1996 = vpack.c.b16 %v1880, %v1878
        %v1997 = vpack.c.b16 %v1881, %v1879
        %v1998 = vpack.c.b16 %v1884, %v1882
        %v1999 = vpack.c.b16 %v1885, %v1883
        %v2000 = vpack.c.b16 %v1888, %v1886
        %v2001 = vpack.c.b16 %v1889, %v1887
        %v2002 = vpack.c.b16 %v1892, %v1890
        %v2003 = vpack.c.b16 %v1893, %v1891
        %v2004 = vpack.c.b16 %v1896, %v1894
        %v2005 = vpack.c.b16 %v1897, %v1895
        %v2006 = vpack.c.b16 %v1900, %v1898
        %v2007 = vpack.c.b16 %v1901, %v1899
        %v2008 = vpack.c.b16 %v1904, %v1902
        %v2009 = vpack.c.b16 %v1905, %v1903
        %v2010 = vpack.c.b16 %v1908, %v1906
        %v2011 = vpack.c.b16 %v1909, %v1907
        %v2012 = vpack.c.b16 %v1912, %v1910
        %v2013 = vpack.c.b16 %v1913, %v1911
        %v2014 = vpack.c.b16 %v1916, %v1914
        %v2015 = vpack.c.b16 %v1917, %v1915
        %v2016 = vpack.c.b16 %v1920, %v1918
        %v2017 = vpack.c.b16 %v1921, %v1919
        %2114 = vmatprep.subr.bf16.mxu0 %v1937
        %2115 = vmatpush1.bf16.msra.mxu0 %v1936
        %2116 = vmatprep.subr.bf16.mxu0 %v1935
        %2117 = vmatpush1.bf16.msra.mxu0 %v1934
        %2118 = vmatprep.subr.bf16.mxu0 %v1933
        %2119 = vmatpush1.bf16.msra.mxu0 %v1932
        %2120 = vmatprep.subr.bf16.mxu0 %v1931
        %2121 = vmatpush1.bf16.msra.mxu0 %v1930
        %2122 = vmatprep.subr.bf16.mxu0 %v1929
        %2123 = vmatpush1.bf16.msra.mxu0 %v1928
        %2124 = vmatprep.subr.bf16.mxu0 %v1927
        %2125 = vmatpush1.bf16.msra.mxu0 %v1926
        %2126 = vmatprep.subr.bf16.mxu0 %v1925
        %2127 = vmatpush1.bf16.msra.mxu0 %v1924
        %2128 = vmatprep.subr.bf16.mxu0 %v1923
        %2129 = vmatpush1.bf16.msra.mxu0 %v1922
        %2130 = vmatprep.subr.bf16.mxu0 %v1953
        %2131 = vmatpush2.bf16.msra.mxu0 %v1952
        %2132 = vmatprep.subr.bf16.mxu0 %v1951
        %2133 = vmatpush2.bf16.msra.mxu0 %v1950
        %2134 = vmatprep.subr.bf16.mxu0 %v1949
        %2135 = vmatpush2.bf16.msra.mxu0 %v1948
        %2136 = vmatprep.subr.bf16.mxu0 %v1947
        %2137 = vmatpush2.bf16.msra.mxu0 %v1946
        %2138 = vmatprep.subr.bf16.mxu0 %v1945
        %2139 = vmatpush2.bf16.msra.mxu0 %v1944
        %2140 = vmatprep.subr.bf16.mxu0 %v1943
        %2141 = vmatpush2.bf16.msra.mxu0 %v1942
        %2142 = vmatprep.subr.bf16.mxu0 %v1941
        %2143 = vmatpush2.bf16.msra.mxu0 %v1940
        %2144 = vmatprep.subr.bf16.mxu0 %v1939
        %2145 = vmatpush2.bf16.msra.mxu0 %v1938
        %2146 = vmatprep.mubr.bf16.mxu0 %v1521
        %2147 = vmatmul.mubr.bf16.gmra.mxu0 %v1520
        %v2148 = vpop.f32.mrf.mxu0
        %v2149 = vadd.f32 %v1627, %v2148
        %v2150 = vpop.f32.mrf.mxu0
        %v2151 = vadd.f32 %v1631, %v2150
        %v2152 = vpop.f32.mrf.mxu0
        %v2153 = vadd.f32 %v1627, %v2152
        %v2154 = vpop.f32.mrf.mxu0
        %v2155 = vadd.f32 %v1631, %v2154
        %2156 = vdwg.mxu0
        %2157 = vmatprep.subr.bf16.mxu0 %v1969
        %2158 = vmatpush1.bf16.msra.mxu0 %v1968
        %2159 = vmatprep.subr.bf16.mxu0 %v1967
        %2160 = vmatpush1.bf16.msra.mxu0 %v1966
        %2161 = vmatprep.subr.bf16.mxu0 %v1965
        %2162 = vmatpush1.bf16.msra.mxu0 %v1964
        %2163 = vmatprep.subr.bf16.mxu0 %v1963
        %2164 = vmatpush1.bf16.msra.mxu0 %v1962
        %2165 = vmatprep.subr.bf16.mxu0 %v1961
        %2166 = vmatpush1.bf16.msra.mxu0 %v1960
        %2167 = vmatprep.subr.bf16.mxu0 %v1959
        %2168 = vmatpush1.bf16.msra.mxu0 %v1958
        %2169 = vmatprep.subr.bf16.mxu0 %v1957
        %2170 = vmatpush1.bf16.msra.mxu0 %v1956
        %2171 = vmatprep.subr.bf16.mxu0 %v1955
        %2172 = vmatpush1.bf16.msra.mxu0 %v1954
        %2173 = vmatprep.subr.bf16.mxu0 %v1985
        %2174 = vmatpush2.bf16.msra.mxu0 %v1984
        %2175 = vmatprep.subr.bf16.mxu0 %v1983
        %2176 = vmatpush2.bf16.msra.mxu0 %v1982
        %2177 = vmatprep.subr.bf16.mxu0 %v1981
        %2178 = vmatpush2.bf16.msra.mxu0 %v1980
        %2179 = vmatprep.subr.bf16.mxu0 %v1979
        %2180 = vmatpush2.bf16.msra.mxu0 %v1978
        %2181 = vmatprep.subr.bf16.mxu0 %v1977
        %2182 = vmatpush2.bf16.msra.mxu0 %v1976
        %2183 = vmatprep.subr.bf16.mxu0 %v1975
        %2184 = vmatpush2.bf16.msra.mxu0 %v1974
        %2185 = vmatprep.subr.bf16.mxu0 %v1973
        %2186 = vmatpush2.bf16.msra.mxu0 %v1972
        %2187 = vmatprep.subr.bf16.mxu0 %v1971
        %2188 = vmatpush2.bf16.msra.mxu0 %v1970
        %2189 = vmatprep.mubr.bf16.mxu0 %v1523
        %2190 = vmatmul.mubr.bf16.gmra.mxu0 %v1522
        %v2191 = vpop.f32.mrf.mxu0
        %v2192 = vadd.f32 %v2149, %v2191
        %v2193 = vpop.f32.mrf.mxu0
        %v2194 = vadd.f32 %v2151, %v2193
        %v2195 = vpop.f32.mrf.mxu0
        %v2196 = vadd.f32 %v2153, %v2195
        %v2197 = vpop.f32.mrf.mxu0
        %v2198 = vadd.f32 %v2155, %v2197
        %2199 = vdwg.mxu0
        %2200 = vmatprep.subr.bf16.mxu0 %v2001
        %2201 = vmatpush1.bf16.msra.mxu0 %v2000
        %2202 = vmatprep.subr.bf16.mxu0 %v1999
        %2203 = vmatpush1.bf16.msra.mxu0 %v1998
        %2204 = vmatprep.subr.bf16.mxu0 %v1997
        %2205 = vmatpush1.bf16.msra.mxu0 %v1996
        %2206 = vmatprep.subr.bf16.mxu0 %v1995
        %2207 = vmatpush1.bf16.msra.mxu0 %v1994
        %2208 = vmatprep.subr.bf16.mxu0 %v1993
        %2209 = vmatpush1.bf16.msra.mxu0 %v1992
        %2210 = vmatprep.subr.bf16.mxu0 %v1991
        %2211 = vmatpush1.bf16.msra.mxu0 %v1990
        %2212 = vmatprep.subr.bf16.mxu0 %v1989
        %2213 = vmatpush1.bf16.msra.mxu0 %v1988
        %2214 = vmatprep.subr.bf16.mxu0 %v1987
        %2215 = vmatpush1.bf16.msra.mxu0 %v1986
        %2216 = vmatprep.subr.bf16.mxu0 %v2017
        %2217 = vmatpush2.bf16.msra.mxu0 %v2016
        %2218 = vmatprep.subr.bf16.mxu0 %v2015
        %2219 = vmatpush2.bf16.msra.mxu0 %v2014
        %2220 = vmatprep.subr.bf16.mxu0 %v2013
        %2221 = vmatpush2.bf16.msra.mxu0 %v2012
        %2222 = vmatprep.subr.bf16.mxu0 %v2011
        %2223 = vmatpush2.bf16.msra.mxu0 %v2010
        %2224 = vmatprep.subr.bf16.mxu0 %v2009
        %2225 = vmatpush2.bf16.msra.mxu0 %v2008
        %2226 = vmatprep.subr.bf16.mxu0 %v2007
        %2227 = vmatpush2.bf16.msra.mxu0 %v2006
        %2228 = vmatprep.subr.bf16.mxu0 %v2005
        %2229 = vmatpush2.bf16.msra.mxu0 %v2004
        %2230 = vmatprep.subr.bf16.mxu0 %v2003
        %2231 = vmatpush2.bf16.msra.mxu0 %v2002
        %2232 = vmatprep.mubr.bf16.mxu0 %v1525
        %2233 = vmatmul.mubr.bf16.gmra.mxu0 %v1524
        %v2234 = vpop.f32.mrf.mxu0
        %v2235 = vadd.f32 %v2192, %v2234
        %v2236 = vpop.f32.mrf.mxu0
        %v2237 = vadd.f32 %v2194, %v2236
        %v2238 = vpop.f32.mrf.mxu0
        %v2239 = vadd.f32 %v2196, %v2238
        %v2240 = vpop.f32.mrf.mxu0
        %v2241 = vadd.f32 %v2198, %v2240
        %2242 = vdwg.mxu0
        %v2243 = vadd.f32 %v2235, %v725
        %v2244 = vadd.f32 %v2237, %v727
        %v2245 = vadd.f32 %v2239, %v729
        %v2246 = vadd.f32 %v2241, %v731
        %v2247 = vpack.c.bf16 %v2245, %v2243
        %v2248 = vpack.c.bf16 %v2246, %v2244
        %v2251 = vunpack.c.l.b16 %v2247
        %v2252 = vunpack.c.l.b16 %v2248
        %v2253 = vunpack.c.h.b16 %v2247
        %v2254 = vunpack.c.h.b16 %v2248
        %v2255 = vpack.c.b16 %v2252, %v2251
        %v2256 = vpack.c.b16 %v2254, %v2253
        %2259 = vst [vmem:[%s322] sm:$0xff] %v2255
        %2260 = vst [vmem:[%s322 + $0x8] sm:$0xff] %v2256
        %p2261 = scmp.lt.s32.totalorder %s20, 1
        %s2262 = scalar_select %p2261, %s20, 1
        %s2263 = smul.addr %s2262, 4
        %s2264 = smul.addr %s2263, 4
        %s2265 = scalar_lea.vmem %s7, %s2264
        // Predicated region
        $region61: #{dpcnn_forward.4} parent=47 // pred_check
          %p2266 = pneg %p190
        $region62: #{dpcnn_forward.4} parent=47 // pred_check_branch
          %2268 = sbr.rel (%p2266) target = $region64
        $region63: #{dpcnn_forward.4} parent=47 // pred_region
          _
        $region64: #{dpcnn_forward.4} parent=47 // pred_fallthru
          _
      $region48: #{dpcnn_forward.4} parent=5 // pred_fallthru
        _
      %p2269 = scmp.le.s32.totalorder 2, %s15
      // Predicated region
      $region65: #{dpcnn_forward.4} parent=5 // pred_check
        %p2270 = pneg %p2269
      $region66: #{dpcnn_forward.4} parent=5 // pred_check_branch
        %2272 = sbr.rel (%p2270) target = $region68
      $region67: #{dpcnn_forward.4} parent=5 // pred_region
        %s2273 = ssub.s32 %s15, 2
        // Predicated region
        $region69: #{dpcnn_forward.4} parent=67 // pred_check
          %p2274 = pneg %p196
        $region70: #{dpcnn_forward.4} parent=67 // pred_check_branch
          %2276 = sbr.rel (%p2274) target = $region72
        $region71: #{dpcnn_forward.4} parent=67 // pred_region
          %p2277 = scmp.lt.s32.totalorder %s21, 1
          %s2278 = scalar_select %p2277, %s21, 1
          %s2279 = smul.addr %s2278, 4
          %s2280 = smul.addr %s2279, 4
          %s2281 = scalar_lea.vmem %s7, %s2280
        $region72: #{dpcnn_forward.4} parent=67 // pred_fallthru
          _
      $region68: #{dpcnn_forward.4} parent=5 // pred_fallthru
        _
    $region6: #{dpcnn_forward.4} parent=1 // loop_footer
      %s19 = sadd.s32 1, %s15
    $region7: #{dpcnn_forward.4} parent=1 // loop_footer_branch
      %14 = sbr.rel target = $region3
    $region8: #{dpcnn_forward.4} parent=1 // loop_exit
      _
    %2282 = vsyncpa [#allocation3], 1
    %s2283 = scalar_lea.sflag [#allocation3], 1
    %2284 = vsyncpa %s2283, 1
    %2285 = vsyncpa [#allocation5], 1

</llo_original>
